<compile_context>
chip_gen: v7x
topology: tpu7x:2x2x1
jax: 0.10.0
libtpu: 0.0.40
codegen_flags: <defaults>
</compile_context>

<pallas_src>
import itertools

import jax
import jax.numpy as jnp
from jax.experimental import pallas as pl
from jax.experimental.pallas import tpu as pltpu

# ----------------------------- model config ---------------------------------
KMER = 3
HIDDEN = 128
HEADS = 4
HEAD_DIM = HIDDEN // HEADS
INTERMEDIATE = 256
LAYERS = 2
MAX_SEQ = 16
TYPE_VOCAB = 2
VOCAB_PAD = 128  # vocab rows padded to a full 128-lane tile for the one-hot matmul

# deterministic k-mer vocab ('DNAbert_3mer' style: 5 specials + 4^k kmers)
_SPECIALS = {"[PAD]": 0, "[UNK]": 1, "[CLS]": 2, "[SEP]": 3, "[MASK]": 4}
_KMER_TOKENS = ["".join(p) for p in itertools.product("ACGT", repeat=KMER)]
VOCAB = {**_SPECIALS, **{t: i + 5 for i, t in enumerate(_KMER_TOKENS)}}
VOCAB_SIZE = len(VOCAB)
assert VOCAB_SIZE <= VOCAB_PAD


# ------------------------------ fused kernel ---------------------------------
def _bert_kernel(ids_ref, tt_ref, bias_ref,
                 word_emb_ref, pos_emb_ref, type_emb_ref,
                 emb_g_ref, emb_b_ref,
                 wqkv_ref, bqkv_ref, wo_ref, bo_ref,
                 ln1_g_ref, ln1_b_ref, w1_ref, b1_ref,
                 w2_ref, b2_ref, ln2_g_ref, ln2_b_ref,
                 seg_ref, pool_w_ref, pool_b_ref, out_ref):
    f32 = jnp.float32
    bf16 = jnp.bfloat16

    M = ids_ref.shape[0]          # B * S (batch folded into matmul rows)
    B = out_ref.shape[0]
    S = M // B
    DH = HEAD_DIM
    vpad = word_emb_ref.shape[0]

    def ln(x, g, b):
        mean = jnp.mean(x, axis=-1, keepdims=True)
        var = jnp.mean(jnp.square(x - mean), axis=-1, keepdims=True)
        return (x - mean) * jax.lax.rsqrt(var + 1e-12) * g + b

    def mm(a, b):                 # bf16 MXU operands, f32 accumulation
        return jnp.dot(a.astype(bf16), b.astype(bf16), preferred_element_type=f32)

    def mm_t(a, b):               # a @ b.T
        return jax.lax.dot_general(a.astype(bf16), b.astype(bf16),
                                   (((1,), (1,)), ((), ())),
                                   preferred_element_type=f32)

    # --- embeddings (in-kernel): one-hot MXU gather + pos + token-type lerp ---
    ids = ids_ref[...]                                            # [M, 1] int32
    onehot = (jax.lax.broadcasted_iota(jnp.int32, (M, vpad), 1) == ids).astype(bf16)
    word = mm(onehot, word_emb_ref[...])                          # [M, H] f32
    tt = tt_ref[...].astype(f32)                                  # [M, 1]
    type_vec = (1.0 - tt) * type_emb_ref[0:1, :] + tt * type_emb_ref[1:2, :]
    x = ln(word + pos_emb_ref[...] + type_vec, emb_g_ref[...], emb_b_ref[...])

    bias = bias_ref[...]                                          # [M, HEADS*M] packed key mask
    seg = seg_ref[...]                                            # [HEADS*M, HEADS*M] block-diag ones
    scale = 1.0 / (DH ** 0.5)

    for l in range(LAYERS):
        # --- self-attention: fused QKV projection (one lane-dense matmul) ---
        qkv = mm(x, wqkv_ref[l]) + bqkv_ref[l]                    # [M, 3H] f32

        # per-head scores packed along lanes -> one dense [M, HEADS*M] tile
        scores = []
        for h in range(HEADS):
            q = qkv[:, h * DH:(h + 1) * DH] * scale
            k = qkv[:, HIDDEN + h * DH:HIDDEN + (h + 1) * DH]
            scores.append(mm_t(q, k))                             # [M, M]
        s = jnp.concatenate(scores, axis=1) + bias                # [M, HEADS*M]
        # global row-max is a per-row constant -> per-head softmax is unchanged,
        # and all exponents stay <= 0 (numerically safe at this score scale).
        s = s - jnp.max(s, axis=-1, keepdims=True)
        p = jnp.exp(s)
        denom = mm(p, seg)                                        # segmented per-head row sums
        p = p * pl.reciprocal(denom, approx=True)                 # EUP recip, no VALU divide

        # per-head PV, concat into lane-dense [M, H], single W_o pass
        ctx = jnp.concatenate(
            [mm(p[:, h * M:(h + 1) * M],
                qkv[:, 2 * HIDDEN + h * DH:2 * HIDDEN + (h + 1) * DH])
             for h in range(HEADS)], axis=1)                      # [M, H]
        x = ln(x + mm(ctx, wo_ref[l]) + bo_ref[l], ln1_g_ref[l], ln1_b_ref[l])

        # --- feed-forward ---
        hmid = mm(x, w1_ref[l]) + b1_ref[l]                       # [M, I]
        # TODO(synk): HF BERT uses exact erf-GELU; tanh approximation used here.
        hmid = 0.5 * hmid * (1.0 + jnp.tanh(
            0.7978845608028654 * (hmid + 0.044715 * hmid * hmid * hmid)))
        x = ln(x + mm(hmid, w2_ref[l]) + b2_ref[l], ln2_g_ref[l], ln2_b_ref[l])

    # --- pooler: dense + tanh on each sequence's [CLS] row ---
    cls = jnp.concatenate([x[b * S:b * S + 1, :] for b in range(B)], axis=0)  # [B, H]
    out_ref[...] = jnp.tanh(mm(cls, pool_w_ref[...]) + pool_b_ref[...])


# ------------------------------ parameter init -------------------------------
def init_params(key):
    keys = iter(jax.random.split(key, 128))

    def nrm(shape):
        return 0.02 * jax.random.normal(next(keys), shape, dtype=jnp.float32)

    params = {
        "word_emb": nrm((VOCAB_SIZE, HIDDEN)),
        "pos_emb": nrm((MAX_SEQ, HIDDEN)),
        "type_emb": nrm((TYPE_VOCAB, HIDDEN)),
        "emb_ln_g": jnp.ones((HIDDEN,), jnp.float32),
        "emb_ln_b": jnp.zeros((HIDDEN,), jnp.float32),
        "pool_w": nrm((HIDDEN, HIDDEN)),
        "pool_b": jnp.zeros((HIDDEN,), jnp.float32),
        "layers": [],
    }
    for _ in range(LAYERS):
        params["layers"].append({
            "wq": nrm((HIDDEN, HIDDEN)), "bq": jnp.zeros((HIDDEN,), jnp.float32),
            "wk": nrm((HIDDEN, HIDDEN)), "bk": jnp.zeros((HIDDEN,), jnp.float32),
            "wv": nrm((HIDDEN, HIDDEN)), "bv": jnp.zeros((HIDDEN,), jnp.float32),
            "wo": nrm((HIDDEN, HIDDEN)), "bo": jnp.zeros((HIDDEN,), jnp.float32),
            "ln1_g": jnp.ones((HIDDEN,), jnp.float32),
            "ln1_b": jnp.zeros((HIDDEN,), jnp.float32),
            "w1": nrm((HIDDEN, INTERMEDIATE)), "b1": jnp.zeros((INTERMEDIATE,), jnp.float32),
            "w2": nrm((INTERMEDIATE, HIDDEN)), "b2": jnp.zeros((HIDDEN,), jnp.float32),
            "ln2_g": jnp.ones((HIDDEN,), jnp.float32),
            "ln2_b": jnp.zeros((HIDDEN,), jnp.float32),
        })
    return params


def _pack_params(params):
    """Stack per-layer weights; matmul operands as bf16, elementwise params f32."""
    bf = lambda a: a.astype(jnp.bfloat16)
    L = params["layers"]
    word_pad = jnp.zeros((VOCAB_PAD, HIDDEN), jnp.bfloat16).at[:VOCAB_SIZE].set(
        bf(params["word_emb"]))
    return {
        "word_emb": word_pad,
        "type_emb": params["type_emb"],
        "emb_ln_g": params["emb_ln_g"].reshape(1, HIDDEN),
        "emb_ln_b": params["emb_ln_b"].reshape(1, HIDDEN),
        "wqkv": jnp.stack([bf(jnp.concatenate([l["wq"], l["wk"], l["wv"]], axis=1)) for l in L]),
        "bqkv": jnp.stack([jnp.concatenate([l["bq"], l["bk"], l["bv"]]).reshape(1, 3 * HIDDEN)
                           for l in L]),
        "wo": jnp.stack([bf(l["wo"]) for l in L]),
        "bo": jnp.stack([l["bo"].reshape(1, HIDDEN) for l in L]),
        "ln1_g": jnp.stack([l["ln1_g"].reshape(1, HIDDEN) for l in L]),
        "ln1_b": jnp.stack([l["ln1_b"].reshape(1, HIDDEN) for l in L]),
        "w1": jnp.stack([bf(l["w1"]) for l in L]),
        "b1": jnp.stack([l["b1"].reshape(1, INTERMEDIATE) for l in L]),
        "w2": jnp.stack([bf(l["w2"]) for l in L]),
        "b2": jnp.stack([l["b2"].reshape(1, HIDDEN) for l in L]),
        "ln2_g": jnp.stack([l["ln2_g"].reshape(1, HIDDEN) for l in L]),
        "ln2_b": jnp.stack([l["ln2_b"].reshape(1, HIDDEN) for l in L]),
        "pool_w": bf(params["pool_w"]),
        "pool_b": params["pool_b"].reshape(1, HIDDEN),
    }


# ------------------------------ tokenizer (glue) ------------------------------
# TODO(synk): the HuggingFace BertTokenizer / pretrained checkpoint loading has
# no Pallas equivalent; a deterministic in-script k-mer tokenizer is used instead.
def tokenize(seqs):
    input_ids, attn_mask = [], []
    for s in seqs:
        kmers = [s[x:x + KMER] for x in range(len(s) + 1 - KMER)]
        ids = [VOCAB["[CLS]"]] + [VOCAB.get(k, VOCAB["[UNK]"]) for k in kmers] + [VOCAB["[SEP]"]]
        assert len(ids) <= MAX_SEQ
        mask = [1] * len(ids) + [0] * (MAX_SEQ - len(ids))
        ids = ids + [VOCAB["[PAD]"]] * (MAX_SEQ - len(ids))
        input_ids.append(ids)
        attn_mask.append(mask)
    input_ids = jnp.asarray(input_ids, jnp.int32)
    token_type_ids = jnp.zeros_like(input_ids)
    attention_mask = jnp.asarray(attn_mask, jnp.int32)
    return input_ids, token_type_ids, attention_mask


# ------------------------------ BERT forward ---------------------------------
@jax.jit
def bert_forward(params, input_ids, token_type_ids, attention_mask):
    B, S = input_ids.shape
    M = B * S
    kp = _pack_params(params)

    # batch-folded scalar inputs (consumed in-kernel; no XLA gather / HBM activations)
    ids = input_ids.reshape(M, 1)
    tt = token_type_ids.reshape(M, 1)

    # block-diagonal additive key mask (per-sequence + padding), tiled across heads
    seq_id = jnp.arange(M) // S
    same_seq = seq_id[:, None] == seq_id[None, :]
    key_ok = (attention_mask.reshape(M) > 0)[None, :]
    bias = jnp.where(same_seq & key_ok, 0.0, -1e9).astype(jnp.float32)     # [M, M]
    bias_packed = jnp.tile(bias, (1, HEADS))                               # [M, HEADS*M]

    # block-diagonal ones for the per-head segmented softmax row-sum (one MXU pass)
    head_id = jnp.arange(HEADS * M) // M
    seg = (head_id[:, None] == head_id[None, :]).astype(jnp.bfloat16)      # [HEADS*M, HEADS*M]

    # positions pre-tiled to the folded layout
    pos = jnp.tile(params["pos_emb"][:S], (B, 1))                          # [M, H] f32

    inputs = [ids, tt, bias_packed,
              kp["word_emb"], pos, kp["type_emb"],
              kp["emb_ln_g"], kp["emb_ln_b"],
              kp["wqkv"], kp["bqkv"], kp["wo"], kp["bo"],
              kp["ln1_g"], kp["ln1_b"], kp["w1"], kp["b1"],
              kp["w2"], kp["b2"], kp["ln2_g"], kp["ln2_b"],
              seg, kp["pool_w"], kp["pool_b"]]

    vmem = pl.BlockSpec(memory_space=pltpu.MemorySpace.VMEM)
    pooled = pl.pallas_call(
        _bert_kernel,
        out_shape=jax.ShapeDtypeStruct((B, HIDDEN), jnp.float32),
        in_specs=[vmem] * len(inputs),
        out_specs=vmem,
    )(*inputs)
    return pooled                                   # [B, H] == 'pooler_output'


# ----------------------------------- main ------------------------------------
if __name__ == "__main__":
    key = jax.random.PRNGKey(0)
    params = init_params(key)

    # small deterministic DNA sequences (len 12 -> 10 kmers + CLS + SEP = 12 tokens)
    seqs = ["ACGTACGTACGT", "TTGACGATCGAA"]
    input_ids, token_type_ids, attention_mask = tokenize(seqs)

    representation = bert_forward(params, input_ids, token_type_ids, attention_mask)
    jax.block_until_ready(representation)
    assert representation.shape == (len(seqs), HIDDEN)
    assert bool(jnp.all(jnp.isfinite(representation)))
    print("KERNEL_OK")
</pallas_src>

<mosaic_0001>
module attributes {stable_mosaic.version = 11 : i64} {
  func.func @_bert_kernel(%arg0: memref<32x1xi32, #tpu.memory_space<vmem>>, %arg1: memref<32x1xi32, #tpu.memory_space<vmem>>, %arg2: memref<32x128xf32, #tpu.memory_space<vmem>>, %arg3: memref<128x128xbf16, #tpu.memory_space<vmem>>, %arg4: memref<32x128xf32, #tpu.memory_space<vmem>>, %arg5: memref<2x128xf32, #tpu.memory_space<vmem>>, %arg6: memref<1x128xf32, #tpu.memory_space<vmem>>, %arg7: memref<1x128xf32, #tpu.memory_space<vmem>>, %arg8: memref<2x128x384xbf16, #tpu.memory_space<vmem>>, %arg9: memref<2x1x384xf32, #tpu.memory_space<vmem>>, %arg10: memref<2x128x128xbf16, #tpu.memory_space<vmem>>, %arg11: memref<2x1x128xf32, #tpu.memory_space<vmem>>, %arg12: memref<2x1x128xf32, #tpu.memory_space<vmem>>, %arg13: memref<2x1x128xf32, #tpu.memory_space<vmem>>, %arg14: memref<2x128x256xbf16, #tpu.memory_space<vmem>>, %arg15: memref<2x1x256xf32, #tpu.memory_space<vmem>>, %arg16: memref<2x256x128xbf16, #tpu.memory_space<vmem>>, %arg17: memref<2x1x128xf32, #tpu.memory_space<vmem>>, %arg18: memref<2x1x128xf32, #tpu.memory_space<vmem>>, %arg19: memref<2x1x128xf32, #tpu.memory_space<vmem>>, %arg20: memref<128x128xbf16, #tpu.memory_space<vmem>>, %arg21: memref<128x128xbf16, #tpu.memory_space<vmem>>, %arg22: memref<1x128xf32, #tpu.memory_space<vmem>>, %arg23: memref<2x128xf32, #tpu.memory_space<vmem>>) attributes {dimension_semantics = [], scalar_prefetch = 0 : i64, scratch_operands = 0 : i64, tpu.core_type = #tpu.core_type<tc>} {
    %c0 = arith.constant 0 : index
    %c0_0 = arith.constant 0 : index
    %0 = vector.load %arg0[%c0, %c0_0] : memref<32x1xi32, #tpu.memory_space<vmem>>, vector<32x1xi32>
    %1 = tpu.iota {dimensions = array<i32: 1>} : vector<32x128xi32>
    %2 = vector.broadcast %0 : vector<32x1xi32> to vector<32x128xi32>
    %3 = arith.cmpi eq, %1, %2 : vector<32x128xi32>
    %4 = arith.extui %3 : vector<32x128xi1> to vector<32x128xi32>
    %5 = arith.sitofp %4 : vector<32x128xi32> to vector<32x128xf32>
    %6 = arith.truncf %5 : vector<32x128xf32> to vector<32x128xbf16>
    %c0_1 = arith.constant 0 : index
    %c0_2 = arith.constant 0 : index
    %7 = vector.load %arg3[%c0_1, %c0_2] : memref<128x128xbf16, #tpu.memory_space<vmem>>, vector<128x128xbf16>
    %cst = arith.constant dense<0.000000e+00> : vector<32x128xf32>
    %8 = tpu.matmul %6, %7, %cst {dimension_numbers = #tpu.dot_dimension_numbers<[1], [0], [0], [1], [0, 0, 1, 1], [], []>} : vector<32x128xbf16>, vector<128x128xbf16>, vector<32x128xf32> -> vector<32x128xf32>
    %c0_3 = arith.constant 0 : index
    %c0_4 = arith.constant 0 : index
    %9 = vector.load %arg1[%c0_3, %c0_4] : memref<32x1xi32, #tpu.memory_space<vmem>>, vector<32x1xi32>
    %10 = arith.sitofp %9 : vector<32x1xi32> to vector<32x1xf32>
    %cst_5 = arith.constant 1.000000e+00 : f32
    %11 = vector.broadcast %cst_5 : f32 to vector<32x1xf32>
    %12 = arith.subf %11, %10 : vector<32x1xf32>
    %c0_6 = arith.constant 0 : index
    %c0_7 = arith.constant 0 : index
    %13 = vector.load %arg5[%c0_6, %c0_7] : memref<2x128xf32, #tpu.memory_space<vmem>>, vector<1x128xf32>
    %14 = vector.broadcast %12 : vector<32x1xf32> to vector<32x128xf32>
    %15 = vector.broadcast %13 : vector<1x128xf32> to vector<32x128xf32>
    %16 = arith.mulf %14, %15 : vector<32x128xf32>
    %c1 = arith.constant 1 : index
    %c0_8 = arith.constant 0 : index
    %17 = vector.load %arg5[%c1, %c0_8] : memref<2x128xf32, #tpu.memory_space<vmem>>, vector<1x128xf32>
    %18 = vector.broadcast %10 : vector<32x1xf32> to vector<32x128xf32>
    %19 = vector.broadcast %17 : vector<1x128xf32> to vector<32x128xf32>
    %20 = arith.mulf %18, %19 : vector<32x128xf32>
    %21 = arith.addf %16, %20 : vector<32x128xf32>
    %c0_9 = arith.constant 0 : index
    %c0_10 = arith.constant 0 : index
    %22 = vector.load %arg4[%c0_9, %c0_10] : memref<32x128xf32, #tpu.memory_space<vmem>>, vector<32x128xf32>
    %23 = arith.addf %8, %22 : vector<32x128xf32>
    %24 = arith.addf %23, %21 : vector<32x128xf32>
    %c0_11 = arith.constant 0 : index
    %c0_12 = arith.constant 0 : index
    %25 = vector.load %arg6[%c0_11, %c0_12] : memref<1x128xf32, #tpu.memory_space<vmem>>, vector<1x128xf32>
    %c0_13 = arith.constant 0 : index
    %c0_14 = arith.constant 0 : index
    %26 = vector.load %arg7[%c0_13, %c0_14] : memref<1x128xf32, #tpu.memory_space<vmem>>, vector<1x128xf32>
    %cst_15 = arith.constant dense<0.000000e+00> : vector<32xf32>
    %27 = vector.multi_reduction <add>, %24, %cst_15 [1] : vector<32x128xf32> to vector<32xf32>
    %28 = vector.shape_cast %27 : vector<32xf32> to vector<32x1xf32>
    %cst_16 = arith.constant 1.280000e+02 : f32
    %29 = vector.broadcast %cst_16 : f32 to vector<32x1xf32>
    %30 = arith.divf %28, %29 : vector<32x1xf32>
    %31 = vector.broadcast %30 : vector<32x1xf32> to vector<32x128xf32>
    %32 = arith.subf %24, %31 : vector<32x128xf32>
    %33 = arith.mulf %32, %32 : vector<32x128xf32>
    %cst_17 = arith.constant dense<0.000000e+00> : vector<32xf32>
    %34 = vector.multi_reduction <add>, %33, %cst_17 [1] : vector<32x128xf32> to vector<32xf32>
    %35 = vector.shape_cast %34 : vector<32xf32> to vector<32x1xf32>
    %cst_18 = arith.constant 1.280000e+02 : f32
    %36 = vector.broadcast %cst_18 : f32 to vector<32x1xf32>
    %37 = arith.divf %35, %36 : vector<32x1xf32>
    %38 = vector.broadcast %30 : vector<32x1xf32> to vector<32x128xf32>
    %39 = arith.subf %24, %38 : vector<32x128xf32>
    %cst_19 = arith.constant 9.99999996E-13 : f32
    %40 = vector.broadcast %cst_19 : f32 to vector<32x1xf32>
    %41 = arith.addf %37, %40 : vector<32x1xf32>
    %42 = math.rsqrt %41 : vector<32x1xf32>
    %43 = vector.broadcast %42 : vector<32x1xf32> to vector<32x128xf32>
    %44 = arith.mulf %39, %43 : vector<32x128xf32>
    %45 = vector.broadcast %25 : vector<1x128xf32> to vector<32x128xf32>
    %46 = arith.mulf %44, %45 : vector<32x128xf32>
    %47 = vector.broadcast %26 : vector<1x128xf32> to vector<32x128xf32>
    %48 = arith.addf %46, %47 : vector<32x128xf32>
    %c0_20 = arith.constant 0 : index
    %c0_21 = arith.constant 0 : index
    %49 = vector.load %arg2[%c0_20, %c0_21] : memref<32x128xf32, #tpu.memory_space<vmem>>, vector<32x128xf32>
    %c0_22 = arith.constant 0 : index
    %c0_23 = arith.constant 0 : index
    %50 = vector.load %arg20[%c0_22, %c0_23] : memref<128x128xbf16, #tpu.memory_space<vmem>>, vector<128x128xbf16>
    %c0_24 = arith.constant 0 : index
    %c0_25 = arith.constant 0 : index
    %c0_26 = arith.constant 0 : index
    %51 = vector.load %arg8[%c0_24, %c0_25, %c0_26] : memref<2x128x384xbf16, #tpu.memory_space<vmem>>, vector<1x128x384xbf16>
    %52 = vector.shape_cast %51 : vector<1x128x384xbf16> to vector<128x384xbf16>
    %53 = arith.truncf %48 : vector<32x128xf32> to vector<32x128xbf16>
    %cst_27 = arith.constant dense<0.000000e+00> : vector<32x384xf32>
    %54 = tpu.matmul %53, %52, %cst_27 {dimension_numbers = #tpu.dot_dimension_numbers<[1], [0], [0], [1], [0, 0, 1, 1], [], []>} : vector<32x128xbf16>, vector<128x384xbf16>, vector<32x384xf32> -> vector<32x384xf32>
    %c0_28 = arith.constant 0 : index
    %c0_29 = arith.constant 0 : index
    %c0_30 = arith.constant 0 : index
    %55 = vector.load %arg9[%c0_28, %c0_29, %c0_30] : memref<2x1x384xf32, #tpu.memory_space<vmem>>, vector<1x1x384xf32>
    %56 = vector.shape_cast %55 : vector<1x1x384xf32> to vector<1x384xf32>
    %57 = vector.broadcast %56 : vector<1x384xf32> to vector<32x384xf32>
    %58 = arith.addf %54, %57 : vector<32x384xf32>
    %59 = vector.extract_strided_slice %58 {offsets = [0, 0], sizes = [32, 32], strides = [1, 1]} : vector<32x384xf32> to vector<32x32xf32>
    %cst_31 = arith.constant 0.176776692 : f32
    %60 = vector.broadcast %cst_31 : f32 to vector<32x32xf32>
    %61 = arith.mulf %59, %60 : vector<32x32xf32>
    %62 = vector.extract_strided_slice %58 {offsets = [0, 128], sizes = [32, 32], strides = [1, 1]} : vector<32x384xf32> to vector<32x32xf32>
    %63 = arith.truncf %61 : vector<32x32xf32> to vector<32x32xbf16>
    %64 = arith.truncf %62 : vector<32x32xf32> to vector<32x32xbf16>
    %cst_32 = arith.constant dense<0.000000e+00> : vector<32x32xf32>
    %65 = tpu.matmul %63, %64, %cst_32 {dimension_numbers = #tpu.dot_dimension_numbers<[1], [1], [0], [0], [0, 0, 1, 0], [], []>} : vector<32x32xbf16>, vector<32x32xbf16>, vector<32x32xf32> -> vector<32x32xf32>
    %66 = vector.extract_strided_slice %58 {offsets = [0, 32], sizes = [32, 32], strides = [1, 1]} : vector<32x384xf32> to vector<32x32xf32>
    %cst_33 = arith.constant 0.176776692 : f32
    %67 = vector.broadcast %cst_33 : f32 to vector<32x32xf32>
    %68 = arith.mulf %66, %67 : vector<32x32xf32>
    %69 = vector.extract_strided_slice %58 {offsets = [0, 160], sizes = [32, 32], strides = [1, 1]} : vector<32x384xf32> to vector<32x32xf32>
    %70 = arith.truncf %68 : vector<32x32xf32> to vector<32x32xbf16>
    %71 = arith.truncf %69 : vector<32x32xf32> to vector<32x32xbf16>
    %cst_34 = arith.constant dense<0.000000e+00> : vector<32x32xf32>
    %72 = tpu.matmul %70, %71, %cst_34 {dimension_numbers = #tpu.dot_dimension_numbers<[1], [1], [0], [0], [0, 0, 1, 0], [], []>} : vector<32x32xbf16>, vector<32x32xbf16>, vector<32x32xf32> -> vector<32x32xf32>
    %73 = vector.extract_strided_slice %58 {offsets = [0, 64], sizes = [32, 32], strides = [1, 1]} : vector<32x384xf32> to vector<32x32xf32>
    %cst_35 = arith.constant 0.176776692 : f32
    %74 = vector.broadcast %cst_35 : f32 to vector<32x32xf32>
    %75 = arith.mulf %73, %74 : vector<32x32xf32>
    %76 = vector.extract_strided_slice %58 {offsets = [0, 192], sizes = [32, 32], strides = [1, 1]} : vector<32x384xf32> to vector<32x32xf32>
    %77 = arith.truncf %75 : vector<32x32xf32> to vector<32x32xbf16>
    %78 = arith.truncf %76 : vector<32x32xf32> to vector<32x32xbf16>
    %cst_36 = arith.constant dense<0.000000e+00> : vector<32x32xf32>
    %79 = tpu.matmul %77, %78, %cst_36 {dimension_numbers = #tpu.dot_dimension_numbers<[1], [1], [0], [0], [0, 0, 1, 0], [], []>} : vector<32x32xbf16>, vector<32x32xbf16>, vector<32x32xf32> -> vector<32x32xf32>
    %80 = vector.extract_strided_slice %58 {offsets = [0, 96], sizes = [32, 32], strides = [1, 1]} : vector<32x384xf32> to vector<32x32xf32>
    %cst_37 = arith.constant 0.176776692 : f32
    %81 = vector.broadcast %cst_37 : f32 to vector<32x32xf32>
    %82 = arith.mulf %80, %81 : vector<32x32xf32>
    %83 = vector.extract_strided_slice %58 {offsets = [0, 224], sizes = [32, 32], strides = [1, 1]} : vector<32x384xf32> to vector<32x32xf32>
    %84 = arith.truncf %82 : vector<32x32xf32> to vector<32x32xbf16>
    %85 = arith.truncf %83 : vector<32x32xf32> to vector<32x32xbf16>
    %cst_38 = arith.constant dense<0.000000e+00> : vector<32x32xf32>
    %86 = tpu.matmul %84, %85, %cst_38 {dimension_numbers = #tpu.dot_dimension_numbers<[1], [1], [0], [0], [0, 0, 1, 0], [], []>} : vector<32x32xbf16>, vector<32x32xbf16>, vector<32x32xf32> -> vector<32x32xf32>
    %87 = tpu.concatenate %65, %72, %79, %86 in 1 : vector<32x32xf32>, vector<32x32xf32>, vector<32x32xf32>, vector<32x32xf32> -> vector<32x128xf32>
    %88 = arith.addf %87, %49 : vector<32x128xf32>
    %cst_39 = arith.constant dense<0xFF800000> : vector<32xf32>
    %89 = vector.multi_reduction <maximumf>, %88, %cst_39 [1] : vector<32x128xf32> to vector<32xf32>
    %90 = vector.shape_cast %89 : vector<32xf32> to vector<32x1xf32>
    %91 = vector.broadcast %90 : vector<32x1xf32> to vector<32x128xf32>
    %92 = arith.subf %88, %91 : vector<32x128xf32>
    %93 = math.exp %92 : vector<32x128xf32>
    %94 = arith.truncf %93 : vector<32x128xf32> to vector<32x128xbf16>
    %cst_40 = arith.constant dense<0.000000e+00> : vector<32x128xf32>
    %95 = tpu.matmul %94, %50, %cst_40 {dimension_numbers = #tpu.dot_dimension_numbers<[1], [0], [0], [1], [0, 0, 1, 1], [], []>} : vector<32x128xbf16>, vector<128x128xbf16>, vector<32x128xf32> -> vector<32x128xf32>
    %96 = tpu.reciprocal %95 {approx = true} : vector<32x128xf32> -> vector<32x128xf32>
    %97 = arith.mulf %93, %96 : vector<32x128xf32>
    %98 = vector.extract_strided_slice %97 {offsets = [0, 0], sizes = [32, 32], strides = [1, 1]} : vector<32x128xf32> to vector<32x32xf32>
    %99 = vector.extract_strided_slice %58 {offsets = [0, 256], sizes = [32, 32], strides = [1, 1]} : vector<32x384xf32> to vector<32x32xf32>
    %100 = arith.truncf %98 : vector<32x32xf32> to vector<32x32xbf16>
    %101 = arith.truncf %99 : vector<32x32xf32> to vector<32x32xbf16>
    %cst_41 = arith.constant dense<0.000000e+00> : vector<32x32xf32>
    %102 = tpu.matmul %100, %101, %cst_41 {dimension_numbers = #tpu.dot_dimension_numbers<[1], [0], [0], [1], [0, 0, 1, 1], [], []>} : vector<32x32xbf16>, vector<32x32xbf16>, vector<32x32xf32> -> vector<32x32xf32>
    %103 = vector.extract_strided_slice %97 {offsets = [0, 32], sizes = [32, 32], strides = [1, 1]} : vector<32x128xf32> to vector<32x32xf32>
    %104 = vector.extract_strided_slice %58 {offsets = [0, 288], sizes = [32, 32], strides = [1, 1]} : vector<32x384xf32> to vector<32x32xf32>
    %105 = arith.truncf %103 : vector<32x32xf32> to vector<32x32xbf16>
    %106 = arith.truncf %104 : vector<32x32xf32> to vector<32x32xbf16>
    %cst_42 = arith.constant dense<0.000000e+00> : vector<32x32xf32>
    %107 = tpu.matmul %105, %106, %cst_42 {dimension_numbers = #tpu.dot_dimension_numbers<[1], [0], [0], [1], [0, 0, 1, 1], [], []>} : vector<32x32xbf16>, vector<32x32xbf16>, vector<32x32xf32> -> vector<32x32xf32>
    %108 = vector.extract_strided_slice %97 {offsets = [0, 64], sizes = [32, 32], strides = [1, 1]} : vector<32x128xf32> to vector<32x32xf32>
    %109 = vector.extract_strided_slice %58 {offsets = [0, 320], sizes = [32, 32], strides = [1, 1]} : vector<32x384xf32> to vector<32x32xf32>
    %110 = arith.truncf %108 : vector<32x32xf32> to vector<32x32xbf16>
    %111 = arith.truncf %109 : vector<32x32xf32> to vector<32x32xbf16>
    %cst_43 = arith.constant dense<0.000000e+00> : vector<32x32xf32>
    %112 = tpu.matmul %110, %111, %cst_43 {dimension_numbers = #tpu.dot_dimension_numbers<[1], [0], [0], [1], [0, 0, 1, 1], [], []>} : vector<32x32xbf16>, vector<32x32xbf16>, vector<32x32xf32> -> vector<32x32xf32>
    %113 = vector.extract_strided_slice %97 {offsets = [0, 96], sizes = [32, 32], strides = [1, 1]} : vector<32x128xf32> to vector<32x32xf32>
    %114 = vector.extract_strided_slice %58 {offsets = [0, 352], sizes = [32, 32], strides = [1, 1]} : vector<32x384xf32> to vector<32x32xf32>
    %115 = arith.truncf %113 : vector<32x32xf32> to vector<32x32xbf16>
    %116 = arith.truncf %114 : vector<32x32xf32> to vector<32x32xbf16>
    %cst_44 = arith.constant dense<0.000000e+00> : vector<32x32xf32>
    %117 = tpu.matmul %115, %116, %cst_44 {dimension_numbers = #tpu.dot_dimension_numbers<[1], [0], [0], [1], [0, 0, 1, 1], [], []>} : vector<32x32xbf16>, vector<32x32xbf16>, vector<32x32xf32> -> vector<32x32xf32>
    %118 = tpu.concatenate %102, %107, %112, %117 in 1 : vector<32x32xf32>, vector<32x32xf32>, vector<32x32xf32>, vector<32x32xf32> -> vector<32x128xf32>
    %c0_45 = arith.constant 0 : index
    %c0_46 = arith.constant 0 : index
    %c0_47 = arith.constant 0 : index
    %119 = vector.load %arg10[%c0_45, %c0_46, %c0_47] : memref<2x128x128xbf16, #tpu.memory_space<vmem>>, vector<1x128x128xbf16>
    %120 = vector.shape_cast %119 : vector<1x128x128xbf16> to vector<128x128xbf16>
    %121 = arith.truncf %118 : vector<32x128xf32> to vector<32x128xbf16>
    %cst_48 = arith.constant dense<0.000000e+00> : vector<32x128xf32>
    %122 = tpu.matmul %121, %120, %cst_48 {dimension_numbers = #tpu.dot_dimension_numbers<[1], [0], [0], [1], [0, 0, 1, 1], [], []>} : vector<32x128xbf16>, vector<128x128xbf16>, vector<32x128xf32> -> vector<32x128xf32>
    %123 = arith.addf %48, %122 : vector<32x128xf32>
    %c0_49 = arith.constant 0 : index
    %c0_50 = arith.constant 0 : index
    %c0_51 = arith.constant 0 : index
    %124 = vector.load %arg11[%c0_49, %c0_50, %c0_51] : memref<2x1x128xf32, #tpu.memory_space<vmem>>, vector<1x1x128xf32>
    %125 = vector.shape_cast %124 : vector<1x1x128xf32> to vector<1x128xf32>
    %126 = vector.broadcast %125 : vector<1x128xf32> to vector<32x128xf32>
    %127 = arith.addf %123, %126 : vector<32x128xf32>
    %c0_52 = arith.constant 0 : index
    %c0_53 = arith.constant 0 : index
    %c0_54 = arith.constant 0 : index
    %128 = vector.load %arg12[%c0_52, %c0_53, %c0_54] : memref<2x1x128xf32, #tpu.memory_space<vmem>>, vector<1x1x128xf32>
    %129 = vector.shape_cast %128 : vector<1x1x128xf32> to vector<1x128xf32>
    %c0_55 = arith.constant 0 : index
    %c0_56 = arith.constant 0 : index
    %c0_57 = arith.constant 0 : index
    %130 = vector.load %arg13[%c0_55, %c0_56, %c0_57] : memref<2x1x128xf32, #tpu.memory_space<vmem>>, vector<1x1x128xf32>
    %131 = vector.shape_cast %130 : vector<1x1x128xf32> to vector<1x128xf32>
    %cst_58 = arith.constant dense<0.000000e+00> : vector<32xf32>
    %132 = vector.multi_reduction <add>, %127, %cst_58 [1] : vector<32x128xf32> to vector<32xf32>
    %133 = vector.shape_cast %132 : vector<32xf32> to vector<32x1xf32>
    %cst_59 = arith.constant 1.280000e+02 : f32
    %134 = vector.broadcast %cst_59 : f32 to vector<32x1xf32>
    %135 = arith.divf %133, %134 : vector<32x1xf32>
    %136 = vector.broadcast %135 : vector<32x1xf32> to vector<32x128xf32>
    %137 = arith.subf %127, %136 : vector<32x128xf32>
    %138 = arith.mulf %137, %137 : vector<32x128xf32>
    %cst_60 = arith.constant dense<0.000000e+00> : vector<32xf32>
    %139 = vector.multi_reduction <add>, %138, %cst_60 [1] : vector<32x128xf32> to vector<32xf32>
    %140 = vector.shape_cast %139 : vector<32xf32> to vector<32x1xf32>
    %cst_61 = arith.constant 1.280000e+02 : f32
    %141 = vector.broadcast %cst_61 : f32 to vector<32x1xf32>
    %142 = arith.divf %140, %141 : vector<32x1xf32>
    %143 = vector.broadcast %135 : vector<32x1xf32> to vector<32x128xf32>
    %144 = arith.subf %127, %143 : vector<32x128xf32>
    %cst_62 = arith.constant 9.99999996E-13 : f32
    %145 = vector.broadcast %cst_62 : f32 to vector<32x1xf32>
    %146 = arith.addf %142, %145 : vector<32x1xf32>
    %147 = math.rsqrt %146 : vector<32x1xf32>
    %148 = vector.broadcast %147 : vector<32x1xf32> to vector<32x128xf32>
    %149 = arith.mulf %144, %148 : vector<32x128xf32>
    %150 = vector.broadcast %129 : vector<1x128xf32> to vector<32x128xf32>
    %151 = arith.mulf %149, %150 : vector<32x128xf32>
    %152 = vector.broadcast %131 : vector<1x128xf32> to vector<32x128xf32>
    %153 = arith.addf %151, %152 : vector<32x128xf32>
    %c0_63 = arith.constant 0 : index
    %c0_64 = arith.constant 0 : index
    %c0_65 = arith.constant 0 : index
    %154 = vector.load %arg14[%c0_63, %c0_64, %c0_65] : memref<2x128x256xbf16, #tpu.memory_space<vmem>>, vector<1x128x256xbf16>
    %155 = vector.shape_cast %154 : vector<1x128x256xbf16> to vector<128x256xbf16>
    %156 = arith.truncf %153 : vector<32x128xf32> to vector<32x128xbf16>
    %cst_66 = arith.constant dense<0.000000e+00> : vector<32x256xf32>
    %157 = tpu.matmul %156, %155, %cst_66 {dimension_numbers = #tpu.dot_dimension_numbers<[1], [0], [0], [1], [0, 0, 1, 1], [], []>} : vector<32x128xbf16>, vector<128x256xbf16>, vector<32x256xf32> -> vector<32x256xf32>
    %c0_67 = arith.constant 0 : index
    %c0_68 = arith.constant 0 : index
    %c0_69 = arith.constant 0 : index
    %158 = vector.load %arg15[%c0_67, %c0_68, %c0_69] : memref<2x1x256xf32, #tpu.memory_space<vmem>>, vector<1x1x256xf32>
    %159 = vector.shape_cast %158 : vector<1x1x256xf32> to vector<1x256xf32>
    %160 = vector.broadcast %159 : vector<1x256xf32> to vector<32x256xf32>
    %161 = arith.addf %157, %160 : vector<32x256xf32>
    %cst_70 = arith.constant 5.000000e-01 : f32
    %162 = vector.broadcast %cst_70 : f32 to vector<32x256xf32>
    %163 = arith.mulf %162, %161 : vector<32x256xf32>
    %cst_71 = arith.constant 4.471500e-02 : f32
    %164 = vector.broadcast %cst_71 : f32 to vector<32x256xf32>
    %165 = arith.mulf %164, %161 : vector<32x256xf32>
    %166 = arith.mulf %165, %161 : vector<32x256xf32>
    %167 = arith.mulf %166, %161 : vector<32x256xf32>
    %168 = arith.addf %161, %167 : vector<32x256xf32>
    %cst_72 = arith.constant 0.797884583 : f32
    %169 = vector.broadcast %cst_72 : f32 to vector<32x256xf32>
    %170 = arith.mulf %169, %168 : vector<32x256xf32>
    %171 = math.tanh %170 : vector<32x256xf32>
    %cst_73 = arith.constant 1.000000e+00 : f32
    %172 = vector.broadcast %cst_73 : f32 to vector<32x256xf32>
    %173 = arith.addf %172, %171 : vector<32x256xf32>
    %174 = arith.mulf %163, %173 : vector<32x256xf32>
    %c0_74 = arith.constant 0 : index
    %c0_75 = arith.constant 0 : index
    %c0_76 = arith.constant 0 : index
    %175 = vector.load %arg16[%c0_74, %c0_75, %c0_76] : memref<2x256x128xbf16, #tpu.memory_space<vmem>>, vector<1x256x128xbf16>
    %176 = vector.shape_cast %175 : vector<1x256x128xbf16> to vector<256x128xbf16>
    %177 = arith.truncf %174 : vector<32x256xf32> to vector<32x256xbf16>
    %cst_77 = arith.constant dense<0.000000e+00> : vector<32x128xf32>
    %178 = tpu.matmul %177, %176, %cst_77 {dimension_numbers = #tpu.dot_dimension_numbers<[1], [0], [0], [1], [0, 0, 1, 1], [], []>} : vector<32x256xbf16>, vector<256x128xbf16>, vector<32x128xf32> -> vector<32x128xf32>
    %179 = arith.addf %153, %178 : vector<32x128xf32>
    %c0_78 = arith.constant 0 : index
    %c0_79 = arith.constant 0 : index
    %c0_80 = arith.constant 0 : index
    %180 = vector.load %arg17[%c0_78, %c0_79, %c0_80] : memref<2x1x128xf32, #tpu.memory_space<vmem>>, vector<1x1x128xf32>
    %181 = vector.shape_cast %180 : vector<1x1x128xf32> to vector<1x128xf32>
    %182 = vector.broadcast %181 : vector<1x128xf32> to vector<32x128xf32>
    %183 = arith.addf %179, %182 : vector<32x128xf32>
    %c0_81 = arith.constant 0 : index
    %c0_82 = arith.constant 0 : index
    %c0_83 = arith.constant 0 : index
    %184 = vector.load %arg18[%c0_81, %c0_82, %c0_83] : memref<2x1x128xf32, #tpu.memory_space<vmem>>, vector<1x1x128xf32>
    %185 = vector.shape_cast %184 : vector<1x1x128xf32> to vector<1x128xf32>
    %c0_84 = arith.constant 0 : index
    %c0_85 = arith.constant 0 : index
    %c0_86 = arith.constant 0 : index
    %186 = vector.load %arg19[%c0_84, %c0_85, %c0_86] : memref<2x1x128xf32, #tpu.memory_space<vmem>>, vector<1x1x128xf32>
    %187 = vector.shape_cast %186 : vector<1x1x128xf32> to vector<1x128xf32>
    %cst_87 = arith.constant dense<0.000000e+00> : vector<32xf32>
    %188 = vector.multi_reduction <add>, %183, %cst_87 [1] : vector<32x128xf32> to vector<32xf32>
    %189 = vector.shape_cast %188 : vector<32xf32> to vector<32x1xf32>
    %cst_88 = arith.constant 1.280000e+02 : f32
    %190 = vector.broadcast %cst_88 : f32 to vector<32x1xf32>
    %191 = arith.divf %189, %190 : vector<32x1xf32>
    %192 = vector.broadcast %191 : vector<32x1xf32> to vector<32x128xf32>
    %193 = arith.subf %183, %192 : vector<32x128xf32>
    %194 = arith.mulf %193, %193 : vector<32x128xf32>
    %cst_89 = arith.constant dense<0.000000e+00> : vector<32xf32>
    %195 = vector.multi_reduction <add>, %194, %cst_89 [1] : vector<32x128xf32> to vector<32xf32>
    %196 = vector.shape_cast %195 : vector<32xf32> to vector<32x1xf32>
    %cst_90 = arith.constant 1.280000e+02 : f32
    %197 = vector.broadcast %cst_90 : f32 to vector<32x1xf32>
    %198 = arith.divf %196, %197 : vector<32x1xf32>
    %199 = vector.broadcast %191 : vector<32x1xf32> to vector<32x128xf32>
    %200 = arith.subf %183, %199 : vector<32x128xf32>
    %cst_91 = arith.constant 9.99999996E-13 : f32
    %201 = vector.broadcast %cst_91 : f32 to vector<32x1xf32>
    %202 = arith.addf %198, %201 : vector<32x1xf32>
    %203 = math.rsqrt %202 : vector<32x1xf32>
    %204 = vector.broadcast %203 : vector<32x1xf32> to vector<32x128xf32>
    %205 = arith.mulf %200, %204 : vector<32x128xf32>
    %206 = vector.broadcast %185 : vector<1x128xf32> to vector<32x128xf32>
    %207 = arith.mulf %205, %206 : vector<32x128xf32>
    %208 = vector.broadcast %187 : vector<1x128xf32> to vector<32x128xf32>
    %209 = arith.addf %207, %208 : vector<32x128xf32>
    %c1_92 = arith.constant 1 : index
    %c0_93 = arith.constant 0 : index
    %c0_94 = arith.constant 0 : index
    %210 = vector.load %arg8[%c1_92, %c0_93, %c0_94] : memref<2x128x384xbf16, #tpu.memory_space<vmem>>, vector<1x128x384xbf16>
    %211 = vector.shape_cast %210 : vector<1x128x384xbf16> to vector<128x384xbf16>
    %212 = arith.truncf %209 : vector<32x128xf32> to vector<32x128xbf16>
    %cst_95 = arith.constant dense<0.000000e+00> : vector<32x384xf32>
    %213 = tpu.matmul %212, %211, %cst_95 {dimension_numbers = #tpu.dot_dimension_numbers<[1], [0], [0], [1], [0, 0, 1, 1], [], []>} : vector<32x128xbf16>, vector<128x384xbf16>, vector<32x384xf32> -> vector<32x384xf32>
    %c1_96 = arith.constant 1 : index
    %c0_97 = arith.constant 0 : index
    %c0_98 = arith.constant 0 : index
    %214 = vector.load %arg9[%c1_96, %c0_97, %c0_98] : memref<2x1x384xf32, #tpu.memory_space<vmem>>, vector<1x1x384xf32>
    %215 = vector.shape_cast %214 : vector<1x1x384xf32> to vector<1x384xf32>
    %216 = vector.broadcast %215 : vector<1x384xf32> to vector<32x384xf32>
    %217 = arith.addf %213, %216 : vector<32x384xf32>
    %218 = vector.extract_strided_slice %217 {offsets = [0, 0], sizes = [32, 32], strides = [1, 1]} : vector<32x384xf32> to vector<32x32xf32>
    %cst_99 = arith.constant 0.176776692 : f32
    %219 = vector.broadcast %cst_99 : f32 to vector<32x32xf32>
    %220 = arith.mulf %218, %219 : vector<32x32xf32>
    %221 = vector.extract_strided_slice %217 {offsets = [0, 128], sizes = [32, 32], strides = [1, 1]} : vector<32x384xf32> to vector<32x32xf32>
    %222 = arith.truncf %220 : vector<32x32xf32> to vector<32x32xbf16>
    %223 = arith.truncf %221 : vector<32x32xf32> to vector<32x32xbf16>
    %cst_100 = arith.constant dense<0.000000e+00> : vector<32x32xf32>
    %224 = tpu.matmul %222, %223, %cst_100 {dimension_numbers = #tpu.dot_dimension_numbers<[1], [1], [0], [0], [0, 0, 1, 0], [], []>} : vector<32x32xbf16>, vector<32x32xbf16>, vector<32x32xf32> -> vector<32x32xf32>
    %225 = vector.extract_strided_slice %217 {offsets = [0, 32], sizes = [32, 32], strides = [1, 1]} : vector<32x384xf32> to vector<32x32xf32>
    %cst_101 = arith.constant 0.176776692 : f32
    %226 = vector.broadcast %cst_101 : f32 to vector<32x32xf32>
    %227 = arith.mulf %225, %226 : vector<32x32xf32>
    %228 = vector.extract_strided_slice %217 {offsets = [0, 160], sizes = [32, 32], strides = [1, 1]} : vector<32x384xf32> to vector<32x32xf32>
    %229 = arith.truncf %227 : vector<32x32xf32> to vector<32x32xbf16>
    %230 = arith.truncf %228 : vector<32x32xf32> to vector<32x32xbf16>
    %cst_102 = arith.constant dense<0.000000e+00> : vector<32x32xf32>
    %231 = tpu.matmul %229, %230, %cst_102 {dimension_numbers = #tpu.dot_dimension_numbers<[1], [1], [0], [0], [0, 0, 1, 0], [], []>} : vector<32x32xbf16>, vector<32x32xbf16>, vector<32x32xf32> -> vector<32x32xf32>
    %232 = vector.extract_strided_slice %217 {offsets = [0, 64], sizes = [32, 32], strides = [1, 1]} : vector<32x384xf32> to vector<32x32xf32>
    %cst_103 = arith.constant 0.176776692 : f32
    %233 = vector.broadcast %cst_103 : f32 to vector<32x32xf32>
    %234 = arith.mulf %232, %233 : vector<32x32xf32>
    %235 = vector.extract_strided_slice %217 {offsets = [0, 192], sizes = [32, 32], strides = [1, 1]} : vector<32x384xf32> to vector<32x32xf32>
    %236 = arith.truncf %234 : vector<32x32xf32> to vector<32x32xbf16>
    %237 = arith.truncf %235 : vector<32x32xf32> to vector<32x32xbf16>
    %cst_104 = arith.constant dense<0.000000e+00> : vector<32x32xf32>
    %238 = tpu.matmul %236, %237, %cst_104 {dimension_numbers = #tpu.dot_dimension_numbers<[1], [1], [0], [0], [0, 0, 1, 0], [], []>} : vector<32x32xbf16>, vector<32x32xbf16>, vector<32x32xf32> -> vector<32x32xf32>
    %239 = vector.extract_strided_slice %217 {offsets = [0, 96], sizes = [32, 32], strides = [1, 1]} : vector<32x384xf32> to vector<32x32xf32>
    %cst_105 = arith.constant 0.176776692 : f32
    %240 = vector.broadcast %cst_105 : f32 to vector<32x32xf32>
    %241 = arith.mulf %239, %240 : vector<32x32xf32>
    %242 = vector.extract_strided_slice %217 {offsets = [0, 224], sizes = [32, 32], strides = [1, 1]} : vector<32x384xf32> to vector<32x32xf32>
    %243 = arith.truncf %241 : vector<32x32xf32> to vector<32x32xbf16>
    %244 = arith.truncf %242 : vector<32x32xf32> to vector<32x32xbf16>
    %cst_106 = arith.constant dense<0.000000e+00> : vector<32x32xf32>
    %245 = tpu.matmul %243, %244, %cst_106 {dimension_numbers = #tpu.dot_dimension_numbers<[1], [1], [0], [0], [0, 0, 1, 0], [], []>} : vector<32x32xbf16>, vector<32x32xbf16>, vector<32x32xf32> -> vector<32x32xf32>
    %246 = tpu.concatenate %224, %231, %238, %245 in 1 : vector<32x32xf32>, vector<32x32xf32>, vector<32x32xf32>, vector<32x32xf32> -> vector<32x128xf32>
    %247 = arith.addf %246, %49 : vector<32x128xf32>
    %cst_107 = arith.constant dense<0xFF800000> : vector<32xf32>
    %248 = vector.multi_reduction <maximumf>, %247, %cst_107 [1] : vector<32x128xf32> to vector<32xf32>
    %249 = vector.shape_cast %248 : vector<32xf32> to vector<32x1xf32>
    %250 = vector.broadcast %249 : vector<32x1xf32> to vector<32x128xf32>
    %251 = arith.subf %247, %250 : vector<32x128xf32>
    %252 = math.exp %251 : vector<32x128xf32>
    %253 = arith.truncf %252 : vector<32x128xf32> to vector<32x128xbf16>
    %cst_108 = arith.constant dense<0.000000e+00> : vector<32x128xf32>
    %254 = tpu.matmul %253, %50, %cst_108 {dimension_numbers = #tpu.dot_dimension_numbers<[1], [0], [0], [1], [0, 0, 1, 1], [], []>} : vector<32x128xbf16>, vector<128x128xbf16>, vector<32x128xf32> -> vector<32x128xf32>
    %255 = tpu.reciprocal %254 {approx = true} : vector<32x128xf32> -> vector<32x128xf32>
    %256 = arith.mulf %252, %255 : vector<32x128xf32>
    %257 = vector.extract_strided_slice %256 {offsets = [0, 0], sizes = [32, 32], strides = [1, 1]} : vector<32x128xf32> to vector<32x32xf32>
    %258 = vector.extract_strided_slice %217 {offsets = [0, 256], sizes = [32, 32], strides = [1, 1]} : vector<32x384xf32> to vector<32x32xf32>
    %259 = arith.truncf %257 : vector<32x32xf32> to vector<32x32xbf16>
    %260 = arith.truncf %258 : vector<32x32xf32> to vector<32x32xbf16>
    %cst_109 = arith.constant dense<0.000000e+00> : vector<32x32xf32>
    %261 = tpu.matmul %259, %260, %cst_109 {dimension_numbers = #tpu.dot_dimension_numbers<[1], [0], [0], [1], [0, 0, 1, 1], [], []>} : vector<32x32xbf16>, vector<32x32xbf16>, vector<32x32xf32> -> vector<32x32xf32>
    %262 = vector.extract_strided_slice %256 {offsets = [0, 32], sizes = [32, 32], strides = [1, 1]} : vector<32x128xf32> to vector<32x32xf32>
    %263 = vector.extract_strided_slice %217 {offsets = [0, 288], sizes = [32, 32], strides = [1, 1]} : vector<32x384xf32> to vector<32x32xf32>
    %264 = arith.truncf %262 : vector<32x32xf32> to vector<32x32xbf16>
    %265 = arith.truncf %263 : vector<32x32xf32> to vector<32x32xbf16>
    %cst_110 = arith.constant dense<0.000000e+00> : vector<32x32xf32>
    %266 = tpu.matmul %264, %265, %cst_110 {dimension_numbers = #tpu.dot_dimension_numbers<[1], [0], [0], [1], [0, 0, 1, 1], [], []>} : vector<32x32xbf16>, vector<32x32xbf16>, vector<32x32xf32> -> vector<32x32xf32>
    %267 = vector.extract_strided_slice %256 {offsets = [0, 64], sizes = [32, 32], strides = [1, 1]} : vector<32x128xf32> to vector<32x32xf32>
    %268 = vector.extract_strided_slice %217 {offsets = [0, 320], sizes = [32, 32], strides = [1, 1]} : vector<32x384xf32> to vector<32x32xf32>
    %269 = arith.truncf %267 : vector<32x32xf32> to vector<32x32xbf16>
    %270 = arith.truncf %268 : vector<32x32xf32> to vector<32x32xbf16>
    %cst_111 = arith.constant dense<0.000000e+00> : vector<32x32xf32>
    %271 = tpu.matmul %269, %270, %cst_111 {dimension_numbers = #tpu.dot_dimension_numbers<[1], [0], [0], [1], [0, 0, 1, 1], [], []>} : vector<32x32xbf16>, vector<32x32xbf16>, vector<32x32xf32> -> vector<32x32xf32>
    %272 = vector.extract_strided_slice %256 {offsets = [0, 96], sizes = [32, 32], strides = [1, 1]} : vector<32x128xf32> to vector<32x32xf32>
    %273 = vector.extract_strided_slice %217 {offsets = [0, 352], sizes = [32, 32], strides = [1, 1]} : vector<32x384xf32> to vector<32x32xf32>
    %274 = arith.truncf %272 : vector<32x32xf32> to vector<32x32xbf16>
    %275 = arith.truncf %273 : vector<32x32xf32> to vector<32x32xbf16>
    %cst_112 = arith.constant dense<0.000000e+00> : vector<32x32xf32>
    %276 = tpu.matmul %274, %275, %cst_112 {dimension_numbers = #tpu.dot_dimension_numbers<[1], [0], [0], [1], [0, 0, 1, 1], [], []>} : vector<32x32xbf16>, vector<32x32xbf16>, vector<32x32xf32> -> vector<32x32xf32>
    %277 = tpu.concatenate %261, %266, %271, %276 in 1 : vector<32x32xf32>, vector<32x32xf32>, vector<32x32xf32>, vector<32x32xf32> -> vector<32x128xf32>
    %c1_113 = arith.constant 1 : index
    %c0_114 = arith.constant 0 : index
    %c0_115 = arith.constant 0 : index
    %278 = vector.load %arg10[%c1_113, %c0_114, %c0_115] : memref<2x128x128xbf16, #tpu.memory_space<vmem>>, vector<1x128x128xbf16>
    %279 = vector.shape_cast %278 : vector<1x128x128xbf16> to vector<128x128xbf16>
    %280 = arith.truncf %277 : vector<32x128xf32> to vector<32x128xbf16>
    %cst_116 = arith.constant dense<0.000000e+00> : vector<32x128xf32>
    %281 = tpu.matmul %280, %279, %cst_116 {dimension_numbers = #tpu.dot_dimension_numbers<[1], [0], [0], [1], [0, 0, 1, 1], [], []>} : vector<32x128xbf16>, vector<128x128xbf16>, vector<32x128xf32> -> vector<32x128xf32>
    %282 = arith.addf %209, %281 : vector<32x128xf32>
    %c1_117 = arith.constant 1 : index
    %c0_118 = arith.constant 0 : index
    %c0_119 = arith.constant 0 : index
    %283 = vector.load %arg11[%c1_117, %c0_118, %c0_119] : memref<2x1x128xf32, #tpu.memory_space<vmem>>, vector<1x1x128xf32>
    %284 = vector.shape_cast %283 : vector<1x1x128xf32> to vector<1x128xf32>
    %285 = vector.broadcast %284 : vector<1x128xf32> to vector<32x128xf32>
    %286 = arith.addf %282, %285 : vector<32x128xf32>
    %c1_120 = arith.constant 1 : index
    %c0_121 = arith.constant 0 : index
    %c0_122 = arith.constant 0 : index
    %287 = vector.load %arg12[%c1_120, %c0_121, %c0_122] : memref<2x1x128xf32, #tpu.memory_space<vmem>>, vector<1x1x128xf32>
    %288 = vector.shape_cast %287 : vector<1x1x128xf32> to vector<1x128xf32>
    %c1_123 = arith.constant 1 : index
    %c0_124 = arith.constant 0 : index
    %c0_125 = arith.constant 0 : index
    %289 = vector.load %arg13[%c1_123, %c0_124, %c0_125] : memref<2x1x128xf32, #tpu.memory_space<vmem>>, vector<1x1x128xf32>
    %290 = vector.shape_cast %289 : vector<1x1x128xf32> to vector<1x128xf32>
    %cst_126 = arith.constant dense<0.000000e+00> : vector<32xf32>
    %291 = vector.multi_reduction <add>, %286, %cst_126 [1] : vector<32x128xf32> to vector<32xf32>
    %292 = vector.shape_cast %291 : vector<32xf32> to vector<32x1xf32>
    %cst_127 = arith.constant 1.280000e+02 : f32
    %293 = vector.broadcast %cst_127 : f32 to vector<32x1xf32>
    %294 = arith.divf %292, %293 : vector<32x1xf32>
    %295 = vector.broadcast %294 : vector<32x1xf32> to vector<32x128xf32>
    %296 = arith.subf %286, %295 : vector<32x128xf32>
    %297 = arith.mulf %296, %296 : vector<32x128xf32>
    %cst_128 = arith.constant dense<0.000000e+00> : vector<32xf32>
    %298 = vector.multi_reduction <add>, %297, %cst_128 [1] : vector<32x128xf32> to vector<32xf32>
    %299 = vector.shape_cast %298 : vector<32xf32> to vector<32x1xf32>
    %cst_129 = arith.constant 1.280000e+02 : f32
    %300 = vector.broadcast %cst_129 : f32 to vector<32x1xf32>
    %301 = arith.divf %299, %300 : vector<32x1xf32>
    %302 = vector.broadcast %294 : vector<32x1xf32> to vector<32x128xf32>
    %303 = arith.subf %286, %302 : vector<32x128xf32>
    %cst_130 = arith.constant 9.99999996E-13 : f32
    %304 = vector.broadcast %cst_130 : f32 to vector<32x1xf32>
    %305 = arith.addf %301, %304 : vector<32x1xf32>
    %306 = math.rsqrt %305 : vector<32x1xf32>
    %307 = vector.broadcast %306 : vector<32x1xf32> to vector<32x128xf32>
    %308 = arith.mulf %303, %307 : vector<32x128xf32>
    %309 = vector.broadcast %288 : vector<1x128xf32> to vector<32x128xf32>
    %310 = arith.mulf %308, %309 : vector<32x128xf32>
    %311 = vector.broadcast %290 : vector<1x128xf32> to vector<32x128xf32>
    %312 = arith.addf %310, %311 : vector<32x128xf32>
    %c1_131 = arith.constant 1 : index
    %c0_132 = arith.constant 0 : index
    %c0_133 = arith.constant 0 : index
    %313 = vector.load %arg14[%c1_131, %c0_132, %c0_133] : memref<2x128x256xbf16, #tpu.memory_space<vmem>>, vector<1x128x256xbf16>
    %314 = vector.shape_cast %313 : vector<1x128x256xbf16> to vector<128x256xbf16>
    %315 = arith.truncf %312 : vector<32x128xf32> to vector<32x128xbf16>
    %cst_134 = arith.constant dense<0.000000e+00> : vector<32x256xf32>
    %316 = tpu.matmul %315, %314, %cst_134 {dimension_numbers = #tpu.dot_dimension_numbers<[1], [0], [0], [1], [0, 0, 1, 1], [], []>} : vector<32x128xbf16>, vector<128x256xbf16>, vector<32x256xf32> -> vector<32x256xf32>
    %c1_135 = arith.constant 1 : index
    %c0_136 = arith.constant 0 : index
    %c0_137 = arith.constant 0 : index
    %317 = vector.load %arg15[%c1_135, %c0_136, %c0_137] : memref<2x1x256xf32, #tpu.memory_space<vmem>>, vector<1x1x256xf32>
    %318 = vector.shape_cast %317 : vector<1x1x256xf32> to vector<1x256xf32>
    %319 = vector.broadcast %318 : vector<1x256xf32> to vector<32x256xf32>
    %320 = arith.addf %316, %319 : vector<32x256xf32>
    %cst_138 = arith.constant 5.000000e-01 : f32
    %321 = vector.broadcast %cst_138 : f32 to vector<32x256xf32>
    %322 = arith.mulf %321, %320 : vector<32x256xf32>
    %cst_139 = arith.constant 4.471500e-02 : f32
    %323 = vector.broadcast %cst_139 : f32 to vector<32x256xf32>
    %324 = arith.mulf %323, %320 : vector<32x256xf32>
    %325 = arith.mulf %324, %320 : vector<32x256xf32>
    %326 = arith.mulf %325, %320 : vector<32x256xf32>
    %327 = arith.addf %320, %326 : vector<32x256xf32>
    %cst_140 = arith.constant 0.797884583 : f32
    %328 = vector.broadcast %cst_140 : f32 to vector<32x256xf32>
    %329 = arith.mulf %328, %327 : vector<32x256xf32>
    %330 = math.tanh %329 : vector<32x256xf32>
    %cst_141 = arith.constant 1.000000e+00 : f32
    %331 = vector.broadcast %cst_141 : f32 to vector<32x256xf32>
    %332 = arith.addf %331, %330 : vector<32x256xf32>
    %333 = arith.mulf %322, %332 : vector<32x256xf32>
    %c1_142 = arith.constant 1 : index
    %c0_143 = arith.constant 0 : index
    %c0_144 = arith.constant 0 : index
    %334 = vector.load %arg16[%c1_142, %c0_143, %c0_144] : memref<2x256x128xbf16, #tpu.memory_space<vmem>>, vector<1x256x128xbf16>
    %335 = vector.shape_cast %334 : vector<1x256x128xbf16> to vector<256x128xbf16>
    %336 = arith.truncf %333 : vector<32x256xf32> to vector<32x256xbf16>
    %cst_145 = arith.constant dense<0.000000e+00> : vector<32x128xf32>
    %337 = tpu.matmul %336, %335, %cst_145 {dimension_numbers = #tpu.dot_dimension_numbers<[1], [0], [0], [1], [0, 0, 1, 1], [], []>} : vector<32x256xbf16>, vector<256x128xbf16>, vector<32x128xf32> -> vector<32x128xf32>
    %338 = arith.addf %312, %337 : vector<32x128xf32>
    %c1_146 = arith.constant 1 : index
    %c0_147 = arith.constant 0 : index
    %c0_148 = arith.constant 0 : index
    %339 = vector.load %arg17[%c1_146, %c0_147, %c0_148] : memref<2x1x128xf32, #tpu.memory_space<vmem>>, vector<1x1x128xf32>
    %340 = vector.shape_cast %339 : vector<1x1x128xf32> to vector<1x128xf32>
    %341 = vector.broadcast %340 : vector<1x128xf32> to vector<32x128xf32>
    %342 = arith.addf %338, %341 : vector<32x128xf32>
    %c1_149 = arith.constant 1 : index
    %c0_150 = arith.constant 0 : index
    %c0_151 = arith.constant 0 : index
    %343 = vector.load %arg18[%c1_149, %c0_150, %c0_151] : memref<2x1x128xf32, #tpu.memory_space<vmem>>, vector<1x1x128xf32>
    %344 = vector.shape_cast %343 : vector<1x1x128xf32> to vector<1x128xf32>
    %c1_152 = arith.constant 1 : index
    %c0_153 = arith.constant 0 : index
    %c0_154 = arith.constant 0 : index
    %345 = vector.load %arg19[%c1_152, %c0_153, %c0_154] : memref<2x1x128xf32, #tpu.memory_space<vmem>>, vector<1x1x128xf32>
    %346 = vector.shape_cast %345 : vector<1x1x128xf32> to vector<1x128xf32>
    %cst_155 = arith.constant dense<0.000000e+00> : vector<32xf32>
    %347 = vector.multi_reduction <add>, %342, %cst_155 [1] : vector<32x128xf32> to vector<32xf32>
    %348 = vector.shape_cast %347 : vector<32xf32> to vector<32x1xf32>
    %cst_156 = arith.constant 1.280000e+02 : f32
    %349 = vector.broadcast %cst_156 : f32 to vector<32x1xf32>
    %350 = arith.divf %348, %349 : vector<32x1xf32>
    %351 = vector.broadcast %350 : vector<32x1xf32> to vector<32x128xf32>
    %352 = arith.subf %342, %351 : vector<32x128xf32>
    %353 = arith.mulf %352, %352 : vector<32x128xf32>
    %cst_157 = arith.constant dense<0.000000e+00> : vector<32xf32>
    %354 = vector.multi_reduction <add>, %353, %cst_157 [1] : vector<32x128xf32> to vector<32xf32>
    %355 = vector.shape_cast %354 : vector<32xf32> to vector<32x1xf32>
    %cst_158 = arith.constant 1.280000e+02 : f32
    %356 = vector.broadcast %cst_158 : f32 to vector<32x1xf32>
    %357 = arith.divf %355, %356 : vector<32x1xf32>
    %358 = vector.broadcast %350 : vector<32x1xf32> to vector<32x128xf32>
    %359 = arith.subf %342, %358 : vector<32x128xf32>
    %cst_159 = arith.constant 9.99999996E-13 : f32
    %360 = vector.broadcast %cst_159 : f32 to vector<32x1xf32>
    %361 = arith.addf %357, %360 : vector<32x1xf32>
    %362 = math.rsqrt %361 : vector<32x1xf32>
    %363 = vector.broadcast %362 : vector<32x1xf32> to vector<32x128xf32>
    %364 = arith.mulf %359, %363 : vector<32x128xf32>
    %365 = vector.broadcast %344 : vector<1x128xf32> to vector<32x128xf32>
    %366 = arith.mulf %364, %365 : vector<32x128xf32>
    %367 = vector.broadcast %346 : vector<1x128xf32> to vector<32x128xf32>
    %368 = arith.addf %366, %367 : vector<32x128xf32>
    %369 = vector.extract_strided_slice %368 {offsets = [0, 0], sizes = [1, 128], strides = [1, 1]} : vector<32x128xf32> to vector<1x128xf32>
    %370 = vector.extract_strided_slice %368 {offsets = [16, 0], sizes = [1, 128], strides = [1, 1]} : vector<32x128xf32> to vector<1x128xf32>
    %371 = tpu.concatenate %369, %370 in 0 : vector<1x128xf32>, vector<1x128xf32> -> vector<2x128xf32>
    %c0_160 = arith.constant 0 : index
    %c0_161 = arith.constant 0 : index
    %372 = vector.load %arg21[%c0_160, %c0_161] : memref<128x128xbf16, #tpu.memory_space<vmem>>, vector<128x128xbf16>
    %373 = arith.truncf %371 : vector<2x128xf32> to vector<2x128xbf16>
    %cst_162 = arith.constant dense<0.000000e+00> : vector<2x128xf32>
    %374 = tpu.matmul %373, %372, %cst_162 {dimension_numbers = #tpu.dot_dimension_numbers<[1], [0], [0], [1], [0, 0, 1, 1], [], []>} : vector<2x128xbf16>, vector<128x128xbf16>, vector<2x128xf32> -> vector<2x128xf32>
    %c0_163 = arith.constant 0 : index
    %c0_164 = arith.constant 0 : index
    %375 = vector.load %arg22[%c0_163, %c0_164] : memref<1x128xf32, #tpu.memory_space<vmem>>, vector<1x128xf32>
    %376 = vector.broadcast %375 : vector<1x128xf32> to vector<2x128xf32>
    %377 = arith.addf %374, %376 : vector<2x128xf32>
    %378 = math.tanh %377 : vector<2x128xf32>
    %c0_165 = arith.constant 0 : index
    %c0_166 = arith.constant 0 : index
    %379 = vector.load %arg23[%c0_165, %c0_166] : memref<2x128xf32, #tpu.memory_space<vmem>>, vector<2x128xf32>
    tpu.vector_store %arg23[%c0_165, %c0_166], %378 {strides = array<i32>} : memref<2x128xf32, #tpu.memory_space<vmem>>, vector<2x128xf32>,
    return
  }
}

</mosaic_0001>

<llo_original>
// kernel: tile.14
$region0: #{tile.14}
  %s0 = inlined_call_operand.vmem [shape: f32[32,4,32], index: 0, kind: input, shape index: {}]
  %s1 = inlined_call_operand.vmem [shape: f32[32,128], index: 1, kind: output, shape index: {}]
  $region1: #{tile.14} parent=0
    #allocation0 [shape = 'u8[131072]{0}', space=vmem, size = 0x20000, scoped, tag = 'scoped mem for input reshape']
    %s3 = sshllo.u32 0, 4
    %s4 = smul.addr 4, 31
    %s5 = scalar_lea.vmem %s0, %s4
    %v6 = vld [vmem:[%s5] sm:%s3]
    %s7 = scalar_lea.vmem [#allocation0], 248
    %8 = vst [vmem:[%s7] sm:%s3] %v6
    %s9 = smul.addr 4, 30
    %s10 = scalar_lea.vmem %s0, %s9
    %v11 = vld [vmem:[%s10] sm:%s3]
    %s12 = scalar_lea.vmem [#allocation0], 240
    %13 = vst [vmem:[%s12] sm:%s3] %v11
    %s14 = smul.addr 4, 29
    %s15 = scalar_lea.vmem %s0, %s14
    %v16 = vld [vmem:[%s15] sm:%s3]
    %s17 = scalar_lea.vmem [#allocation0], 232
    %18 = vst [vmem:[%s17] sm:%s3] %v16
    %s19 = smul.addr 4, 28
    %s20 = scalar_lea.vmem %s0, %s19
    %v21 = vld [vmem:[%s20] sm:%s3]
    %s22 = scalar_lea.vmem [#allocation0], 224
    %23 = vst [vmem:[%s22] sm:%s3] %v21
    %s24 = smul.addr 4, 27
    %s25 = scalar_lea.vmem %s0, %s24
    %v26 = vld [vmem:[%s25] sm:%s3]
    %s27 = scalar_lea.vmem [#allocation0], 216
    %28 = vst [vmem:[%s27] sm:%s3] %v26
    %s29 = smul.addr 4, 26
    %s30 = scalar_lea.vmem %s0, %s29
    %v31 = vld [vmem:[%s30] sm:%s3]
    %s32 = scalar_lea.vmem [#allocation0], 208
    %33 = vst [vmem:[%s32] sm:%s3] %v31
    %s34 = smul.addr 4, 25
    %s35 = scalar_lea.vmem %s0, %s34
    %v36 = vld [vmem:[%s35] sm:%s3]
    %s37 = scalar_lea.vmem [#allocation0], 200
    %38 = vst [vmem:[%s37] sm:%s3] %v36
    %s39 = smul.addr 4, 24
    %s40 = scalar_lea.vmem %s0, %s39
    %v41 = vld [vmem:[%s40] sm:%s3]
    %s42 = scalar_lea.vmem [#allocation0], 192
    %43 = vst [vmem:[%s42] sm:%s3] %v41
    %s44 = smul.addr 4, 23
    %s45 = scalar_lea.vmem %s0, %s44
    %v46 = vld [vmem:[%s45] sm:%s3]
    %s47 = scalar_lea.vmem [#allocation0], 184
    %48 = vst [vmem:[%s47] sm:%s3] %v46
    %s49 = smul.addr 4, 22
    %s50 = scalar_lea.vmem %s0, %s49
    %v51 = vld [vmem:[%s50] sm:%s3]
    %s52 = scalar_lea.vmem [#allocation0], 176
    %53 = vst [vmem:[%s52] sm:%s3] %v51
    %s54 = smul.addr 4, 21
    %s55 = scalar_lea.vmem %s0, %s54
    %v56 = vld [vmem:[%s55] sm:%s3]
    %s57 = scalar_lea.vmem [#allocation0], 168
    %58 = vst [vmem:[%s57] sm:%s3] %v56
    %s59 = smul.addr 4, 20
    %s60 = scalar_lea.vmem %s0, %s59
    %v61 = vld [vmem:[%s60] sm:%s3]
    %s62 = scalar_lea.vmem [#allocation0], 160
    %63 = vst [vmem:[%s62] sm:%s3] %v61
    %s64 = smul.addr 4, 19
    %s65 = scalar_lea.vmem %s0, %s64
    %v66 = vld [vmem:[%s65] sm:%s3]
    %s67 = scalar_lea.vmem [#allocation0], 152
    %68 = vst [vmem:[%s67] sm:%s3] %v66
    %s69 = smul.addr 4, 18
    %s70 = scalar_lea.vmem %s0, %s69
    %v71 = vld [vmem:[%s70] sm:%s3]
    %s72 = scalar_lea.vmem [#allocation0], 144
    %73 = vst [vmem:[%s72] sm:%s3] %v71
    %s74 = smul.addr 4, 17
    %s75 = scalar_lea.vmem %s0, %s74
    %v76 = vld [vmem:[%s75] sm:%s3]
    %s77 = scalar_lea.vmem [#allocation0], 136
    %78 = vst [vmem:[%s77] sm:%s3] %v76
    %s79 = smul.addr 4, 16
    %s80 = scalar_lea.vmem %s0, %s79
    %v81 = vld [vmem:[%s80] sm:%s3]
    %s82 = scalar_lea.vmem [#allocation0], 128
    %83 = vst [vmem:[%s82] sm:%s3] %v81
    %s84 = smul.addr 4, 15
    %s85 = scalar_lea.vmem %s0, %s84
    %v86 = vld [vmem:[%s85] sm:%s3]
    %s87 = scalar_lea.vmem [#allocation0], 120
    %88 = vst [vmem:[%s87] sm:%s3] %v86
    %s89 = smul.addr 4, 14
    %s90 = scalar_lea.vmem %s0, %s89
    %v91 = vld [vmem:[%s90] sm:%s3]
    %s92 = scalar_lea.vmem [#allocation0], 112
    %93 = vst [vmem:[%s92] sm:%s3] %v91
    %s94 = smul.addr 4, 13
    %s95 = scalar_lea.vmem %s0, %s94
    %v96 = vld [vmem:[%s95] sm:%s3]
    %s97 = scalar_lea.vmem [#allocation0], 104
    %98 = vst [vmem:[%s97] sm:%s3] %v96
    %s99 = smul.addr 4, 12
    %s100 = scalar_lea.vmem %s0, %s99
    %v101 = vld [vmem:[%s100] sm:%s3]
    %s102 = scalar_lea.vmem [#allocation0], 96
    %103 = vst [vmem:[%s102] sm:%s3] %v101
    %s104 = smul.addr 4, 11
    %s105 = scalar_lea.vmem %s0, %s104
    %v106 = vld [vmem:[%s105] sm:%s3]
    %s107 = scalar_lea.vmem [#allocation0], 88
    %108 = vst [vmem:[%s107] sm:%s3] %v106
    %s109 = smul.addr 4, 10
    %s110 = scalar_lea.vmem %s0, %s109
    %v111 = vld [vmem:[%s110] sm:%s3]
    %s112 = scalar_lea.vmem [#allocation0], 80
    %113 = vst [vmem:[%s112] sm:%s3] %v111
    %s114 = smul.addr 4, 9
    %s115 = scalar_lea.vmem %s0, %s114
    %v116 = vld [vmem:[%s115] sm:%s3]
    %s117 = scalar_lea.vmem [#allocation0], 72
    %118 = vst [vmem:[%s117] sm:%s3] %v116
    %s119 = smul.addr 4, 8
    %s120 = scalar_lea.vmem %s0, %s119
    %v121 = vld [vmem:[%s120] sm:%s3]
    %s122 = scalar_lea.vmem [#allocation0], 64
    %123 = vst [vmem:[%s122] sm:%s3] %v121
    %s124 = smul.addr 4, 7
    %s125 = scalar_lea.vmem %s0, %s124
    %v126 = vld [vmem:[%s125] sm:%s3]
    %s127 = scalar_lea.vmem [#allocation0], 56
    %128 = vst [vmem:[%s127] sm:%s3] %v126
    %s129 = smul.addr 4, 6
    %s130 = scalar_lea.vmem %s0, %s129
    %v131 = vld [vmem:[%s130] sm:%s3]
    %s132 = scalar_lea.vmem [#allocation0], 48
    %133 = vst [vmem:[%s132] sm:%s3] %v131
    %s134 = smul.addr 4, 5
    %s135 = scalar_lea.vmem %s0, %s134
    %v136 = vld [vmem:[%s135] sm:%s3]
    %s137 = scalar_lea.vmem [#allocation0], 40
    %138 = vst [vmem:[%s137] sm:%s3] %v136
    %s139 = smul.addr 4, 4
    %s140 = scalar_lea.vmem %s0, %s139
    %v141 = vld [vmem:[%s140] sm:%s3]
    %s142 = scalar_lea.vmem [#allocation0], 32
    %143 = vst [vmem:[%s142] sm:%s3] %v141
    %s144 = smul.addr 4, 3
    %s145 = scalar_lea.vmem %s0, %s144
    %v146 = vld [vmem:[%s145] sm:%s3]
    %s147 = scalar_lea.vmem [#allocation0], 24
    %148 = vst [vmem:[%s147] sm:%s3] %v146
    %s149 = smul.addr 4, 2
    %s150 = scalar_lea.vmem %s0, %s149
    %v151 = vld [vmem:[%s150] sm:%s3]
    %s152 = scalar_lea.vmem [#allocation0], 16
    %153 = vst [vmem:[%s152] sm:%s3] %v151
    %s154 = scalar_lea.vmem %s0, 4
    %v155 = vld [vmem:[%s154] sm:%s3]
    %s156 = scalar_lea.vmem [#allocation0], 8
    %157 = vst [vmem:[%s156] sm:%s3] %v155
    %v158 = vld [vmem:[%s0] sm:%s3]
    %159 = vst [vmem:[#allocation0] sm:%s3] %v158
    %v160 = vld [vmem:[#allocation0] ss:$8 sm:$0xf]
    %v161 = vld [vmem:[#allocation0] ss:$8 sm:$0xf0]
    %vm162 = vcmask 1047556
    %v163 = vsel %vm162, %v161, %v160
    %vm164 = vcmask 261120
    %165 = vst.msk [vmem:[%s1] sm:$0xff] %vm164, %v163
    %s166 = scalar_lea.vmem [#allocation0], 64
    %v167 = vld [vmem:[%s166] ss:$8 sm:$0xf]
    %s168 = scalar_lea.vmem [#allocation0], 64
    %v169 = vld [vmem:[%s168] ss:$8 sm:$0xf0]
    %vm170 = vcmask 1047556
    %v171 = vsel %vm170, %v169, %v167
    %vm172 = vcmask 261120
    %s173 = scalar_lea.vmem %s1, 8
    %174 = vst.msk [vmem:[%s173] sm:$0xff] %vm172, %v171
    %s175 = scalar_lea.vmem [#allocation0], 128
    %v176 = vld [vmem:[%s175] ss:$8 sm:$0xf]
    %s177 = scalar_lea.vmem [#allocation0], 128
    %v178 = vld [vmem:[%s177] ss:$8 sm:$0xf0]
    %vm179 = vcmask 1047556
    %v180 = vsel %vm179, %v178, %v176
    %vm181 = vcmask 261120
    %s182 = scalar_lea.vmem %s1, 16
    %183 = vst.msk [vmem:[%s182] sm:$0xff] %vm181, %v180
    %s184 = scalar_lea.vmem [#allocation0], 192
    %v185 = vld [vmem:[%s184] ss:$8 sm:$0xf]
    %s186 = scalar_lea.vmem [#allocation0], 192
    %v187 = vld [vmem:[%s186] ss:$8 sm:$0xf0]
    %vm188 = vcmask 1047556
    %v189 = vsel %vm188, %v187, %v185
    %vm190 = vcmask 261120
    %s191 = scalar_lea.vmem %s1, 24
    %192 = vst.msk [vmem:[%s191] sm:$0xff] %vm190, %v189
    %s193 = scalar_lea.vmem [#allocation0], 3
    %v194 = vld [vmem:[%s193] ss:$8 sm:$0xf]
    %s195 = scalar_lea.vmem [#allocation0], 3
    %v196 = vld [vmem:[%s195] ss:$8 sm:$0xf0]
    %vm197 = vcmask 1047556
    %v198 = vsel %vm197, %v196, %v194
    %199 = vrot.lane.b32.xlu0 %v198, 96
    %v200 = vpop.permute.xlu0 %199
    %vm201 = vcmask 1048320
    %202 = vst.msk [vmem:[%s1] sm:$0xff] %vm201, %v200
    %s203 = scalar_lea.vmem [#allocation0], 67
    %v204 = vld [vmem:[%s203] ss:$8 sm:$0xf]
    %s205 = scalar_lea.vmem [#allocation0], 67
    %v206 = vld [vmem:[%s205] ss:$8 sm:$0xf0]
    %vm207 = vcmask 1047556
    %v208 = vsel %vm207, %v206, %v204
    %209 = vrot.lane.b32.xlu0 %v208, 96
    %v210 = vpop.permute.xlu0 %209
    %vm211 = vcmask 1048320
    %s212 = scalar_lea.vmem %s1, 8
    %213 = vst.msk [vmem:[%s212] sm:$0xff] %vm211, %v210
    %s214 = scalar_lea.vmem [#allocation0], 131
    %v215 = vld [vmem:[%s214] ss:$8 sm:$0xf]
    %s216 = scalar_lea.vmem [#allocation0], 131
    %v217 = vld [vmem:[%s216] ss:$8 sm:$0xf0]
    %vm218 = vcmask 1047556
    %v219 = vsel %vm218, %v217, %v215
    %220 = vrot.lane.b32.xlu0 %v219, 96
    %v221 = vpop.permute.xlu0 %220
    %vm222 = vcmask 1048320
    %s223 = scalar_lea.vmem %s1, 16
    %224 = vst.msk [vmem:[%s223] sm:$0xff] %vm222, %v221
    %s225 = scalar_lea.vmem [#allocation0], 195
    %v226 = vld [vmem:[%s225] ss:$8 sm:$0xf]
    %s227 = scalar_lea.vmem [#allocation0], 195
    %v228 = vld [vmem:[%s227] ss:$8 sm:$0xf0]
    %vm229 = vcmask 1047556
    %v230 = vsel %vm229, %v228, %v226
    %231 = vrot.lane.b32.xlu0 %v230, 96
    %v232 = vpop.permute.xlu0 %231
    %vm233 = vcmask 1048320
    %s234 = scalar_lea.vmem %s1, 24
    %235 = vst.msk [vmem:[%s234] sm:$0xff] %vm233, %v232
    %s236 = scalar_lea.vmem [#allocation0], 2
    %v237 = vld [vmem:[%s236] ss:$8 sm:$0xf]
    %s238 = scalar_lea.vmem [#allocation0], 2
    %v239 = vld [vmem:[%s238] ss:$8 sm:$0xf0]
    %vm240 = vcmask 1047556
    %v241 = vsel %vm240, %v239, %v237
    %242 = vrot.lane.b32.xlu0 %v241, 64
    %v243 = vpop.permute.xlu0 %242
    %vm244 = vcmask 785920
    %245 = vst.msk [vmem:[%s1] sm:$0xff] %vm244, %v243
    %s246 = scalar_lea.vmem [#allocation0], 66
    %v247 = vld [vmem:[%s246] ss:$8 sm:$0xf]
    %s248 = scalar_lea.vmem [#allocation0], 66
    %v249 = vld [vmem:[%s248] ss:$8 sm:$0xf0]
    %vm250 = vcmask 1047556
    %v251 = vsel %vm250, %v249, %v247
    %252 = vrot.lane.b32.xlu0 %v251, 64
    %v253 = vpop.permute.xlu0 %252
    %vm254 = vcmask 785920
    %s255 = scalar_lea.vmem %s1, 8
    %256 = vst.msk [vmem:[%s255] sm:$0xff] %vm254, %v253
    %s257 = scalar_lea.vmem [#allocation0], 130
    %v258 = vld [vmem:[%s257] ss:$8 sm:$0xf]
    %s259 = scalar_lea.vmem [#allocation0], 130
    %v260 = vld [vmem:[%s259] ss:$8 sm:$0xf0]
    %vm261 = vcmask 1047556
    %v262 = vsel %vm261, %v260, %v258
    %263 = vrot.lane.b32.xlu0 %v262, 64
    %v264 = vpop.permute.xlu0 %263
    %vm265 = vcmask 785920
    %s266 = scalar_lea.vmem %s1, 16
    %267 = vst.msk [vmem:[%s266] sm:$0xff] %vm265, %v264
    %s268 = scalar_lea.vmem [#allocation0], 194
    %v269 = vld [vmem:[%s268] ss:$8 sm:$0xf]
    %s270 = scalar_lea.vmem [#allocation0], 194
    %v271 = vld [vmem:[%s270] ss:$8 sm:$0xf0]
    %vm272 = vcmask 1047556
    %v273 = vsel %vm272, %v271, %v269
    %274 = vrot.lane.b32.xlu0 %v273, 64
    %v275 = vpop.permute.xlu0 %274
    %vm276 = vcmask 785920
    %s277 = scalar_lea.vmem %s1, 24
    %278 = vst.msk [vmem:[%s277] sm:$0xff] %vm276, %v275
    %s279 = scalar_lea.vmem [#allocation0], 1
    %v280 = vld [vmem:[%s279] ss:$8 sm:$0xf]
    %s281 = scalar_lea.vmem [#allocation0], 1
    %v282 = vld [vmem:[%s281] ss:$8 sm:$0xf0]
    %vm283 = vcmask 1047556
    %v284 = vsel %vm283, %v282, %v280
    %285 = vrot.lane.b32.xlu0 %v284, 32
    %v286 = vpop.permute.xlu0 %285
    %vm287 = vcmask 523520
    %288 = vst.msk [vmem:[%s1] sm:$0xff] %vm287, %v286
    %s289 = scalar_lea.vmem [#allocation0], 65
    %v290 = vld [vmem:[%s289] ss:$8 sm:$0xf]
    %s291 = scalar_lea.vmem [#allocation0], 65
    %v292 = vld [vmem:[%s291] ss:$8 sm:$0xf0]
    %vm293 = vcmask 1047556
    %v294 = vsel %vm293, %v292, %v290
    %295 = vrot.lane.b32.xlu0 %v294, 32
    %v296 = vpop.permute.xlu0 %295
    %vm297 = vcmask 523520
    %s298 = scalar_lea.vmem %s1, 8
    %299 = vst.msk [vmem:[%s298] sm:$0xff] %vm297, %v296
    %s300 = scalar_lea.vmem [#allocation0], 129
    %v301 = vld [vmem:[%s300] ss:$8 sm:$0xf]
    %s302 = scalar_lea.vmem [#allocation0], 129
    %v303 = vld [vmem:[%s302] ss:$8 sm:$0xf0]
    %vm304 = vcmask 1047556
    %v305 = vsel %vm304, %v303, %v301
    %306 = vrot.lane.b32.xlu0 %v305, 32
    %v307 = vpop.permute.xlu0 %306
    %vm308 = vcmask 523520
    %s309 = scalar_lea.vmem %s1, 16
    %310 = vst.msk [vmem:[%s309] sm:$0xff] %vm308, %v307
    %s311 = scalar_lea.vmem [#allocation0], 193
    %v312 = vld [vmem:[%s311] ss:$8 sm:$0xf]
    %s313 = scalar_lea.vmem [#allocation0], 193
    %v314 = vld [vmem:[%s313] ss:$8 sm:$0xf0]
    %vm315 = vcmask 1047556
    %v316 = vsel %vm315, %v314, %v312
    %317 = vrot.lane.b32.xlu0 %v316, 32
    %v318 = vpop.permute.xlu0 %317
    %vm319 = vcmask 523520
    %s320 = scalar_lea.vmem %s1, 24
    %321 = vst.msk [vmem:[%s320] sm:$0xff] %vm319, %v318

// kernel: bert_forward.1
$region0: #{bert_forward.1}
  #allocation0 [shape = 'u32[]', space=smem, size = 0x4, offset = 0x4, fixed_abs, tag = 'smem constant byte address 0x4 - core index']
  #allocation1 [shape = 'u32[144,128]{1,0:T(1,128)}', space=vmem, size = 0x12000, scoped, tag = 'internal scratch']
  %s0 = inlined_call_operand.vmem [shape: s32[32,1], index: 0, kind: input, shape index: {}]
  %s1 = inlined_call_operand.vmem [shape: s32[32,1], index: 1, kind: input, shape index: {}]
  %s2 = inlined_call_operand.vmem [shape: f32[32,128], index: 2, kind: input, shape index: {}]
  %s3 = inlined_call_operand.vmem [shape: bf16[128,128], index: 3, kind: input, shape index: {}]
  %s4 = inlined_call_operand.vmem [shape: f32[32,128], index: 4, kind: input, shape index: {}]
  %s5 = inlined_call_operand.vmem [shape: f32[2,128], index: 5, kind: input, shape index: {}]
  %s6 = inlined_call_operand.vmem [shape: f32[1,128], index: 6, kind: input, shape index: {}]
  %s7 = inlined_call_operand.vmem [shape: f32[1,128], index: 7, kind: input, shape index: {}]
  %s8 = inlined_call_operand.vmem [shape: bf16[2,128,384], index: 8, kind: input, shape index: {}]
  %s9 = inlined_call_operand.vmem [shape: f32[2,1,384], index: 9, kind: input, shape index: {}]
  %s10 = inlined_call_operand.vmem [shape: bf16[2,128,128], index: 10, kind: input, shape index: {}]
  %s11 = inlined_call_operand.vmem [shape: f32[2,1,128], index: 11, kind: input, shape index: {}]
  %s12 = inlined_call_operand.vmem [shape: f32[2,1,128], index: 12, kind: input, shape index: {}]
  %s13 = inlined_call_operand.vmem [shape: f32[2,1,128], index: 13, kind: input, shape index: {}]
  %s14 = inlined_call_operand.vmem [shape: bf16[2,128,256], index: 14, kind: input, shape index: {}]
  %s15 = inlined_call_operand.vmem [shape: f32[2,1,256], index: 15, kind: input, shape index: {}]
  %s16 = inlined_call_operand.vmem [shape: bf16[2,256,128], index: 16, kind: input, shape index: {}]
  %s17 = inlined_call_operand.vmem [shape: f32[2,1,128], index: 17, kind: input, shape index: {}]
  %s18 = inlined_call_operand.vmem [shape: f32[2,1,128], index: 18, kind: input, shape index: {}]
  %s19 = inlined_call_operand.vmem [shape: f32[2,1,128], index: 19, kind: input, shape index: {}]
  %s20 = inlined_call_operand.vmem [shape: bf16[128,128], index: 20, kind: input, shape index: {}]
  %s21 = inlined_call_operand.vmem [shape: bf16[128,128], index: 21, kind: input, shape index: {}]
  %s22 = inlined_call_operand.vmem [shape: f32[1,128], index: 22, kind: input, shape index: {}]
  %s23 = inlined_call_operand.hbm [shape: f32[2,128], index: 23, kind: output, shape index: {}]
  %s24 = sld [smem:[#allocation0]]
  $region102: #{bert_forward.1} parent=0
    _
  %s26 = ssub.s32 1, %s24
  %s27 = scalar_select 0, %s26, %s24
  $region1: #{bert_forward.1} parent=0
    #allocation2 [shape = 'u8[1024]{0}', space=vmem, size = 0x400, scoped, tag = 'output window, operand 0, single buffered']
    #allocation3 [shape = 's32[1]{0}', space=sflag, size = 0x4, scoped, tag = 'scoped memory for bert_forward.1']
    %28 = vsyncpa [#allocation3], 0
    // Predicated region
    $region2: #{bert_forward.1} parent=1 // pred_check
      _
    $region3: #{bert_forward.1} parent=1 // pred_check_branch
      %30 = sbr.rel (0) target = $region5
    $region4: #{bert_forward.1} parent=1 // pred_region
      _
    $region5: #{bert_forward.1} parent=1 // pred_fallthru
      _
    // Predicated region
    $region6: #{bert_forward.1} parent=1 // pred_check
      _
    $region7: #{bert_forward.1} parent=1 // pred_check_branch
      %32 = sbr.rel (0) target = $region9
    $region8: #{bert_forward.1} parent=1 // pred_region
      _
    $region9: #{bert_forward.1} parent=1 // pred_fallthru
      _
    // Predicated region
    $region10: #{bert_forward.1} parent=1 // pred_check
      _
    $region11: #{bert_forward.1} parent=1 // pred_check_branch
      %34 = sbr.rel (0) target = $region13
    $region12: #{bert_forward.1} parent=1 // pred_region
      _
    $region13: #{bert_forward.1} parent=1 // pred_fallthru
      _
    // Predicated region
    $region14: #{bert_forward.1} parent=1 // pred_check
      _
    $region15: #{bert_forward.1} parent=1 // pred_check_branch
      %36 = sbr.rel (0) target = $region17
    $region16: #{bert_forward.1} parent=1 // pred_region
      _
    $region17: #{bert_forward.1} parent=1 // pred_fallthru
      _
    // Predicated region
    $region18: #{bert_forward.1} parent=1 // pred_check
      _
    $region19: #{bert_forward.1} parent=1 // pred_check_branch
      %38 = sbr.rel (0) target = $region21
    $region20: #{bert_forward.1} parent=1 // pred_region
      _
    $region21: #{bert_forward.1} parent=1 // pred_fallthru
      _
    // Predicated region
    $region22: #{bert_forward.1} parent=1 // pred_check
      _
    $region23: #{bert_forward.1} parent=1 // pred_check_branch
      %40 = sbr.rel (0) target = $region25
    $region24: #{bert_forward.1} parent=1 // pred_region
      _
    $region25: #{bert_forward.1} parent=1 // pred_fallthru
      _
    // Predicated region
    $region26: #{bert_forward.1} parent=1 // pred_check
      _
    $region27: #{bert_forward.1} parent=1 // pred_check_branch
      %42 = sbr.rel (0) target = $region29
    $region28: #{bert_forward.1} parent=1 // pred_region
      _
    $region29: #{bert_forward.1} parent=1 // pred_fallthru
      _
    // Predicated region
    $region30: #{bert_forward.1} parent=1 // pred_check
      _
    $region31: #{bert_forward.1} parent=1 // pred_check_branch
      %44 = sbr.rel (0) target = $region33
    $region32: #{bert_forward.1} parent=1 // pred_region
      _
    $region33: #{bert_forward.1} parent=1 // pred_fallthru
      _
    // Predicated region
    $region34: #{bert_forward.1} parent=1 // pred_check
      _
    $region35: #{bert_forward.1} parent=1 // pred_check_branch
      %46 = sbr.rel (0) target = $region37
    $region36: #{bert_forward.1} parent=1 // pred_region
      _
    $region37: #{bert_forward.1} parent=1 // pred_fallthru
      _
    // Predicated region
    $region38: #{bert_forward.1} parent=1 // pred_check
      _
    $region39: #{bert_forward.1} parent=1 // pred_check_branch
      %48 = sbr.rel (0) target = $region41
    $region40: #{bert_forward.1} parent=1 // pred_region
      _
    $region41: #{bert_forward.1} parent=1 // pred_fallthru
      _
    // Predicated region
    $region42: #{bert_forward.1} parent=1 // pred_check
      _
    $region43: #{bert_forward.1} parent=1 // pred_check_branch
      %50 = sbr.rel (0) target = $region45
    $region44: #{bert_forward.1} parent=1 // pred_region
      _
    $region45: #{bert_forward.1} parent=1 // pred_fallthru
      _
    // Predicated region
    $region46: #{bert_forward.1} parent=1 // pred_check
      _
    $region47: #{bert_forward.1} parent=1 // pred_check_branch
      %52 = sbr.rel (0) target = $region49
    $region48: #{bert_forward.1} parent=1 // pred_region
      _
    $region49: #{bert_forward.1} parent=1 // pred_fallthru
      _
    // Predicated region
    $region50: #{bert_forward.1} parent=1 // pred_check
      _
    $region51: #{bert_forward.1} parent=1 // pred_check_branch
      %54 = sbr.rel (0) target = $region53
    $region52: #{bert_forward.1} parent=1 // pred_region
      _
    $region53: #{bert_forward.1} parent=1 // pred_fallthru
      _
    // Predicated region
    $region54: #{bert_forward.1} parent=1 // pred_check
      _
    $region55: #{bert_forward.1} parent=1 // pred_check_branch
      %56 = sbr.rel (0) target = $region57
    $region56: #{bert_forward.1} parent=1 // pred_region
      _
    $region57: #{bert_forward.1} parent=1 // pred_fallthru
      _
    // Predicated region
    $region58: #{bert_forward.1} parent=1 // pred_check
      _
    $region59: #{bert_forward.1} parent=1 // pred_check_branch
      %58 = sbr.rel (0) target = $region61
    $region60: #{bert_forward.1} parent=1 // pred_region
      _
    $region61: #{bert_forward.1} parent=1 // pred_fallthru
      _
    // Predicated region
    $region62: #{bert_forward.1} parent=1 // pred_check
      _
    $region63: #{bert_forward.1} parent=1 // pred_check_branch
      %60 = sbr.rel (0) target = $region65
    $region64: #{bert_forward.1} parent=1 // pred_region
      _
    $region65: #{bert_forward.1} parent=1 // pred_fallthru
      _
    // Predicated region
    $region66: #{bert_forward.1} parent=1 // pred_check
      _
    $region67: #{bert_forward.1} parent=1 // pred_check_branch
      %62 = sbr.rel (0) target = $region69
    $region68: #{bert_forward.1} parent=1 // pred_region
      _
    $region69: #{bert_forward.1} parent=1 // pred_fallthru
      _
    // Predicated region
    $region70: #{bert_forward.1} parent=1 // pred_check
      _
    $region71: #{bert_forward.1} parent=1 // pred_check_branch
      %64 = sbr.rel (0) target = $region73
    $region72: #{bert_forward.1} parent=1 // pred_region
      _
    $region73: #{bert_forward.1} parent=1 // pred_fallthru
      _
    // Predicated region
    $region74: #{bert_forward.1} parent=1 // pred_check
      _
    $region75: #{bert_forward.1} parent=1 // pred_check_branch
      %66 = sbr.rel (0) target = $region77
    $region76: #{bert_forward.1} parent=1 // pred_region
      _
    $region77: #{bert_forward.1} parent=1 // pred_fallthru
      _
    // Predicated region
    $region78: #{bert_forward.1} parent=1 // pred_check
      _
    $region79: #{bert_forward.1} parent=1 // pred_check_branch
      %68 = sbr.rel (0) target = $region81
    $region80: #{bert_forward.1} parent=1 // pred_region
      _
    $region81: #{bert_forward.1} parent=1 // pred_fallthru
      _
    // Predicated region
    $region82: #{bert_forward.1} parent=1 // pred_check
      _
    $region83: #{bert_forward.1} parent=1 // pred_check_branch
      %70 = sbr.rel (0) target = $region85
    $region84: #{bert_forward.1} parent=1 // pred_region
      _
    $region85: #{bert_forward.1} parent=1 // pred_fallthru
      _
    // Predicated region
    $region86: #{bert_forward.1} parent=1 // pred_check
      _
    $region87: #{bert_forward.1} parent=1 // pred_check_branch
      %72 = sbr.rel (0) target = $region89
    $region88: #{bert_forward.1} parent=1 // pred_region
      _
    $region89: #{bert_forward.1} parent=1 // pred_fallthru
      _
    // Predicated region
    $region90: #{bert_forward.1} parent=1 // pred_check
      _
    $region91: #{bert_forward.1} parent=1 // pred_check_branch
      %74 = sbr.rel (0) target = $region93
    $region92: #{bert_forward.1} parent=1 // pred_region
      _
    $region93: #{bert_forward.1} parent=1 // pred_fallthru
      _
    %v76 = vld [vmem:[%s0] sm:$0xff]
    %v77 = vld [vmem:[%s0 + $0x8] sm:$0xff]
    %v78 = vld [vmem:[%s0 + $0x10] sm:$0xff]
    %v79 = vld [vmem:[%s0 + $0x18] sm:$0xff]
    %v80 = vlaneseq
    %v81 = vand.u32 %v80, 127
    %82 = vset.pattern.permute.xlu0 0
    %83 = vperm.xlu0 %82, %v76
    %v84 = vpop.permute.xlu0 %83
    %85 = vset.pattern.permute.xlu0 0
    %86 = vperm.xlu0 %85, %v77
    %v87 = vpop.permute.xlu0 %86
    %88 = vset.pattern.permute.xlu0 0
    %89 = vperm.xlu0 %88, %v78
    %v90 = vpop.permute.xlu0 %89
    %91 = vset.pattern.permute.xlu0 0
    %92 = vperm.xlu0 %91, %v79
    %v93 = vpop.permute.xlu0 %92
    %vm94 = vcmp.eq.s32.totalorder %v81, %v84
    %vm95 = vcmp.eq.s32.totalorder %v81, %v87
    %vm96 = vcmp.eq.s32.totalorder %v81, %v90
    %vm97 = vcmp.eq.s32.totalorder %v81, %v93
    %v98 = vsel %vm94, 1, 0
    %v99 = vsel %vm95, 1, 0
    %v100 = vsel %vm96, 1, 0
    %v101 = vsel %vm97, 1, 0
    %v102 = vcvt.s32.f32 %v98
    %v103 = vcvt.s32.f32 %v99
    %v104 = vcvt.s32.f32 %v100
    %v105 = vcvt.s32.f32 %v101
    %v106 = vpack.c.bf16 %v103, %v102
    %v107 = vpack.c.bf16 %v105, %v104
    %v108 = vld [vmem:[%s3] sm:$0xf]
    %v109 = vld [vmem:[%s3 + $0x4] sm:$0xf]
    %v110 = vld [vmem:[%s3 + $0x8] sm:$0xf]
    %v111 = vld [vmem:[%s3 + $0xc] sm:$0xf]
    %v112 = vld [vmem:[%s3 + $0x10] sm:$0xf]
    %v113 = vld [vmem:[%s3 + $0x14] sm:$0xf]
    %v114 = vld [vmem:[%s3 + $0x18] sm:$0xf]
    %v115 = vld [vmem:[%s3 + $0x1c] sm:$0xf]
    %v116 = vld [vmem:[%s3 + $0x20] sm:$0xf]
    %v117 = vld [vmem:[%s3 + $0x24] sm:$0xf]
    %v118 = vld [vmem:[%s3 + $0x28] sm:$0xf]
    %v119 = vld [vmem:[%s3 + $0x2c] sm:$0xf]
    %v120 = vld [vmem:[%s3 + $0x30] sm:$0xf]
    %v121 = vld [vmem:[%s3 + $0x34] sm:$0xf]
    %v122 = vld [vmem:[%s3 + $0x38] sm:$0xf]
    %v123 = vld [vmem:[%s3 + $0x3c] sm:$0xf]
    %v124 = vld [vmem:[%s1] sm:$0xff]
    %v125 = vld [vmem:[%s1 + $0x8] sm:$0xff]
    %v126 = vld [vmem:[%s1 + $0x10] sm:$0xff]
    %v127 = vld [vmem:[%s1 + $0x18] sm:$0xff]
    %v128 = vcvt.s32.f32 %v124
    %v129 = vcvt.s32.f32 %v125
    %v130 = vcvt.s32.f32 %v126
    %v131 = vcvt.s32.f32 %v127
    %v132 = vsub.f32 1.0, %v128
    %v133 = vsub.f32 1.0, %v129
    %v134 = vsub.f32 1.0, %v130
    %v135 = vsub.f32 1.0, %v131
    %v136 = vld [vmem:[%s5] sm:$0x1]
    %138 = vset.pattern.permute.xlu0 0
    %139 = vperm.xlu0 %138, %v132
    %v140 = vpop.permute.xlu0 %139
    %143 = vset.pattern.permute.xlu0 0
    %144 = vperm.xlu0 %143, %v133
    %v145 = vpop.permute.xlu0 %144
    %148 = vset.pattern.permute.xlu0 0
    %149 = vperm.xlu0 %148, %v134
    %v150 = vpop.permute.xlu0 %149
    %153 = vset.pattern.permute.xlu0 0
    %154 = vperm.xlu0 %153, %v135
    %v155 = vpop.permute.xlu0 %154
    %v157 = vlaneseq
    %v158 = vshrl.u32 %v157, 7
    %v159 = vsub.s32 0, %v158
    %v160 = vrot.slane %v136, %v159
    %v161 = vmul.f32 %v140, %v160
    %v162 = vmul.f32 %v145, %v160
    %v163 = vmul.f32 %v150, %v160
    %v164 = vmul.f32 %v155, %v160
    %v165 = vld [vmem:[%s5 + $0x1] sm:$0x1]
    %167 = vset.pattern.permute.xlu0 0
    %168 = vperm.xlu0 %167, %v128
    %v169 = vpop.permute.xlu0 %168
    %172 = vset.pattern.permute.xlu0 0
    %173 = vperm.xlu0 %172, %v129
    %v174 = vpop.permute.xlu0 %173
    %177 = vset.pattern.permute.xlu0 0
    %178 = vperm.xlu0 %177, %v130
    %v179 = vpop.permute.xlu0 %178
    %182 = vset.pattern.permute.xlu0 0
    %183 = vperm.xlu0 %182, %v131
    %v184 = vpop.permute.xlu0 %183
    %v186 = vlaneseq
    %v187 = vshrl.u32 %v186, 7
    %v188 = vsub.s32 0, %v187
    %v189 = vrot.slane %v165, %v188
    %v190 = vmul.f32 %v169, %v189
    %v191 = vmul.f32 %v174, %v189
    %v192 = vmul.f32 %v179, %v189
    %v193 = vmul.f32 %v184, %v189
    %v194 = vadd.f32 %v161, %v190
    %v195 = vadd.f32 %v162, %v191
    %v196 = vadd.f32 %v163, %v192
    %v197 = vadd.f32 %v164, %v193
    %v198 = vld [vmem:[%s4] sm:$0xff]
    %v199 = vld [vmem:[%s4 + $0x8] sm:$0xff]
    %v200 = vld [vmem:[%s4 + $0x10] sm:$0xff]
    %v201 = vld [vmem:[%s4 + $0x18] sm:$0xff]
    %v218 = vunpack.c.l.b16 %v108
    %v219 = vunpack.c.l.b16 %v109
    %v220 = vunpack.c.l.b16 %v110
    %v221 = vunpack.c.l.b16 %v111
    %v222 = vunpack.c.l.b16 %v112
    %v223 = vunpack.c.l.b16 %v113
    %v224 = vunpack.c.l.b16 %v114
    %v225 = vunpack.c.l.b16 %v115
    %v226 = vunpack.c.l.b16 %v116
    %v227 = vunpack.c.l.b16 %v117
    %v228 = vunpack.c.l.b16 %v118
    %v229 = vunpack.c.l.b16 %v119
    %v230 = vunpack.c.l.b16 %v120
    %v231 = vunpack.c.l.b16 %v121
    %v232 = vunpack.c.l.b16 %v122
    %v233 = vunpack.c.l.b16 %v123
    %v234 = vpack.c.b16 %v219, %v218
    %v235 = vpack.c.b16 %v221, %v220
    %v236 = vpack.c.b16 %v223, %v222
    %v237 = vpack.c.b16 %v225, %v224
    %v238 = vpack.c.b16 %v227, %v226
    %v239 = vpack.c.b16 %v229, %v228
    %v240 = vpack.c.b16 %v231, %v230
    %v241 = vpack.c.b16 %v233, %v232
    %250 = vmatprep.subr.bf16.mxu0 0
    %251 = vmatpush1.bf16.msra.mxu0 %v234
    %252 = vmatprep.subr.bf16.mxu0 0
    %253 = vmatpush1.bf16.msra.mxu0 %v235
    %254 = vmatprep.subr.bf16.mxu0 0
    %255 = vmatpush1.bf16.msra.mxu0 %v236
    %256 = vmatprep.subr.bf16.mxu0 0
    %257 = vmatpush1.bf16.msra.mxu0 %v237
    %258 = vmatprep.subr.bf16.mxu0 0
    %259 = vmatpush1.bf16.msra.mxu0 %v238
    %260 = vmatprep.subr.bf16.mxu0 0
    %261 = vmatpush1.bf16.msra.mxu0 %v239
    %262 = vmatprep.subr.bf16.mxu0 0
    %263 = vmatpush1.bf16.msra.mxu0 %v240
    %264 = vmatprep.subr.bf16.mxu0 0
    %265 = vmatpush1.bf16.msra.mxu0 %v241
    %266 = vmatprep.subr.bf16.mxu0 0
    %267 = vmatpush1.bf16.msra.mxu0 0
    %268 = vmatprep.subr.bf16.mxu0 0
    %269 = vmatpush1.bf16.msra.mxu0 0
    %270 = vmatprep.subr.bf16.mxu0 0
    %271 = vmatpush1.bf16.msra.mxu0 0
    %272 = vmatprep.subr.bf16.mxu0 0
    %273 = vmatpush1.bf16.msra.mxu0 0
    %274 = vmatprep.subr.bf16.mxu0 0
    %275 = vmatpush1.bf16.msra.mxu0 0
    %276 = vmatprep.subr.bf16.mxu0 0
    %277 = vmatpush1.bf16.msra.mxu0 0
    %278 = vmatprep.subr.bf16.mxu0 0
    %279 = vmatpush1.bf16.msra.mxu0 0
    %280 = vmatprep.subr.bf16.mxu0 0
    %281 = vmatpush1.bf16.msra.mxu0 0
    %282 = vmatprep.mubr.bf16.mxu0 0
    %283 = vmatmul.mubr.bf16.gmra.mrb[0].mxu0 %v106
    %v284 = vpop.f32.mrb[0].mxu0
    %v285 = vadd.f32 %v198, %v284
    %v286 = vpop.f32.mrb[0].mxu0
    %v287 = vpop.f32.mrb[0].mxu0
    %v288 = vadd.f32 %v199, %v287
    %v289 = vpop.f32.mrb[0].mxu0
    %290 = vmatprep.mubr.bf16.mxu0 0
    %291 = vmatmul.mubr.bf16.gmra.mrb[0].mxu0 %v107
    %v292 = vpop.f32.mrb[0].mxu0
    %v293 = vadd.f32 %v200, %v292
    %v294 = vpop.f32.mrb[0].mxu0
    %v295 = vpop.f32.mrb[0].mxu0
    %v296 = vadd.f32 %v201, %v295
    %v297 = vpop.f32.mrb[0].mxu0
    %298 = vdwg.mxu0
    %v299 = vadd.f32 %v285, %v194
    %v300 = vadd.f32 %v288, %v195
    %v301 = vadd.f32 %v293, %v196
    %v302 = vadd.f32 %v296, %v197
    %v303 = vld [vmem:[%s6] sm:$0x1]
    %v304 = vld [vmem:[%s7] sm:$0x1]
    %305 = vadd.xlane.f32.xlu0 %v299
    %v306 = vpop.xlane.xlu0 %305
    %307 = vadd.xlane.f32.xlu0 %v300
    %v308 = vpop.xlane.xlu0 %307
    %309 = vadd.xlane.f32.xlu0 %v301
    %v310 = vpop.xlane.xlu0 %309
    %311 = vadd.xlane.f32.xlu0 %v302
    %v312 = vpop.xlane.xlu0 %311
    %v313 = vrcp.pop 128.0
    %v314 = vmul.f32 %v306, %v313
    %v315 = vmul.f32 %v308, %v313
    %v316 = vmul.f32 %v310, %v313
    %v317 = vmul.f32 %v312, %v313
    %v318 = vsub.f32 %v299, %v314
    %v319 = vsub.f32 %v300, %v315
    %v320 = vsub.f32 %v301, %v316
    %v321 = vsub.f32 %v302, %v317
    %v322 = vmul.f32 %v318, %v318
    %v323 = vmul.f32 %v319, %v319
    %v324 = vmul.f32 %v320, %v320
    %v325 = vmul.f32 %v321, %v321
    %326 = vadd.xlane.f32.xlu0 %v322
    %v327 = vpop.xlane.xlu0 %326
    %328 = vadd.xlane.f32.xlu0 %v323
    %v329 = vpop.xlane.xlu0 %328
    %330 = vadd.xlane.f32.xlu0 %v324
    %v331 = vpop.xlane.xlu0 %330
    %332 = vadd.xlane.f32.xlu0 %v325
    %v333 = vpop.xlane.xlu0 %332
    %v334 = vmul.f32 %v327, %v313
    %v335 = vmul.f32 %v329, %v313
    %v336 = vmul.f32 %v331, %v313
    %v337 = vmul.f32 %v333, %v313
    %v338 = vadd.f32 %v334, 1e-12
    %v339 = vadd.f32 %v335, 1e-12
    %v340 = vadd.f32 %v336, 1e-12
    %v341 = vadd.f32 %v337, 1e-12
    %v342 = vrsqrt.pop %v338
    %v343 = vrsqrt.pop %v339
    %v344 = vrsqrt.pop %v340
    %v345 = vrsqrt.pop %v341
    %v346 = vmul.f32 %v318, %v342
    %v347 = vmul.f32 %v319, %v343
    %v348 = vmul.f32 %v320, %v344
    %v349 = vmul.f32 %v321, %v345
    %v351 = vlaneseq
    %v352 = vshrl.u32 %v351, 7
    %v353 = vsub.s32 0, %v352
    %v354 = vrot.slane %v303, %v353
    %v356 = vmul.f32 %v346, %v354
    %v357 = vmul.f32 %v347, %v354
    %v358 = vmul.f32 %v348, %v354
    %v359 = vmul.f32 %v349, %v354
    %v361 = vlaneseq
    %v362 = vshrl.u32 %v361, 7
    %v363 = vsub.s32 0, %v362
    %v364 = vrot.slane %v304, %v363
    %v366 = vadd.f32 %v356, %v364
    %v367 = vadd.f32 %v357, %v364
    %v368 = vadd.f32 %v358, %v364
    %v369 = vadd.f32 %v359, %v364
    %v370 = vld [vmem:[%s2] sm:$0xff]
    %v371 = vld [vmem:[%s2 + $0x8] sm:$0xff]
    %v372 = vld [vmem:[%s2 + $0x10] sm:$0xff]
    %v373 = vld [vmem:[%s2 + $0x18] sm:$0xff]
    %v374 = vld [vmem:[%s20] sm:$0xf]
    %v375 = vld [vmem:[%s20 + $0x4] sm:$0xf]
    %v376 = vld [vmem:[%s20 + $0x8] sm:$0xf]
    %v377 = vld [vmem:[%s20 + $0xc] sm:$0xf]
    %v378 = vld [vmem:[%s20 + $0x10] sm:$0xf]
    %v379 = vld [vmem:[%s20 + $0x14] sm:$0xf]
    %v380 = vld [vmem:[%s20 + $0x18] sm:$0xf]
    %v381 = vld [vmem:[%s20 + $0x1c] sm:$0xf]
    %v382 = vld [vmem:[%s20 + $0x20] sm:$0xf]
    %v383 = vld [vmem:[%s20 + $0x24] sm:$0xf]
    %v384 = vld [vmem:[%s20 + $0x28] sm:$0xf]
    %v385 = vld [vmem:[%s20 + $0x2c] sm:$0xf]
    %v386 = vld [vmem:[%s20 + $0x30] sm:$0xf]
    %v387 = vld [vmem:[%s20 + $0x34] sm:$0xf]
    %v388 = vld [vmem:[%s20 + $0x38] sm:$0xf]
    %v389 = vld [vmem:[%s20 + $0x3c] sm:$0xf]
    %v390 = vld [vmem:[%s8] sm:$0xff]
    %v391 = vld [vmem:[%s8 + $0x8] sm:$0xf]
    %v392 = vld [vmem:[%s8 + $0xc] sm:$0xff]
    %v393 = vld [vmem:[%s8 + $0x14] sm:$0xf]
    %v394 = vld [vmem:[%s8 + $0x18] sm:$0xff]
    %v395 = vld [vmem:[%s8 + $0x20] sm:$0xf]
    %v396 = vld [vmem:[%s8 + $0x24] sm:$0xff]
    %v397 = vld [vmem:[%s8 + $0x2c] sm:$0xf]
    %v398 = vld [vmem:[%s8 + $0x30] sm:$0xff]
    %v399 = vld [vmem:[%s8 + $0x38] sm:$0xf]
    %v400 = vld [vmem:[%s8 + $0x3c] sm:$0xff]
    %v401 = vld [vmem:[%s8 + $0x44] sm:$0xf]
    %v402 = vld [vmem:[%s8 + $0x48] sm:$0xff]
    %v403 = vld [vmem:[%s8 + $0x50] sm:$0xf]
    %v404 = vld [vmem:[%s8 + $0x54] sm:$0xff]
    %v405 = vld [vmem:[%s8 + $0x5c] sm:$0xf]
    %v406 = vld [vmem:[%s8 + $0x60] sm:$0xff]
    %v407 = vld [vmem:[%s8 + $0x68] sm:$0xf]
    %v408 = vld [vmem:[%s8 + $0x6c] sm:$0xff]
    %v409 = vld [vmem:[%s8 + $0x74] sm:$0xf]
    %v410 = vld [vmem:[%s8 + $0x78] sm:$0xff]
    %v411 = vld [vmem:[%s8 + $0x80] sm:$0xf]
    %v412 = vld [vmem:[%s8 + $0x84] sm:$0xff]
    %v413 = vld [vmem:[%s8 + $0x8c] sm:$0xf]
    %v414 = vld [vmem:[%s8 + $0x90] sm:$0xff]
    %v415 = vld [vmem:[%s8 + $0x98] sm:$0xf]
    %v416 = vld [vmem:[%s8 + $0x9c] sm:$0xff]
    %v417 = vld [vmem:[%s8 + $0xa4] sm:$0xf]
    %v418 = vld [vmem:[%s8 + $0xa8] sm:$0xff]
    %v419 = vld [vmem:[%s8 + $0xb0] sm:$0xf]
    %v420 = vld [vmem:[%s8 + $0xb4] sm:$0xff]
    %v421 = vld [vmem:[%s8 + $0xbc] sm:$0xf]
    %v422 = vpack.c.bf16 %v367, %v366
    %v423 = vpack.c.bf16 %v369, %v368
    %v424 = vld [vmem:[%s9] sm:$0x7]
    %v426 = vlaneseq
    %v427 = vshrl.u32 %v426, 7
    %v428 = vsub.s32 0, %v427
    %v429 = vrot.slane %v424, %v428
    %v430 = vlaneseq
    %v431 = vshrl.u32 %v430, 7
    %v432 = vsub.s32 1, %v431
    %v433 = vrot.slane %v424, %v432
    %v434 = vlaneseq
    %v435 = vshrl.u32 %v434, 7
    %v436 = vsub.s32 2, %v435
    %v437 = vrot.slane %v424, %v436
    %v473 = vunpack.c.l.b16 %v390
    %v474 = vunpack.c.h.b16 %v390
    %v475 = vunpack.c.l.b16 %v391
    %v476 = vunpack.c.l.b16 %v392
    %v477 = vunpack.c.h.b16 %v392
    %v478 = vunpack.c.l.b16 %v393
    %v479 = vunpack.c.l.b16 %v394
    %v480 = vunpack.c.h.b16 %v394
    %v481 = vunpack.c.l.b16 %v395
    %v482 = vunpack.c.l.b16 %v396
    %v483 = vunpack.c.h.b16 %v396
    %v484 = vunpack.c.l.b16 %v397
    %v485 = vunpack.c.l.b16 %v398
    %v486 = vunpack.c.h.b16 %v398
    %v487 = vunpack.c.l.b16 %v399
    %v488 = vunpack.c.l.b16 %v400
    %v489 = vunpack.c.h.b16 %v400
    %v490 = vunpack.c.l.b16 %v401
    %v491 = vunpack.c.l.b16 %v402
    %v492 = vunpack.c.h.b16 %v402
    %v493 = vunpack.c.l.b16 %v403
    %v494 = vunpack.c.l.b16 %v404
    %v495 = vunpack.c.h.b16 %v404
    %v496 = vunpack.c.l.b16 %v405
    %v497 = vunpack.c.l.b16 %v406
    %v498 = vunpack.c.h.b16 %v406
    %v499 = vunpack.c.l.b16 %v407
    %v500 = vunpack.c.l.b16 %v408
    %v501 = vunpack.c.h.b16 %v408
    %v502 = vunpack.c.l.b16 %v409
    %v503 = vunpack.c.l.b16 %v410
    %v504 = vunpack.c.h.b16 %v410
    %v505 = vunpack.c.l.b16 %v411
    %v506 = vunpack.c.l.b16 %v412
    %v507 = vunpack.c.h.b16 %v412
    %v508 = vunpack.c.l.b16 %v413
    %v509 = vunpack.c.l.b16 %v414
    %v510 = vunpack.c.h.b16 %v414
    %v511 = vunpack.c.l.b16 %v415
    %v512 = vunpack.c.l.b16 %v416
    %v513 = vunpack.c.h.b16 %v416
    %v514 = vunpack.c.l.b16 %v417
    %v515 = vunpack.c.l.b16 %v418
    %v516 = vunpack.c.h.b16 %v418
    %v517 = vunpack.c.l.b16 %v419
    %v518 = vunpack.c.l.b16 %v420
    %v519 = vunpack.c.h.b16 %v420
    %v520 = vunpack.c.l.b16 %v421
    %v521 = vpack.c.b16 %v476, %v473
    %v522 = vpack.c.b16 %v477, %v474
    %v523 = vpack.c.b16 %v478, %v475
    %v524 = vpack.c.b16 %v482, %v479
    %v525 = vpack.c.b16 %v483, %v480
    %v526 = vpack.c.b16 %v484, %v481
    %v527 = vpack.c.b16 %v488, %v485
    %v528 = vpack.c.b16 %v489, %v486
    %v529 = vpack.c.b16 %v490, %v487
    %v530 = vpack.c.b16 %v494, %v491
    %v531 = vpack.c.b16 %v495, %v492
    %v532 = vpack.c.b16 %v496, %v493
    %v533 = vpack.c.b16 %v500, %v497
    %v534 = vpack.c.b16 %v501, %v498
    %v535 = vpack.c.b16 %v502, %v499
    %v536 = vpack.c.b16 %v506, %v503
    %v537 = vpack.c.b16 %v507, %v504
    %v538 = vpack.c.b16 %v508, %v505
    %v539 = vpack.c.b16 %v512, %v509
    %v540 = vpack.c.b16 %v513, %v510
    %v541 = vpack.c.b16 %v514, %v511
    %v542 = vpack.c.b16 %v518, %v515
    %v543 = vpack.c.b16 %v519, %v516
    %v544 = vpack.c.b16 %v520, %v517
    %569 = vmatprep.subr.bf16.mxu0 %v522
    %570 = vmatpush1.bf16.msra.mxu0 %v521
    %571 = vmatprep.subr.bf16.mxu0 %v525
    %572 = vmatpush1.bf16.msra.mxu0 %v524
    %573 = vmatprep.subr.bf16.mxu0 %v528
    %574 = vmatpush1.bf16.msra.mxu0 %v527
    %575 = vmatprep.subr.bf16.mxu0 %v531
    %576 = vmatpush1.bf16.msra.mxu0 %v530
    %577 = vmatprep.subr.bf16.mxu0 %v534
    %578 = vmatpush1.bf16.msra.mxu0 %v533
    %579 = vmatprep.subr.bf16.mxu0 %v537
    %580 = vmatpush1.bf16.msra.mxu0 %v536
    %581 = vmatprep.subr.bf16.mxu0 %v540
    %582 = vmatpush1.bf16.msra.mxu0 %v539
    %583 = vmatprep.subr.bf16.mxu0 %v543
    %584 = vmatpush1.bf16.msra.mxu0 %v542
    %585 = vmatprep.subr.bf16.mxu0 0
    %586 = vmatpush1.bf16.msra.mxu0 0
    %587 = vmatprep.subr.bf16.mxu0 0
    %588 = vmatpush1.bf16.msra.mxu0 0
    %589 = vmatprep.subr.bf16.mxu0 0
    %590 = vmatpush1.bf16.msra.mxu0 0
    %591 = vmatprep.subr.bf16.mxu0 0
    %592 = vmatpush1.bf16.msra.mxu0 0
    %593 = vmatprep.subr.bf16.mxu0 0
    %594 = vmatpush1.bf16.msra.mxu0 0
    %595 = vmatprep.subr.bf16.mxu0 0
    %596 = vmatpush1.bf16.msra.mxu0 0
    %597 = vmatprep.subr.bf16.mxu0 0
    %598 = vmatpush1.bf16.msra.mxu0 0
    %599 = vmatprep.subr.bf16.mxu0 0
    %600 = vmatpush1.bf16.msra.mxu0 0
    %601 = vmatprep.mubr.bf16.mxu0 0
    %602 = vmatmul.mubr.bf16.gmra.mrb[0].mxu0 %v422
    %v603 = vpop.f32.mrb[0].mxu0
    %v604 = vadd.f32 %v429, %v603
    %v605 = vpop.f32.mrb[0].mxu0
    %v606 = vadd.f32 %v433, %v605
    %v607 = vpop.f32.mrb[0].mxu0
    %v608 = vadd.f32 %v429, %v607
    %v609 = vpop.f32.mrb[0].mxu0
    %v610 = vadd.f32 %v433, %v609
    %611 = vmatprep.mubr.bf16.mxu0 0
    %612 = vmatmul.mubr.bf16.gmra.mrb[0].mxu0 %v423
    %v613 = vpop.f32.mrb[0].mxu0
    %v614 = vadd.f32 %v429, %v613
    %v615 = vpop.f32.mrb[0].mxu0
    %v616 = vadd.f32 %v433, %v615
    %v617 = vpop.f32.mrb[0].mxu0
    %v618 = vadd.f32 %v429, %v617
    %v619 = vpop.f32.mrb[0].mxu0
    %v620 = vadd.f32 %v433, %v619
    %621 = vdwg.mxu0
    %622 = vmatprep.subr.bf16.mxu0 0
    %623 = vmatpush1.bf16.msra.mxu0 %v523
    %624 = vmatprep.subr.bf16.mxu0 0
    %625 = vmatpush1.bf16.msra.mxu0 %v526
    %626 = vmatprep.subr.bf16.mxu0 0
    %627 = vmatpush1.bf16.msra.mxu0 %v529
    %628 = vmatprep.subr.bf16.mxu0 0
    %629 = vmatpush1.bf16.msra.mxu0 %v532
    %630 = vmatprep.subr.bf16.mxu0 0
    %631 = vmatpush1.bf16.msra.mxu0 %v535
    %632 = vmatprep.subr.bf16.mxu0 0
    %633 = vmatpush1.bf16.msra.mxu0 %v538
    %634 = vmatprep.subr.bf16.mxu0 0
    %635 = vmatpush1.bf16.msra.mxu0 %v541
    %636 = vmatprep.subr.bf16.mxu0 0
    %637 = vmatpush1.bf16.msra.mxu0 %v544
    %638 = vmatprep.subr.bf16.mxu0 0
    %639 = vmatpush1.bf16.msra.mxu0 0
    %640 = vmatprep.subr.bf16.mxu0 0
    %641 = vmatpush1.bf16.msra.mxu0 0
    %642 = vmatprep.subr.bf16.mxu0 0
    %643 = vmatpush1.bf16.msra.mxu0 0
    %644 = vmatprep.subr.bf16.mxu0 0
    %645 = vmatpush1.bf16.msra.mxu0 0
    %646 = vmatprep.subr.bf16.mxu0 0
    %647 = vmatpush1.bf16.msra.mxu0 0
    %648 = vmatprep.subr.bf16.mxu0 0
    %649 = vmatpush1.bf16.msra.mxu0 0
    %650 = vmatprep.subr.bf16.mxu0 0
    %651 = vmatpush1.bf16.msra.mxu0 0
    %652 = vmatprep.subr.bf16.mxu0 0
    %653 = vmatpush1.bf16.msra.mxu0 0
    %654 = vmatprep.mubr.bf16.mxu0 0
    %655 = vmatmul.mubr.bf16.gmra.mrb[0].mxu0 %v422
    %v656 = vpop.f32.mrb[0].mxu0
    %v657 = vadd.f32 %v437, %v656
    %v658 = vpop.f32.mrb[0].mxu0
    %v659 = vpop.f32.mrb[0].mxu0
    %v660 = vadd.f32 %v437, %v659
    %v661 = vpop.f32.mrb[0].mxu0
    %662 = vmatprep.mubr.bf16.mxu0 0
    %663 = vmatmul.mubr.bf16.gmra.mrb[0].mxu0 %v423
    %v664 = vpop.f32.mrb[0].mxu0
    %v665 = vadd.f32 %v437, %v664
    %v666 = vpop.f32.mrb[0].mxu0
    %v667 = vpop.f32.mrb[0].mxu0
    %v668 = vadd.f32 %v437, %v667
    %v669 = vpop.f32.mrb[0].mxu0
    %670 = vdwg.mxu0
    %v671 = vmul.f32 %v604, 0.17677669
    %v672 = vmul.f32 %v608, 0.17677669
    %v673 = vmul.f32 %v614, 0.17677669
    %v674 = vmul.f32 %v618, 0.17677669
    %v675 = vpack.c.bf16 %v672, %v671
    %v676 = vpack.c.bf16 %v674, %v673
    %v677 = vpack.c.bf16 %v610, %v606
    %v678 = vpack.c.bf16 %v620, %v616
    %vm679 = vcmask 261120
    %v681 = vsel %vm679, %v675, 0
    %v684 = vsel %vm679, %v676, 0
    %v687 = vsel %vm679, %v677, 0
    %v690 = vsel %vm679, %v678, 0
    %692 = vmatprep.subr.bf16.mxu0 0
    %693 = vmatpush1.bf16.xpose.msra.mxu0 %v687
    %694 = vmatprep.subr.bf16.mxu0 0
    %695 = vmatpush1.bf16.xpose.msra.mxu0 %v690
    %696 = vmatprep.subr.bf16.mxu0 0
    %697 = vmatpush1.bf16.xpose.msra.mxu0 0
    %698 = vmatprep.subr.bf16.mxu0 0
    %699 = vmatpush1.bf16.xpose.msra.mxu0 0
    %700 = vmatprep.subr.bf16.mxu0 0
    %701 = vmatpush1.bf16.xpose.msra.mxu0 0
    %702 = vmatprep.subr.bf16.mxu0 0
    %703 = vmatpush1.bf16.xpose.msra.mxu0 0
    %704 = vmatprep.subr.bf16.mxu0 0
    %705 = vmatpush1.bf16.xpose.msra.mxu0 0
    %706 = vmatprep.subr.bf16.mxu0 0
    %707 = vmatpush1.bf16.xpose.msra.mxu0 0
    %708 = vmatprep.subr.bf16.mxu0 0
    %709 = vmatpush1.bf16.xpose.msra.mxu0 0
    %710 = vmatprep.subr.bf16.mxu0 0
    %711 = vmatpush1.bf16.xpose.msra.mxu0 0
    %712 = vmatprep.subr.bf16.mxu0 0
    %713 = vmatpush1.bf16.xpose.msra.mxu0 0
    %714 = vmatprep.subr.bf16.mxu0 0
    %715 = vmatpush1.bf16.xpose.msra.mxu0 0
    %716 = vmatprep.subr.bf16.mxu0 0
    %717 = vmatpush1.bf16.xpose.msra.mxu0 0
    %718 = vmatprep.subr.bf16.mxu0 0
    %719 = vmatpush1.bf16.xpose.msra.mxu0 0
    %720 = vmatprep.subr.bf16.mxu0 0
    %721 = vmatpush1.bf16.xpose.msra.mxu0 0
    %722 = vmatprep.subr.bf16.mxu0 0
    %723 = vmatpush1.bf16.xpose.msra.mxu0 0
    %724 = vmatprep.mubr.bf16.mxu0 0
    %725 = vmatmul.mubr.bf16.gmra.mrb[0].mxu0 %v681
    %v726 = vpop.f32.mrb[0].mxu0
    %v727 = vadd.f32 0.0, %v726
    %v728 = vpop.f32.mrb[0].mxu0
    %v729 = vpop.f32.mrb[0].mxu0
    %v730 = vadd.f32 0.0, %v729
    %v731 = vpop.f32.mrb[0].mxu0
    %732 = vmatprep.mubr.bf16.mxu0 0
    %733 = vmatmul.mubr.bf16.gmra.mrb[0].mxu0 %v684
    %v734 = vpop.f32.mrb[0].mxu0
    %v735 = vadd.f32 0.0, %v734
    %v736 = vpop.f32.mrb[0].mxu0
    %v737 = vpop.f32.mrb[0].mxu0
    %v738 = vadd.f32 0.0, %v737
    %v739 = vpop.f32.mrb[0].mxu0
    %740 = vdwg.mxu0
    %743 = vrot.lane.b32.xlu0 %v675, 96
    %v744 = vpop.permute.xlu0 %743
    %745 = vrot.lane.b32.xlu0 %v676, 96
    %v746 = vpop.permute.xlu0 %745
    %749 = vrot.lane.b32.xlu0 %v677, 96
    %v750 = vpop.permute.xlu0 %749
    %751 = vrot.lane.b32.xlu0 %v678, 96
    %v752 = vpop.permute.xlu0 %751
    %v754 = vsel %vm679, %v744, 0
    %v757 = vsel %vm679, %v746, 0
    %v760 = vsel %vm679, %v750, 0
    %v763 = vsel %vm679, %v752, 0
    %765 = vmatprep.subr.bf16.mxu0 0
    %766 = vmatpush1.bf16.xpose.msra.mxu0 %v760
    %767 = vmatprep.subr.bf16.mxu0 0
    %768 = vmatpush1.bf16.xpose.msra.mxu0 %v763
    %769 = vmatprep.subr.bf16.mxu0 0
    %770 = vmatpush1.bf16.xpose.msra.mxu0 0
    %771 = vmatprep.subr.bf16.mxu0 0
    %772 = vmatpush1.bf16.xpose.msra.mxu0 0
    %773 = vmatprep.subr.bf16.mxu0 0
    %774 = vmatpush1.bf16.xpose.msra.mxu0 0
    %775 = vmatprep.subr.bf16.mxu0 0
    %776 = vmatpush1.bf16.xpose.msra.mxu0 0
    %777 = vmatprep.subr.bf16.mxu0 0
    %778 = vmatpush1.bf16.xpose.msra.mxu0 0
    %779 = vmatprep.subr.bf16.mxu0 0
    %780 = vmatpush1.bf16.xpose.msra.mxu0 0
    %781 = vmatprep.subr.bf16.mxu0 0
    %782 = vmatpush1.bf16.xpose.msra.mxu0 0
    %783 = vmatprep.subr.bf16.mxu0 0
    %784 = vmatpush1.bf16.xpose.msra.mxu0 0
    %785 = vmatprep.subr.bf16.mxu0 0
    %786 = vmatpush1.bf16.xpose.msra.mxu0 0
    %787 = vmatprep.subr.bf16.mxu0 0
    %788 = vmatpush1.bf16.xpose.msra.mxu0 0
    %789 = vmatprep.subr.bf16.mxu0 0
    %790 = vmatpush1.bf16.xpose.msra.mxu0 0
    %791 = vmatprep.subr.bf16.mxu0 0
    %792 = vmatpush1.bf16.xpose.msra.mxu0 0
    %793 = vmatprep.subr.bf16.mxu0 0
    %794 = vmatpush1.bf16.xpose.msra.mxu0 0
    %795 = vmatprep.subr.bf16.mxu0 0
    %796 = vmatpush1.bf16.xpose.msra.mxu0 0
    %797 = vmatprep.mubr.bf16.mxu0 0
    %798 = vmatmul.mubr.bf16.gmra.mrb[0].mxu0 %v754
    %v799 = vpop.f32.mrb[0].mxu0
    %v800 = vadd.f32 0.0, %v799
    %v801 = vpop.f32.mrb[0].mxu0
    %v802 = vpop.f32.mrb[0].mxu0
    %v803 = vadd.f32 0.0, %v802
    %v804 = vpop.f32.mrb[0].mxu0
    %805 = vmatprep.mubr.bf16.mxu0 0
    %806 = vmatmul.mubr.bf16.gmra.mrb[0].mxu0 %v757
    %v807 = vpop.f32.mrb[0].mxu0
    %v808 = vadd.f32 0.0, %v807
    %v809 = vpop.f32.mrb[0].mxu0
    %v810 = vpop.f32.mrb[0].mxu0
    %v811 = vadd.f32 0.0, %v810
    %v812 = vpop.f32.mrb[0].mxu0
    %813 = vdwg.mxu0
    %814 = vrot.lane.b32.xlu0 %v675, 64
    %v815 = vpop.permute.xlu0 %814
    %816 = vrot.lane.b32.xlu0 %v676, 64
    %v817 = vpop.permute.xlu0 %816
    %818 = vrot.lane.b32.xlu0 %v677, 64
    %v819 = vpop.permute.xlu0 %818
    %820 = vrot.lane.b32.xlu0 %v678, 64
    %v821 = vpop.permute.xlu0 %820
    %v823 = vsel %vm679, %v815, 0
    %v826 = vsel %vm679, %v817, 0
    %v829 = vsel %vm679, %v819, 0
    %v832 = vsel %vm679, %v821, 0
    %834 = vmatprep.subr.bf16.mxu0 0
    %835 = vmatpush1.bf16.xpose.msra.mxu0 %v829
    %836 = vmatprep.subr.bf16.mxu0 0
    %837 = vmatpush1.bf16.xpose.msra.mxu0 %v832
    %838 = vmatprep.subr.bf16.mxu0 0
    %839 = vmatpush1.bf16.xpose.msra.mxu0 0
    %840 = vmatprep.subr.bf16.mxu0 0
    %841 = vmatpush1.bf16.xpose.msra.mxu0 0
    %842 = vmatprep.subr.bf16.mxu0 0
    %843 = vmatpush1.bf16.xpose.msra.mxu0 0
    %844 = vmatprep.subr.bf16.mxu0 0
    %845 = vmatpush1.bf16.xpose.msra.mxu0 0
    %846 = vmatprep.subr.bf16.mxu0 0
    %847 = vmatpush1.bf16.xpose.msra.mxu0 0
    %848 = vmatprep.subr.bf16.mxu0 0
    %849 = vmatpush1.bf16.xpose.msra.mxu0 0
    %850 = vmatprep.subr.bf16.mxu0 0
    %851 = vmatpush1.bf16.xpose.msra.mxu0 0
    %852 = vmatprep.subr.bf16.mxu0 0
    %853 = vmatpush1.bf16.xpose.msra.mxu0 0
    %854 = vmatprep.subr.bf16.mxu0 0
    %855 = vmatpush1.bf16.xpose.msra.mxu0 0
    %856 = vmatprep.subr.bf16.mxu0 0
    %857 = vmatpush1.bf16.xpose.msra.mxu0 0
    %858 = vmatprep.subr.bf16.mxu0 0
    %859 = vmatpush1.bf16.xpose.msra.mxu0 0
    %860 = vmatprep.subr.bf16.mxu0 0
    %861 = vmatpush1.bf16.xpose.msra.mxu0 0
    %862 = vmatprep.subr.bf16.mxu0 0
    %863 = vmatpush1.bf16.xpose.msra.mxu0 0
    %864 = vmatprep.subr.bf16.mxu0 0
    %865 = vmatpush1.bf16.xpose.msra.mxu0 0
    %866 = vmatprep.mubr.bf16.mxu0 0
    %867 = vmatmul.mubr.bf16.gmra.mrb[0].mxu0 %v823
    %v868 = vpop.f32.mrb[0].mxu0
    %v869 = vadd.f32 0.0, %v868
    %v870 = vpop.f32.mrb[0].mxu0
    %v871 = vpop.f32.mrb[0].mxu0
    %v872 = vadd.f32 0.0, %v871
    %v873 = vpop.f32.mrb[0].mxu0
    %874 = vmatprep.mubr.bf16.mxu0 0
    %875 = vmatmul.mubr.bf16.gmra.mrb[0].mxu0 %v826
    %v876 = vpop.f32.mrb[0].mxu0
    %v877 = vadd.f32 0.0, %v876
    %v878 = vpop.f32.mrb[0].mxu0
    %v879 = vpop.f32.mrb[0].mxu0
    %v880 = vadd.f32 0.0, %v879
    %v881 = vpop.f32.mrb[0].mxu0
    %882 = vdwg.mxu0
    %883 = vrot.lane.b32.xlu0 %v675, 32
    %v884 = vpop.permute.xlu0 %883
    %885 = vrot.lane.b32.xlu0 %v676, 32
    %v886 = vpop.permute.xlu0 %885
    %887 = vrot.lane.b32.xlu0 %v677, 32
    %v888 = vpop.permute.xlu0 %887
    %889 = vrot.lane.b32.xlu0 %v678, 32
    %v890 = vpop.permute.xlu0 %889
    %v892 = vsel %vm679, %v884, 0
    %v895 = vsel %vm679, %v886, 0
    %v898 = vsel %vm679, %v888, 0
    %v901 = vsel %vm679, %v890, 0
    %903 = vmatprep.subr.bf16.mxu0 0
    %904 = vmatpush1.bf16.xpose.msra.mxu0 %v898
    %905 = vmatprep.subr.bf16.mxu0 0
    %906 = vmatpush1.bf16.xpose.msra.mxu0 %v901
    %907 = vmatprep.subr.bf16.mxu0 0
    %908 = vmatpush1.bf16.xpose.msra.mxu0 0
    %909 = vmatprep.subr.bf16.mxu0 0
    %910 = vmatpush1.bf16.xpose.msra.mxu0 0
    %911 = vmatprep.subr.bf16.mxu0 0
    %912 = vmatpush1.bf16.xpose.msra.mxu0 0
    %913 = vmatprep.subr.bf16.mxu0 0
    %914 = vmatpush1.bf16.xpose.msra.mxu0 0
    %915 = vmatprep.subr.bf16.mxu0 0
    %916 = vmatpush1.bf16.xpose.msra.mxu0 0
    %917 = vmatprep.subr.bf16.mxu0 0
    %918 = vmatpush1.bf16.xpose.msra.mxu0 0
    %919 = vmatprep.subr.bf16.mxu0 0
    %920 = vmatpush1.bf16.xpose.msra.mxu0 0
    %921 = vmatprep.subr.bf16.mxu0 0
    %922 = vmatpush1.bf16.xpose.msra.mxu0 0
    %923 = vmatprep.subr.bf16.mxu0 0
    %924 = vmatpush1.bf16.xpose.msra.mxu0 0
    %925 = vmatprep.subr.bf16.mxu0 0
    %926 = vmatpush1.bf16.xpose.msra.mxu0 0
    %927 = vmatprep.subr.bf16.mxu0 0
    %928 = vmatpush1.bf16.xpose.msra.mxu0 0
    %929 = vmatprep.subr.bf16.mxu0 0
    %930 = vmatpush1.bf16.xpose.msra.mxu0 0
    %931 = vmatprep.subr.bf16.mxu0 0
    %932 = vmatpush1.bf16.xpose.msra.mxu0 0
    %933 = vmatprep.subr.bf16.mxu0 0
    %934 = vmatpush1.bf16.xpose.msra.mxu0 0
    %935 = vmatprep.mubr.bf16.mxu0 0
    %936 = vmatmul.mubr.bf16.gmra.mrb[0].mxu0 %v892
    %v937 = vpop.f32.mrb[0].mxu0
    %v938 = vadd.f32 0.0, %v937
    %v939 = vpop.f32.mrb[0].mxu0
    %v940 = vpop.f32.mrb[0].mxu0
    %v941 = vadd.f32 0.0, %v940
    %v942 = vpop.f32.mrb[0].mxu0
    %943 = vmatprep.mubr.bf16.mxu0 0
    %944 = vmatmul.mubr.bf16.gmra.mrb[0].mxu0 %v895
    %v945 = vpop.f32.mrb[0].mxu0
    %v946 = vadd.f32 0.0, %v945
    %v947 = vpop.f32.mrb[0].mxu0
    %v948 = vpop.f32.mrb[0].mxu0
    %v949 = vadd.f32 0.0, %v948
    %v950 = vpop.f32.mrb[0].mxu0
    %951 = vdwg.mxu0
    %956 = vrot.lane.b32.xlu0 %v800, 32
    %v957 = vpop.permute.xlu0 %956
    %958 = vrot.lane.b32.xlu0 %v803, 32
    %v959 = vpop.permute.xlu0 %958
    %960 = vrot.lane.b32.xlu0 %v808, 32
    %v961 = vpop.permute.xlu0 %960
    %962 = vrot.lane.b32.xlu0 %v811, 32
    %v963 = vpop.permute.xlu0 %962
    %972 = vrot.lane.b32.xlu0 %v869, 64
    %v973 = vpop.permute.xlu0 %972
    %974 = vrot.lane.b32.xlu0 %v872, 64
    %v975 = vpop.permute.xlu0 %974
    %976 = vrot.lane.b32.xlu0 %v877, 64
    %v977 = vpop.permute.xlu0 %976
    %978 = vrot.lane.b32.xlu0 %v880, 64
    %v979 = vpop.permute.xlu0 %978
    %988 = vrot.lane.b32.xlu0 %v938, 96
    %v989 = vpop.permute.xlu0 %988
    %990 = vrot.lane.b32.xlu0 %v941, 96
    %v991 = vpop.permute.xlu0 %990
    %992 = vrot.lane.b32.xlu0 %v946, 96
    %v993 = vpop.permute.xlu0 %992
    %994 = vrot.lane.b32.xlu0 %v949, 96
    %v995 = vpop.permute.xlu0 %994
    %v1000 = vsel %vm679, %v727, %v957
    %v1001 = vsel %vm679, %v730, %v959
    %v1002 = vsel %vm679, %v735, %v961
    %v1003 = vsel %vm679, %v738, %v963
    %vm1004 = vcmask 523264
    %v1005 = vsel %vm1004, %v1000, %v973
    %v1006 = vsel %vm1004, %v1001, %v975
    %v1007 = vsel %vm1004, %v1002, %v977
    %v1008 = vsel %vm1004, %v1003, %v979
    %vm1009 = vcmask 785408
    %v1010 = vsel %vm1009, %v1005, %v989
    %v1011 = vsel %vm1009, %v1006, %v991
    %v1012 = vsel %vm1009, %v1007, %v993
    %v1013 = vsel %vm1009, %v1008, %v995
    %v1014 = vadd.f32 %v1010, %v370
    %v1015 = vadd.f32 %v1011, %v371
    %v1016 = vadd.f32 %v1012, %v372
    %v1017 = vadd.f32 %v1013, %v373
    %1018 = vmax.xlane.f32.xlu0 %v1014
    %v1019 = vpop.xlane.xlu0 %1018
    %1020 = vmax.xlane.f32.xlu0 %v1015
    %v1021 = vpop.xlane.xlu0 %1020
    %1022 = vmax.xlane.f32.xlu0 %v1016
    %v1023 = vpop.xlane.xlu0 %1022
    %1024 = vmax.xlane.f32.xlu0 %v1017
    %v1025 = vpop.xlane.xlu0 %1024
    %v1026 = vsub.f32 %v1014, %v1019
    %v1027 = vsub.f32 %v1015, %v1021
    %v1028 = vsub.f32 %v1016, %v1023
    %v1029 = vsub.f32 %v1017, %v1025
    %v1030 = vmul.f32 %v1026, 1.442695
    %v1031 = vpow.pop %v1030
    %v1032 = vmul.f32 %v1027, 1.442695
    %v1033 = vpow.pop %v1032
    %v1034 = vmul.f32 %v1028, 1.442695
    %v1035 = vpow.pop %v1034
    %v1036 = vmul.f32 %v1029, 1.442695
    %v1037 = vpow.pop %v1036
    %v1038 = vpack.c.bf16 %v1033, %v1031
    %v1039 = vpack.c.bf16 %v1037, %v1035
    %v1056 = vunpack.c.l.b16 %v374
    %v1057 = vunpack.c.l.b16 %v375
    %v1058 = vunpack.c.l.b16 %v376
    %v1059 = vunpack.c.l.b16 %v377
    %v1060 = vunpack.c.l.b16 %v378
    %v1061 = vunpack.c.l.b16 %v379
    %v1062 = vunpack.c.l.b16 %v380
    %v1063 = vunpack.c.l.b16 %v381
    %v1064 = vunpack.c.l.b16 %v382
    %v1065 = vunpack.c.l.b16 %v383
    %v1066 = vunpack.c.l.b16 %v384
    %v1067 = vunpack.c.l.b16 %v385
    %v1068 = vunpack.c.l.b16 %v386
    %v1069 = vunpack.c.l.b16 %v387
    %v1070 = vunpack.c.l.b16 %v388
    %v1071 = vunpack.c.l.b16 %v389
    %v1072 = vpack.c.b16 %v1057, %v1056
    %v1073 = vpack.c.b16 %v1059, %v1058
    %v1074 = vpack.c.b16 %v1061, %v1060
    %v1075 = vpack.c.b16 %v1063, %v1062
    %v1076 = vpack.c.b16 %v1065, %v1064
    %v1077 = vpack.c.b16 %v1067, %v1066
    %v1078 = vpack.c.b16 %v1069, %v1068
    %v1079 = vpack.c.b16 %v1071, %v1070
    %1088 = vmatprep.subr.bf16.mxu0 0
    %1089 = vmatpush1.bf16.msra.mxu0 %v1072
    %1090 = vmatprep.subr.bf16.mxu0 0
    %1091 = vmatpush1.bf16.msra.mxu0 %v1073
    %1092 = vmatprep.subr.bf16.mxu0 0
    %1093 = vmatpush1.bf16.msra.mxu0 %v1074
    %1094 = vmatprep.subr.bf16.mxu0 0
    %1095 = vmatpush1.bf16.msra.mxu0 %v1075
    %1096 = vmatprep.subr.bf16.mxu0 0
    %1097 = vmatpush1.bf16.msra.mxu0 %v1076
    %1098 = vmatprep.subr.bf16.mxu0 0
    %1099 = vmatpush1.bf16.msra.mxu0 %v1077
    %1100 = vmatprep.subr.bf16.mxu0 0
    %1101 = vmatpush1.bf16.msra.mxu0 %v1078
    %1102 = vmatprep.subr.bf16.mxu0 0
    %1103 = vmatpush1.bf16.msra.mxu0 %v1079
    %1104 = vmatprep.subr.bf16.mxu0 0
    %1105 = vmatpush1.bf16.msra.mxu0 0
    %1106 = vmatprep.subr.bf16.mxu0 0
    %1107 = vmatpush1.bf16.msra.mxu0 0
    %1108 = vmatprep.subr.bf16.mxu0 0
    %1109 = vmatpush1.bf16.msra.mxu0 0
    %1110 = vmatprep.subr.bf16.mxu0 0
    %1111 = vmatpush1.bf16.msra.mxu0 0
    %1112 = vmatprep.subr.bf16.mxu0 0
    %1113 = vmatpush1.bf16.msra.mxu0 0
    %1114 = vmatprep.subr.bf16.mxu0 0
    %1115 = vmatpush1.bf16.msra.mxu0 0
    %1116 = vmatprep.subr.bf16.mxu0 0
    %1117 = vmatpush1.bf16.msra.mxu0 0
    %1118 = vmatprep.subr.bf16.mxu0 0
    %1119 = vmatpush1.bf16.msra.mxu0 0
    %1120 = vmatprep.mubr.bf16.mxu0 0
    %1121 = vmatmul.mubr.bf16.gmra.mrb[0].mxu0 %v1038
    %v1122 = vpop.f32.mrb[0].mxu0
    %v1123 = vadd.f32 0.0, %v1122
    %v1124 = vpop.f32.mrb[0].mxu0
    %v1125 = vpop.f32.mrb[0].mxu0
    %v1126 = vadd.f32 0.0, %v1125
    %v1127 = vpop.f32.mrb[0].mxu0
    %1128 = vmatprep.mubr.bf16.mxu0 0
    %1129 = vmatmul.mubr.bf16.gmra.mrb[0].mxu0 %v1039
    %v1130 = vpop.f32.mrb[0].mxu0
    %v1131 = vadd.f32 0.0, %v1130
    %v1132 = vpop.f32.mrb[0].mxu0
    %v1133 = vpop.f32.mrb[0].mxu0
    %v1134 = vadd.f32 0.0, %v1133
    %v1135 = vpop.f32.mrb[0].mxu0
    %1136 = vdwg.mxu0
    %v1137 = vrcp.pop %v1123
    %v1138 = vrcp.pop %v1126
    %v1139 = vrcp.pop %v1131
    %v1140 = vrcp.pop %v1134
    %v1141 = vmul.f32 %v1031, %v1137
    %v1142 = vmul.f32 %v1033, %v1138
    %v1143 = vmul.f32 %v1035, %v1139
    %v1144 = vmul.f32 %v1037, %v1140
    %v1145 = vpack.c.bf16 %v1142, %v1141
    %v1146 = vpack.c.bf16 %v1144, %v1143
    %v1147 = vpack.c.bf16 %v660, %v657
    %v1148 = vpack.c.bf16 %v668, %v665
    %v1150 = vsel %vm679, %v1145, 0
    %v1153 = vsel %vm679, %v1146, 0
    %1155 = vmatprep.subr.bf16.mxu0 0
    %1156 = vmatpush1.bf16.msra.mxu0 %v1147
    %1157 = vmatprep.subr.bf16.mxu0 0
    %1158 = vmatpush1.bf16.msra.mxu0 %v1148
    %1159 = vmatprep.subr.bf16.mxu0 0
    %1160 = vmatpush1.bf16.msra.mxu0 0
    %1161 = vmatprep.subr.bf16.mxu0 0
    %1162 = vmatpush1.bf16.msra.mxu0 0
    %1163 = vmatprep.subr.bf16.mxu0 0
    %1164 = vmatpush1.bf16.msra.mxu0 0
    %1165 = vmatprep.subr.bf16.mxu0 0
    %1166 = vmatpush1.bf16.msra.mxu0 0
    %1167 = vmatprep.subr.bf16.mxu0 0
    %1168 = vmatpush1.bf16.msra.mxu0 0
    %1169 = vmatprep.subr.bf16.mxu0 0
    %1170 = vmatpush1.bf16.msra.mxu0 0
    %1171 = vmatprep.subr.bf16.mxu0 0
    %1172 = vmatpush1.bf16.msra.mxu0 0
    %1173 = vmatprep.subr.bf16.mxu0 0
    %1174 = vmatpush1.bf16.msra.mxu0 0
    %1175 = vmatprep.subr.bf16.mxu0 0
    %1176 = vmatpush1.bf16.msra.mxu0 0
    %1177 = vmatprep.subr.bf16.mxu0 0
    %1178 = vmatpush1.bf16.msra.mxu0 0
    %1179 = vmatprep.subr.bf16.mxu0 0
    %1180 = vmatpush1.bf16.msra.mxu0 0
    %1181 = vmatprep.subr.bf16.mxu0 0
    %1182 = vmatpush1.bf16.msra.mxu0 0
    %1183 = vmatprep.subr.bf16.mxu0 0
    %1184 = vmatpush1.bf16.msra.mxu0 0
    %1185 = vmatprep.subr.bf16.mxu0 0
    %1186 = vmatpush1.bf16.msra.mxu0 0
    %1187 = vmatprep.mubr.bf16.mxu0 0
    %1188 = vmatmul.mubr.bf16.gmra.mrb[0].mxu0 %v1150
    %v1189 = vpop.f32.mrb[0].mxu0
    %v1190 = vadd.f32 0.0, %v1189
    %v1191 = vpop.f32.mrb[0].mxu0
    %v1192 = vpop.f32.mrb[0].mxu0
    %v1193 = vadd.f32 0.0, %v1192
    %v1194 = vpop.f32.mrb[0].mxu0
    %1195 = vmatprep.mubr.bf16.mxu0 0
    %1196 = vmatmul.mubr.bf16.gmra.mrb[0].mxu0 %v1153
    %v1197 = vpop.f32.mrb[0].mxu0
    %v1198 = vadd.f32 0.0, %v1197
    %v1199 = vpop.f32.mrb[0].mxu0
    %v1200 = vpop.f32.mrb[0].mxu0
    %v1201 = vadd.f32 0.0, %v1200
    %v1202 = vpop.f32.mrb[0].mxu0
    %1203 = vdwg.mxu0
    %1206 = vrot.lane.b32.xlu0 %v1145, 96
    %v1207 = vpop.permute.xlu0 %1206
    %1208 = vrot.lane.b32.xlu0 %v1146, 96
    %v1209 = vpop.permute.xlu0 %1208
    %1212 = vrot.lane.b32.xlu0 %v1147, 96
    %v1213 = vpop.permute.xlu0 %1212
    %1214 = vrot.lane.b32.xlu0 %v1148, 96
    %v1215 = vpop.permute.xlu0 %1214
    %v1219 = vsel %vm679, %v1207, 0
    %v1222 = vsel %vm679, %v1209, 0
    %1224 = vmatprep.subr.bf16.mxu0 0
    %1225 = vmatpush1.bf16.msra.mxu0 %v1213
    %1226 = vmatprep.subr.bf16.mxu0 0
    %1227 = vmatpush1.bf16.msra.mxu0 %v1215
    %1228 = vmatprep.subr.bf16.mxu0 0
    %1229 = vmatpush1.bf16.msra.mxu0 0
    %1230 = vmatprep.subr.bf16.mxu0 0
    %1231 = vmatpush1.bf16.msra.mxu0 0
    %1232 = vmatprep.subr.bf16.mxu0 0
    %1233 = vmatpush1.bf16.msra.mxu0 0
    %1234 = vmatprep.subr.bf16.mxu0 0
    %1235 = vmatpush1.bf16.msra.mxu0 0
    %1236 = vmatprep.subr.bf16.mxu0 0
    %1237 = vmatpush1.bf16.msra.mxu0 0
    %1238 = vmatprep.subr.bf16.mxu0 0
    %1239 = vmatpush1.bf16.msra.mxu0 0
    %1240 = vmatprep.subr.bf16.mxu0 0
    %1241 = vmatpush1.bf16.msra.mxu0 0
    %1242 = vmatprep.subr.bf16.mxu0 0
    %1243 = vmatpush1.bf16.msra.mxu0 0
    %1244 = vmatprep.subr.bf16.mxu0 0
    %1245 = vmatpush1.bf16.msra.mxu0 0
    %1246 = vmatprep.subr.bf16.mxu0 0
    %1247 = vmatpush1.bf16.msra.mxu0 0
    %1248 = vmatprep.subr.bf16.mxu0 0
    %1249 = vmatpush1.bf16.msra.mxu0 0
    %1250 = vmatprep.subr.bf16.mxu0 0
    %1251 = vmatpush1.bf16.msra.mxu0 0
    %1252 = vmatprep.subr.bf16.mxu0 0
    %1253 = vmatpush1.bf16.msra.mxu0 0
    %1254 = vmatprep.subr.bf16.mxu0 0
    %1255 = vmatpush1.bf16.msra.mxu0 0
    %1256 = vmatprep.mubr.bf16.mxu0 0
    %1257 = vmatmul.mubr.bf16.gmra.mrb[0].mxu0 %v1219
    %v1258 = vpop.f32.mrb[0].mxu0
    %v1259 = vadd.f32 0.0, %v1258
    %v1260 = vpop.f32.mrb[0].mxu0
    %v1261 = vpop.f32.mrb[0].mxu0
    %v1262 = vadd.f32 0.0, %v1261
    %v1263 = vpop.f32.mrb[0].mxu0
    %1264 = vmatprep.mubr.bf16.mxu0 0
    %1265 = vmatmul.mubr.bf16.gmra.mrb[0].mxu0 %v1222
    %v1266 = vpop.f32.mrb[0].mxu0
    %v1267 = vadd.f32 0.0, %v1266
    %v1268 = vpop.f32.mrb[0].mxu0
    %v1269 = vpop.f32.mrb[0].mxu0
    %v1270 = vadd.f32 0.0, %v1269
    %v1271 = vpop.f32.mrb[0].mxu0
    %1272 = vdwg.mxu0
    %1273 = vrot.lane.b32.xlu0 %v1145, 64
    %v1274 = vpop.permute.xlu0 %1273
    %1275 = vrot.lane.b32.xlu0 %v1146, 64
    %v1276 = vpop.permute.xlu0 %1275
    %1277 = vrot.lane.b32.xlu0 %v1147, 64
    %v1278 = vpop.permute.xlu0 %1277
    %1279 = vrot.lane.b32.xlu0 %v1148, 64
    %v1280 = vpop.permute.xlu0 %1279
    %v1284 = vsel %vm679, %v1274, 0
    %v1287 = vsel %vm679, %v1276, 0
    %1289 = vmatprep.subr.bf16.mxu0 0
    %1290 = vmatpush1.bf16.msra.mxu0 %v1278
    %1291 = vmatprep.subr.bf16.mxu0 0
    %1292 = vmatpush1.bf16.msra.mxu0 %v1280
    %1293 = vmatprep.subr.bf16.mxu0 0
    %1294 = vmatpush1.bf16.msra.mxu0 0
    %1295 = vmatprep.subr.bf16.mxu0 0
    %1296 = vmatpush1.bf16.msra.mxu0 0
    %1297 = vmatprep.subr.bf16.mxu0 0
    %1298 = vmatpush1.bf16.msra.mxu0 0
    %1299 = vmatprep.subr.bf16.mxu0 0
    %1300 = vmatpush1.bf16.msra.mxu0 0
    %1301 = vmatprep.subr.bf16.mxu0 0
    %1302 = vmatpush1.bf16.msra.mxu0 0
    %1303 = vmatprep.subr.bf16.mxu0 0
    %1304 = vmatpush1.bf16.msra.mxu0 0
    %1305 = vmatprep.subr.bf16.mxu0 0
    %1306 = vmatpush1.bf16.msra.mxu0 0
    %1307 = vmatprep.subr.bf16.mxu0 0
    %1308 = vmatpush1.bf16.msra.mxu0 0
    %1309 = vmatprep.subr.bf16.mxu0 0
    %1310 = vmatpush1.bf16.msra.mxu0 0
    %1311 = vmatprep.subr.bf16.mxu0 0
    %1312 = vmatpush1.bf16.msra.mxu0 0
    %1313 = vmatprep.subr.bf16.mxu0 0
    %1314 = vmatpush1.bf16.msra.mxu0 0
    %1315 = vmatprep.subr.bf16.mxu0 0
    %1316 = vmatpush1.bf16.msra.mxu0 0
    %1317 = vmatprep.subr.bf16.mxu0 0
    %1318 = vmatpush1.bf16.msra.mxu0 0
    %1319 = vmatprep.subr.bf16.mxu0 0
    %1320 = vmatpush1.bf16.msra.mxu0 0
    %1321 = vmatprep.mubr.bf16.mxu0 0
    %1322 = vmatmul.mubr.bf16.gmra.mrb[0].mxu0 %v1284
    %v1323 = vpop.f32.mrb[0].mxu0
    %v1324 = vadd.f32 0.0, %v1323
    %v1325 = vpop.f32.mrb[0].mxu0
    %v1326 = vpop.f32.mrb[0].mxu0
    %v1327 = vadd.f32 0.0, %v1326
    %v1328 = vpop.f32.mrb[0].mxu0
    %1329 = vmatprep.mubr.bf16.mxu0 0
    %1330 = vmatmul.mubr.bf16.gmra.mrb[0].mxu0 %v1287
    %v1331 = vpop.f32.mrb[0].mxu0
    %v1332 = vadd.f32 0.0, %v1331
    %v1333 = vpop.f32.mrb[0].mxu0
    %v1334 = vpop.f32.mrb[0].mxu0
    %v1335 = vadd.f32 0.0, %v1334
    %v1336 = vpop.f32.mrb[0].mxu0
    %1337 = vdwg.mxu0
    %1338 = vrot.lane.b32.xlu0 %v1145, 32
    %v1339 = vpop.permute.xlu0 %1338
    %1340 = vrot.lane.b32.xlu0 %v1146, 32
    %v1341 = vpop.permute.xlu0 %1340
    %1342 = vrot.lane.b32.xlu0 %v1147, 32
    %v1343 = vpop.permute.xlu0 %1342
    %1344 = vrot.lane.b32.xlu0 %v1148, 32
    %v1345 = vpop.permute.xlu0 %1344
    %v1349 = vsel %vm679, %v1339, 0
    %v1352 = vsel %vm679, %v1341, 0
    %1354 = vmatprep.subr.bf16.mxu0 0
    %1355 = vmatpush1.bf16.msra.mxu0 %v1343
    %1356 = vmatprep.subr.bf16.mxu0 0
    %1357 = vmatpush1.bf16.msra.mxu0 %v1345
    %1358 = vmatprep.subr.bf16.mxu0 0
    %1359 = vmatpush1.bf16.msra.mxu0 0
    %1360 = vmatprep.subr.bf16.mxu0 0
    %1361 = vmatpush1.bf16.msra.mxu0 0
    %1362 = vmatprep.subr.bf16.mxu0 0
    %1363 = vmatpush1.bf16.msra.mxu0 0
    %1364 = vmatprep.subr.bf16.mxu0 0
    %1365 = vmatpush1.bf16.msra.mxu0 0
    %1366 = vmatprep.subr.bf16.mxu0 0
    %1367 = vmatpush1.bf16.msra.mxu0 0
    %1368 = vmatprep.subr.bf16.mxu0 0
    %1369 = vmatpush1.bf16.msra.mxu0 0
    %1370 = vmatprep.subr.bf16.mxu0 0
    %1371 = vmatpush1.bf16.msra.mxu0 0
    %1372 = vmatprep.subr.bf16.mxu0 0
    %1373 = vmatpush1.bf16.msra.mxu0 0
    %1374 = vmatprep.subr.bf16.mxu0 0
    %1375 = vmatpush1.bf16.msra.mxu0 0
    %1376 = vmatprep.subr.bf16.mxu0 0
    %1377 = vmatpush1.bf16.msra.mxu0 0
    %1378 = vmatprep.subr.bf16.mxu0 0
    %1379 = vmatpush1.bf16.msra.mxu0 0
    %1380 = vmatprep.subr.bf16.mxu0 0
    %1381 = vmatpush1.bf16.msra.mxu0 0
    %1382 = vmatprep.subr.bf16.mxu0 0
    %1383 = vmatpush1.bf16.msra.mxu0 0
    %1384 = vmatprep.subr.bf16.mxu0 0
    %1385 = vmatpush1.bf16.msra.mxu0 0
    %1386 = vmatprep.mubr.bf16.mxu0 0
    %1387 = vmatmul.mubr.bf16.gmra.mrb[0].mxu0 %v1349
    %v1388 = vpop.f32.mrb[0].mxu0
    %v1389 = vadd.f32 0.0, %v1388
    %v1390 = vpop.f32.mrb[0].mxu0
    %v1391 = vpop.f32.mrb[0].mxu0
    %v1392 = vadd.f32 0.0, %v1391
    %v1393 = vpop.f32.mrb[0].mxu0
    %1394 = vmatprep.mubr.bf16.mxu0 0
    %1395 = vmatmul.mubr.bf16.gmra.mrb[0].mxu0 %v1352
    %v1396 = vpop.f32.mrb[0].mxu0
    %v1397 = vadd.f32 0.0, %v1396
    %v1398 = vpop.f32.mrb[0].mxu0
    %v1399 = vpop.f32.mrb[0].mxu0
    %v1400 = vadd.f32 0.0, %v1399
    %v1401 = vpop.f32.mrb[0].mxu0
    %1402 = vdwg.mxu0
    %1407 = vrot.lane.b32.xlu0 %v1259, 32
    %v1408 = vpop.permute.xlu0 %1407
    %1409 = vrot.lane.b32.xlu0 %v1262, 32
    %v1410 = vpop.permute.xlu0 %1409
    %1411 = vrot.lane.b32.xlu0 %v1267, 32
    %v1412 = vpop.permute.xlu0 %1411
    %1413 = vrot.lane.b32.xlu0 %v1270, 32
    %v1414 = vpop.permute.xlu0 %1413
    %1423 = vrot.lane.b32.xlu0 %v1324, 64
    %v1424 = vpop.permute.xlu0 %1423
    %1425 = vrot.lane.b32.xlu0 %v1327, 64
    %v1426 = vpop.permute.xlu0 %1425
    %1427 = vrot.lane.b32.xlu0 %v1332, 64
    %v1428 = vpop.permute.xlu0 %1427
    %1429 = vrot.lane.b32.xlu0 %v1335, 64
    %v1430 = vpop.permute.xlu0 %1429
    %1439 = vrot.lane.b32.xlu0 %v1389, 96
    %v1440 = vpop.permute.xlu0 %1439
    %1441 = vrot.lane.b32.xlu0 %v1392, 96
    %v1442 = vpop.permute.xlu0 %1441
    %1443 = vrot.lane.b32.xlu0 %v1397, 96
    %v1444 = vpop.permute.xlu0 %1443
    %1445 = vrot.lane.b32.xlu0 %v1400, 96
    %v1446 = vpop.permute.xlu0 %1445
    %v1451 = vsel %vm679, %v1190, %v1408
    %v1452 = vsel %vm679, %v1193, %v1410
    %v1453 = vsel %vm679, %v1198, %v1412
    %v1454 = vsel %vm679, %v1201, %v1414
    %v1455 = vsel %vm1004, %v1451, %v1424
    %v1456 = vsel %vm1004, %v1452, %v1426
    %v1457 = vsel %vm1004, %v1453, %v1428
    %v1458 = vsel %vm1004, %v1454, %v1430
    %v1459 = vsel %vm1009, %v1455, %v1440
    %v1460 = vsel %vm1009, %v1456, %v1442
    %v1461 = vsel %vm1009, %v1457, %v1444
    %v1462 = vsel %vm1009, %v1458, %v1446
    %v1463 = vld [vmem:[%s10] sm:$0xf]
    %v1464 = vld [vmem:[%s10 + $0x4] sm:$0xf]
    %v1465 = vld [vmem:[%s10 + $0x8] sm:$0xf]
    %v1466 = vld [vmem:[%s10 + $0xc] sm:$0xf]
    %v1467 = vld [vmem:[%s10 + $0x10] sm:$0xf]
    %v1468 = vld [vmem:[%s10 + $0x14] sm:$0xf]
    %v1469 = vld [vmem:[%s10 + $0x18] sm:$0xf]
    %v1470 = vld [vmem:[%s10 + $0x1c] sm:$0xf]
    %v1471 = vld [vmem:[%s10 + $0x20] sm:$0xf]
    %v1472 = vld [vmem:[%s10 + $0x24] sm:$0xf]
    %v1473 = vld [vmem:[%s10 + $0x28] sm:$0xf]
    %v1474 = vld [vmem:[%s10 + $0x2c] sm:$0xf]
    %v1475 = vld [vmem:[%s10 + $0x30] sm:$0xf]
    %v1476 = vld [vmem:[%s10 + $0x34] sm:$0xf]
    %v1477 = vld [vmem:[%s10 + $0x38] sm:$0xf]
    %v1478 = vld [vmem:[%s10 + $0x3c] sm:$0xf]
    %v1479 = vpack.c.bf16 %v1460, %v1459
    %v1480 = vpack.c.bf16 %v1462, %v1461
    %v1497 = vunpack.c.l.b16 %v1463
    %v1498 = vunpack.c.l.b16 %v1464
    %v1499 = vunpack.c.l.b16 %v1465
    %v1500 = vunpack.c.l.b16 %v1466
    %v1501 = vunpack.c.l.b16 %v1467
    %v1502 = vunpack.c.l.b16 %v1468
    %v1503 = vunpack.c.l.b16 %v1469
    %v1504 = vunpack.c.l.b16 %v1470
    %v1505 = vunpack.c.l.b16 %v1471
    %v1506 = vunpack.c.l.b16 %v1472
    %v1507 = vunpack.c.l.b16 %v1473
    %v1508 = vunpack.c.l.b16 %v1474
    %v1509 = vunpack.c.l.b16 %v1475
    %v1510 = vunpack.c.l.b16 %v1476
    %v1511 = vunpack.c.l.b16 %v1477
    %v1512 = vunpack.c.l.b16 %v1478
    %v1513 = vpack.c.b16 %v1498, %v1497
    %v1514 = vpack.c.b16 %v1500, %v1499
    %v1515 = vpack.c.b16 %v1502, %v1501
    %v1516 = vpack.c.b16 %v1504, %v1503
    %v1517 = vpack.c.b16 %v1506, %v1505
    %v1518 = vpack.c.b16 %v1508, %v1507
    %v1519 = vpack.c.b16 %v1510, %v1509
    %v1520 = vpack.c.b16 %v1512, %v1511
    %1529 = vmatprep.subr.bf16.mxu0 0
    %1530 = vmatpush1.bf16.msra.mxu0 %v1513
    %1531 = vmatprep.subr.bf16.mxu0 0
    %1532 = vmatpush1.bf16.msra.mxu0 %v1514
    %1533 = vmatprep.subr.bf16.mxu0 0
    %1534 = vmatpush1.bf16.msra.mxu0 %v1515
    %1535 = vmatprep.subr.bf16.mxu0 0
    %1536 = vmatpush1.bf16.msra.mxu0 %v1516
    %1537 = vmatprep.subr.bf16.mxu0 0
    %1538 = vmatpush1.bf16.msra.mxu0 %v1517
    %1539 = vmatprep.subr.bf16.mxu0 0
    %1540 = vmatpush1.bf16.msra.mxu0 %v1518
    %1541 = vmatprep.subr.bf16.mxu0 0
    %1542 = vmatpush1.bf16.msra.mxu0 %v1519
    %1543 = vmatprep.subr.bf16.mxu0 0
    %1544 = vmatpush1.bf16.msra.mxu0 %v1520
    %1545 = vmatprep.subr.bf16.mxu0 0
    %1546 = vmatpush1.bf16.msra.mxu0 0
    %1547 = vmatprep.subr.bf16.mxu0 0
    %1548 = vmatpush1.bf16.msra.mxu0 0
    %1549 = vmatprep.subr.bf16.mxu0 0
    %1550 = vmatpush1.bf16.msra.mxu0 0
    %1551 = vmatprep.subr.bf16.mxu0 0
    %1552 = vmatpush1.bf16.msra.mxu0 0
    %1553 = vmatprep.subr.bf16.mxu0 0
    %1554 = vmatpush1.bf16.msra.mxu0 0
    %1555 = vmatprep.subr.bf16.mxu0 0
    %1556 = vmatpush1.bf16.msra.mxu0 0
    %1557 = vmatprep.subr.bf16.mxu0 0
    %1558 = vmatpush1.bf16.msra.mxu0 0
    %1559 = vmatprep.subr.bf16.mxu0 0
    %1560 = vmatpush1.bf16.msra.mxu0 0
    %1561 = vmatprep.mubr.bf16.mxu0 0
    %1562 = vmatmul.mubr.bf16.gmra.mrb[0].mxu0 %v1479
    %v1563 = vpop.f32.mrb[0].mxu0
    %v1564 = vadd.f32 0.0, %v1563
    %v1565 = vpop.f32.mrb[0].mxu0
    %v1566 = vpop.f32.mrb[0].mxu0
    %v1567 = vadd.f32 0.0, %v1566
    %v1568 = vpop.f32.mrb[0].mxu0
    %1569 = vmatprep.mubr.bf16.mxu0 0
    %1570 = vmatmul.mubr.bf16.gmra.mrb[0].mxu0 %v1480
    %v1571 = vpop.f32.mrb[0].mxu0
    %v1572 = vadd.f32 0.0, %v1571
    %v1573 = vpop.f32.mrb[0].mxu0
    %v1574 = vpop.f32.mrb[0].mxu0
    %v1575 = vadd.f32 0.0, %v1574
    %v1576 = vpop.f32.mrb[0].mxu0
    %1577 = vdwg.mxu0
    %v1578 = vadd.f32 %v366, %v1564
    %v1579 = vadd.f32 %v367, %v1567
    %v1580 = vadd.f32 %v368, %v1572
    %v1581 = vadd.f32 %v369, %v1575
    %v1582 = vld [vmem:[%s11] sm:$0x1]
    %v1584 = vlaneseq
    %v1585 = vshrl.u32 %v1584, 7
    %v1586 = vsub.s32 0, %v1585
    %v1587 = vrot.slane %v1582, %v1586
    %v1589 = vadd.f32 %v1578, %v1587
    %v1590 = vadd.f32 %v1579, %v1587
    %v1591 = vadd.f32 %v1580, %v1587
    %v1592 = vadd.f32 %v1581, %v1587
    %v1593 = vld [vmem:[%s12] sm:$0x1]
    %v1594 = vld [vmem:[%s13] sm:$0x1]
    %1595 = vadd.xlane.f32.xlu0 %v1589
    %v1596 = vpop.xlane.xlu0 %1595
    %1597 = vadd.xlane.f32.xlu0 %v1590
    %v1598 = vpop.xlane.xlu0 %1597
    %1599 = vadd.xlane.f32.xlu0 %v1591
    %v1600 = vpop.xlane.xlu0 %1599
    %1601 = vadd.xlane.f32.xlu0 %v1592
    %v1602 = vpop.xlane.xlu0 %1601
    %v1603 = vmul.f32 %v1596, %v313
    %v1604 = vmul.f32 %v1598, %v313
    %v1605 = vmul.f32 %v1600, %v313
    %v1606 = vmul.f32 %v1602, %v313
    %v1607 = vsub.f32 %v1589, %v1603
    %v1608 = vsub.f32 %v1590, %v1604
    %v1609 = vsub.f32 %v1591, %v1605
    %v1610 = vsub.f32 %v1592, %v1606
    %v1611 = vmul.f32 %v1607, %v1607
    %v1612 = vmul.f32 %v1608, %v1608
    %v1613 = vmul.f32 %v1609, %v1609
    %v1614 = vmul.f32 %v1610, %v1610
    %1615 = vadd.xlane.f32.xlu0 %v1611
    %v1616 = vpop.xlane.xlu0 %1615
    %1617 = vadd.xlane.f32.xlu0 %v1612
    %v1618 = vpop.xlane.xlu0 %1617
    %1619 = vadd.xlane.f32.xlu0 %v1613
    %v1620 = vpop.xlane.xlu0 %1619
    %1621 = vadd.xlane.f32.xlu0 %v1614
    %v1622 = vpop.xlane.xlu0 %1621
    %v1623 = vmul.f32 %v1616, %v313
    %v1624 = vmul.f32 %v1618, %v313
    %v1625 = vmul.f32 %v1620, %v313
    %v1626 = vmul.f32 %v1622, %v313
    %v1627 = vadd.f32 %v1623, 1e-12
    %v1628 = vadd.f32 %v1624, 1e-12
    %v1629 = vadd.f32 %v1625, 1e-12
    %v1630 = vadd.f32 %v1626, 1e-12
    %v1631 = vrsqrt.pop %v1627
    %v1632 = vrsqrt.pop %v1628
    %v1633 = vrsqrt.pop %v1629
    %v1634 = vrsqrt.pop %v1630
    %v1635 = vmul.f32 %v1607, %v1631
    %v1636 = vmul.f32 %v1608, %v1632
    %v1637 = vmul.f32 %v1609, %v1633
    %v1638 = vmul.f32 %v1610, %v1634
    %v1640 = vlaneseq
    %v1641 = vshrl.u32 %v1640, 7
    %v1642 = vsub.s32 0, %v1641
    %v1643 = vrot.slane %v1593, %v1642
    %v1645 = vmul.f32 %v1635, %v1643
    %v1646 = vmul.f32 %v1636, %v1643
    %v1647 = vmul.f32 %v1637, %v1643
    %v1648 = vmul.f32 %v1638, %v1643
    %v1650 = vlaneseq
    %v1651 = vshrl.u32 %v1650, 7
    %v1652 = vsub.s32 0, %v1651
    %v1653 = vrot.slane %v1594, %v1652
    %v1655 = vadd.f32 %v1645, %v1653
    %v1656 = vadd.f32 %v1646, %v1653
    %v1657 = vadd.f32 %v1647, %v1653
    %v1658 = vadd.f32 %v1648, %v1653
    %v1659 = vld [vmem:[%s14] sm:$0xff]
    %v1660 = vld [vmem:[%s14 + $0x8] sm:$0xff]
    %v1661 = vld [vmem:[%s14 + $0x10] sm:$0xff]
    %v1662 = vld [vmem:[%s14 + $0x18] sm:$0xff]
    %v1663 = vld [vmem:[%s14 + $0x20] sm:$0xff]
    %v1664 = vld [vmem:[%s14 + $0x28] sm:$0xff]
    %v1665 = vld [vmem:[%s14 + $0x30] sm:$0xff]
    %v1666 = vld [vmem:[%s14 + $0x38] sm:$0xff]
    %v1667 = vld [vmem:[%s14 + $0x40] sm:$0xff]
    %v1668 = vld [vmem:[%s14 + $0x48] sm:$0xff]
    %v1669 = vld [vmem:[%s14 + $0x50] sm:$0xff]
    %v1670 = vld [vmem:[%s14 + $0x58] sm:$0xff]
    %v1671 = vld [vmem:[%s14 + $0x60] sm:$0xff]
    %v1672 = vld [vmem:[%s14 + $0x68] sm:$0xff]
    %v1673 = vld [vmem:[%s14 + $0x70] sm:$0xff]
    %v1674 = vld [vmem:[%s14 + $0x78] sm:$0xff]
    %v1675 = vpack.c.bf16 %v1656, %v1655
    %v1676 = vpack.c.bf16 %v1658, %v1657
    %v1677 = vld [vmem:[%s15] sm:$0x3]
    %v1679 = vlaneseq
    %v1680 = vshrl.u32 %v1679, 7
    %v1681 = vsub.s32 0, %v1680
    %v1682 = vrot.slane %v1677, %v1681
    %v1683 = vlaneseq
    %v1684 = vshrl.u32 %v1683, 7
    %v1685 = vsub.s32 1, %v1684
    %v1686 = vrot.slane %v1677, %v1685
    %v1705 = vunpack.c.l.b16 %v1659
    %v1706 = vunpack.c.h.b16 %v1659
    %v1707 = vunpack.c.l.b16 %v1660
    %v1708 = vunpack.c.h.b16 %v1660
    %v1709 = vunpack.c.l.b16 %v1661
    %v1710 = vunpack.c.h.b16 %v1661
    %v1711 = vunpack.c.l.b16 %v1662
    %v1712 = vunpack.c.h.b16 %v1662
    %v1713 = vunpack.c.l.b16 %v1663
    %v1714 = vunpack.c.h.b16 %v1663
    %v1715 = vunpack.c.l.b16 %v1664
    %v1716 = vunpack.c.h.b16 %v1664
    %v1717 = vunpack.c.l.b16 %v1665
    %v1718 = vunpack.c.h.b16 %v1665
    %v1719 = vunpack.c.l.b16 %v1666
    %v1720 = vunpack.c.h.b16 %v1666
    %v1721 = vunpack.c.l.b16 %v1667
    %v1722 = vunpack.c.h.b16 %v1667
    %v1723 = vunpack.c.l.b16 %v1668
    %v1724 = vunpack.c.h.b16 %v1668
    %v1725 = vunpack.c.l.b16 %v1669
    %v1726 = vunpack.c.h.b16 %v1669
    %v1727 = vunpack.c.l.b16 %v1670
    %v1728 = vunpack.c.h.b16 %v1670
    %v1729 = vunpack.c.l.b16 %v1671
    %v1730 = vunpack.c.h.b16 %v1671
    %v1731 = vunpack.c.l.b16 %v1672
    %v1732 = vunpack.c.h.b16 %v1672
    %v1733 = vunpack.c.l.b16 %v1673
    %v1734 = vunpack.c.h.b16 %v1673
    %v1735 = vunpack.c.l.b16 %v1674
    %v1736 = vunpack.c.h.b16 %v1674
    %v1737 = vpack.c.b16 %v1707, %v1705
    %v1738 = vpack.c.b16 %v1708, %v1706
    %v1739 = vpack.c.b16 %v1711, %v1709
    %v1740 = vpack.c.b16 %v1712, %v1710
    %v1741 = vpack.c.b16 %v1715, %v1713
    %v1742 = vpack.c.b16 %v1716, %v1714
    %v1743 = vpack.c.b16 %v1719, %v1717
    %v1744 = vpack.c.b16 %v1720, %v1718
    %v1745 = vpack.c.b16 %v1723, %v1721
    %v1746 = vpack.c.b16 %v1724, %v1722
    %v1747 = vpack.c.b16 %v1727, %v1725
    %v1748 = vpack.c.b16 %v1728, %v1726
    %v1749 = vpack.c.b16 %v1731, %v1729
    %v1750 = vpack.c.b16 %v1732, %v1730
    %v1751 = vpack.c.b16 %v1735, %v1733
    %v1752 = vpack.c.b16 %v1736, %v1734
    %1769 = vmatprep.subr.bf16.mxu0 %v1738
    %1770 = vmatpush1.bf16.msra.mxu0 %v1737
    %1771 = vmatprep.subr.bf16.mxu0 %v1740
    %1772 = vmatpush1.bf16.msra.mxu0 %v1739
    %1773 = vmatprep.subr.bf16.mxu0 %v1742
    %1774 = vmatpush1.bf16.msra.mxu0 %v1741
    %1775 = vmatprep.subr.bf16.mxu0 %v1744
    %1776 = vmatpush1.bf16.msra.mxu0 %v1743
    %1777 = vmatprep.subr.bf16.mxu0 %v1746
    %1778 = vmatpush1.bf16.msra.mxu0 %v1745
    %1779 = vmatprep.subr.bf16.mxu0 %v1748
    %1780 = vmatpush1.bf16.msra.mxu0 %v1747
    %1781 = vmatprep.subr.bf16.mxu0 %v1750
    %1782 = vmatpush1.bf16.msra.mxu0 %v1749
    %1783 = vmatprep.subr.bf16.mxu0 %v1752
    %1784 = vmatpush1.bf16.msra.mxu0 %v1751
    %1785 = vmatprep.subr.bf16.mxu0 0
    %1786 = vmatpush1.bf16.msra.mxu0 0
    %1787 = vmatprep.subr.bf16.mxu0 0
    %1788 = vmatpush1.bf16.msra.mxu0 0
    %1789 = vmatprep.subr.bf16.mxu0 0
    %1790 = vmatpush1.bf16.msra.mxu0 0
    %1791 = vmatprep.subr.bf16.mxu0 0
    %1792 = vmatpush1.bf16.msra.mxu0 0
    %1793 = vmatprep.subr.bf16.mxu0 0
    %1794 = vmatpush1.bf16.msra.mxu0 0
    %1795 = vmatprep.subr.bf16.mxu0 0
    %1796 = vmatpush1.bf16.msra.mxu0 0
    %1797 = vmatprep.subr.bf16.mxu0 0
    %1798 = vmatpush1.bf16.msra.mxu0 0
    %1799 = vmatprep.subr.bf16.mxu0 0
    %1800 = vmatpush1.bf16.msra.mxu0 0
    %1801 = vmatprep.mubr.bf16.mxu0 0
    %1802 = vmatmul.mubr.bf16.gmra.mrb[0].mxu0 %v1675
    %v1803 = vpop.f32.mrb[0].mxu0
    %v1804 = vadd.f32 %v1682, %v1803
    %v1805 = vpop.f32.mrb[0].mxu0
    %v1806 = vadd.f32 %v1686, %v1805
    %v1807 = vpop.f32.mrb[0].mxu0
    %v1808 = vadd.f32 %v1682, %v1807
    %v1809 = vpop.f32.mrb[0].mxu0
    %v1810 = vadd.f32 %v1686, %v1809
    %1811 = vmatprep.mubr.bf16.mxu0 0
    %1812 = vmatmul.mubr.bf16.gmra.mrb[0].mxu0 %v1676
    %v1813 = vpop.f32.mrb[0].mxu0
    %v1814 = vadd.f32 %v1682, %v1813
    %v1815 = vpop.f32.mrb[0].mxu0
    %v1816 = vadd.f32 %v1686, %v1815
    %v1817 = vpop.f32.mrb[0].mxu0
    %v1818 = vadd.f32 %v1682, %v1817
    %v1819 = vpop.f32.mrb[0].mxu0
    %v1820 = vadd.f32 %v1686, %v1819
    %1821 = vdwg.mxu0
    %v1822 = vmul.f32 %v1804, 0.5
    %v1823 = vmul.f32 %v1806, 0.5
    %v1824 = vmul.f32 %v1808, 0.5
    %v1825 = vmul.f32 %v1810, 0.5
    %v1826 = vmul.f32 %v1814, 0.5
    %v1827 = vmul.f32 %v1816, 0.5
    %v1828 = vmul.f32 %v1818, 0.5
    %v1829 = vmul.f32 %v1820, 0.5
    %v1830 = vmul.f32 %v1804, 0.044715
    %v1831 = vmul.f32 %v1806, 0.044715
    %v1832 = vmul.f32 %v1808, 0.044715
    %v1833 = vmul.f32 %v1810, 0.044715
    %v1834 = vmul.f32 %v1814, 0.044715
    %v1835 = vmul.f32 %v1816, 0.044715
    %v1836 = vmul.f32 %v1818, 0.044715
    %v1837 = vmul.f32 %v1820, 0.044715
    %v1838 = vmul.f32 %v1830, %v1804
    %v1839 = vmul.f32 %v1831, %v1806
    %v1840 = vmul.f32 %v1832, %v1808
    %v1841 = vmul.f32 %v1833, %v1810
    %v1842 = vmul.f32 %v1834, %v1814
    %v1843 = vmul.f32 %v1835, %v1816
    %v1844 = vmul.f32 %v1836, %v1818
    %v1845 = vmul.f32 %v1837, %v1820
    %v1846 = vmul.f32 %v1838, %v1804
    %v1847 = vmul.f32 %v1839, %v1806
    %v1848 = vmul.f32 %v1840, %v1808
    %v1849 = vmul.f32 %v1841, %v1810
    %v1850 = vmul.f32 %v1842, %v1814
    %v1851 = vmul.f32 %v1843, %v1816
    %v1852 = vmul.f32 %v1844, %v1818
    %v1853 = vmul.f32 %v1845, %v1820
    %v1854 = vadd.f32 %v1804, %v1846
    %v1855 = vadd.f32 %v1806, %v1847
    %v1856 = vadd.f32 %v1808, %v1848
    %v1857 = vadd.f32 %v1810, %v1849
    %v1858 = vadd.f32 %v1814, %v1850
    %v1859 = vadd.f32 %v1816, %v1851
    %v1860 = vadd.f32 %v1818, %v1852
    %v1861 = vadd.f32 %v1820, %v1853
    %v1862 = vmul.f32 %v1854, 0.7978846
    %v1863 = vmul.f32 %v1855, 0.7978846
    %v1864 = vmul.f32 %v1856, 0.7978846
    %v1865 = vmul.f32 %v1857, 0.7978846
    %v1866 = vmul.f32 %v1858, 0.7978846
    %v1867 = vmul.f32 %v1859, 0.7978846
    %v1868 = vmul.f32 %v1860, 0.7978846
    %v1869 = vmul.f32 %v1861, 0.7978846
    %v1870 = vtanh.pop %v1862
    %v1871 = vtanh.pop %v1863
    %v1872 = vtanh.pop %v1864
    %v1873 = vtanh.pop %v1865
    %v1874 = vtanh.pop %v1866
    %v1875 = vtanh.pop %v1867
    %v1876 = vtanh.pop %v1868
    %v1877 = vtanh.pop %v1869
    %v1878 = vadd.f32 %v1870, 1.0
    %v1879 = vadd.f32 %v1871, 1.0
    %v1880 = vadd.f32 %v1872, 1.0
    %v1881 = vadd.f32 %v1873, 1.0
    %v1882 = vadd.f32 %v1874, 1.0
    %v1883 = vadd.f32 %v1875, 1.0
    %v1884 = vadd.f32 %v1876, 1.0
    %v1885 = vadd.f32 %v1877, 1.0
    %v1886 = vmul.f32 %v1822, %v1878
    %v1887 = vmul.f32 %v1823, %v1879
    %v1888 = vmul.f32 %v1824, %v1880
    %v1889 = vmul.f32 %v1825, %v1881
    %v1890 = vmul.f32 %v1826, %v1882
    %v1891 = vmul.f32 %v1827, %v1883
    %v1892 = vmul.f32 %v1828, %v1884
    %v1893 = vmul.f32 %v1829, %v1885
    %v1894 = vld [vmem:[%s16] sm:$0xf]
    %v1895 = vld [vmem:[%s16 + $0x4] sm:$0xf]
    %v1896 = vld [vmem:[%s16 + $0x8] sm:$0xf]
    %v1897 = vld [vmem:[%s16 + $0xc] sm:$0xf]
    %v1898 = vld [vmem:[%s16 + $0x10] sm:$0xf]
    %v1899 = vld [vmem:[%s16 + $0x14] sm:$0xf]
    %v1900 = vld [vmem:[%s16 + $0x18] sm:$0xf]
    %v1901 = vld [vmem:[%s16 + $0x1c] sm:$0xf]
    %v1902 = vld [vmem:[%s16 + $0x20] sm:$0xf]
    %v1903 = vld [vmem:[%s16 + $0x24] sm:$0xf]
    %v1904 = vld [vmem:[%s16 + $0x28] sm:$0xf]
    %v1905 = vld [vmem:[%s16 + $0x2c] sm:$0xf]
    %v1906 = vld [vmem:[%s16 + $0x30] sm:$0xf]
    %v1907 = vld [vmem:[%s16 + $0x34] sm:$0xf]
    %v1908 = vld [vmem:[%s16 + $0x38] sm:$0xf]
    %v1909 = vld [vmem:[%s16 + $0x3c] sm:$0xf]
    %v1910 = vld [vmem:[%s16 + $0x40] sm:$0xf]
    %v1911 = vld [vmem:[%s16 + $0x44] sm:$0xf]
    %v1912 = vld [vmem:[%s16 + $0x48] sm:$0xf]
    %v1913 = vld [vmem:[%s16 + $0x4c] sm:$0xf]
    %v1914 = vld [vmem:[%s16 + $0x50] sm:$0xf]
    %v1915 = vld [vmem:[%s16 + $0x54] sm:$0xf]
    %v1916 = vld [vmem:[%s16 + $0x58] sm:$0xf]
    %v1917 = vld [vmem:[%s16 + $0x5c] sm:$0xf]
    %v1918 = vld [vmem:[%s16 + $0x60] sm:$0xf]
    %v1919 = vld [vmem:[%s16 + $0x64] sm:$0xf]
    %v1920 = vld [vmem:[%s16 + $0x68] sm:$0xf]
    %v1921 = vld [vmem:[%s16 + $0x6c] sm:$0xf]
    %v1922 = vld [vmem:[%s16 + $0x70] sm:$0xf]
    %v1923 = vld [vmem:[%s16 + $0x74] sm:$0xf]
    %v1924 = vld [vmem:[%s16 + $0x78] sm:$0xf]
    %v1925 = vld [vmem:[%s16 + $0x7c] sm:$0xf]
    %v1926 = vpack.c.bf16 %v1888, %v1886
    %v1927 = vpack.c.bf16 %v1889, %v1887
    %v1928 = vpack.c.bf16 %v1892, %v1890
    %v1929 = vpack.c.bf16 %v1893, %v1891
    %v1962 = vunpack.c.l.b16 %v1894
    %v1963 = vunpack.c.l.b16 %v1895
    %v1964 = vunpack.c.l.b16 %v1896
    %v1965 = vunpack.c.l.b16 %v1897
    %v1966 = vunpack.c.l.b16 %v1898
    %v1967 = vunpack.c.l.b16 %v1899
    %v1968 = vunpack.c.l.b16 %v1900
    %v1969 = vunpack.c.l.b16 %v1901
    %v1970 = vunpack.c.l.b16 %v1902
    %v1971 = vunpack.c.l.b16 %v1903
    %v1972 = vunpack.c.l.b16 %v1904
    %v1973 = vunpack.c.l.b16 %v1905
    %v1974 = vunpack.c.l.b16 %v1906
    %v1975 = vunpack.c.l.b16 %v1907
    %v1976 = vunpack.c.l.b16 %v1908
    %v1977 = vunpack.c.l.b16 %v1909
    %v1978 = vunpack.c.l.b16 %v1910
    %v1979 = vunpack.c.l.b16 %v1911
    %v1980 = vunpack.c.l.b16 %v1912
    %v1981 = vunpack.c.l.b16 %v1913
    %v1982 = vunpack.c.l.b16 %v1914
    %v1983 = vunpack.c.l.b16 %v1915
    %v1984 = vunpack.c.l.b16 %v1916
    %v1985 = vunpack.c.l.b16 %v1917
    %v1986 = vunpack.c.l.b16 %v1918
    %v1987 = vunpack.c.l.b16 %v1919
    %v1988 = vunpack.c.l.b16 %v1920
    %v1989 = vunpack.c.l.b16 %v1921
    %v1990 = vunpack.c.l.b16 %v1922
    %v1991 = vunpack.c.l.b16 %v1923
    %v1992 = vunpack.c.l.b16 %v1924
    %v1993 = vunpack.c.l.b16 %v1925
    %v1994 = vpack.c.b16 %v1963, %v1962
    %v1995 = vpack.c.b16 %v1965, %v1964
    %v1996 = vpack.c.b16 %v1967, %v1966
    %v1997 = vpack.c.b16 %v1969, %v1968
    %v1998 = vpack.c.b16 %v1971, %v1970
    %v1999 = vpack.c.b16 %v1973, %v1972
    %v2000 = vpack.c.b16 %v1975, %v1974
    %v2001 = vpack.c.b16 %v1977, %v1976
    %v2002 = vpack.c.b16 %v1979, %v1978
    %v2003 = vpack.c.b16 %v1981, %v1980
    %v2004 = vpack.c.b16 %v1983, %v1982
    %v2005 = vpack.c.b16 %v1985, %v1984
    %v2006 = vpack.c.b16 %v1987, %v1986
    %v2007 = vpack.c.b16 %v1989, %v1988
    %v2008 = vpack.c.b16 %v1991, %v1990
    %v2009 = vpack.c.b16 %v1993, %v1992
    %2026 = vmatprep.subr.bf16.mxu0 0
    %2027 = vmatpush1.bf16.msra.mxu0 %v1994
    %2028 = vmatprep.subr.bf16.mxu0 0
    %2029 = vmatpush1.bf16.msra.mxu0 %v1995
    %2030 = vmatprep.subr.bf16.mxu0 0
    %2031 = vmatpush1.bf16.msra.mxu0 %v1996
    %2032 = vmatprep.subr.bf16.mxu0 0
    %2033 = vmatpush1.bf16.msra.mxu0 %v1997
    %2034 = vmatprep.subr.bf16.mxu0 0
    %2035 = vmatpush1.bf16.msra.mxu0 %v1998
    %2036 = vmatprep.subr.bf16.mxu0 0
    %2037 = vmatpush1.bf16.msra.mxu0 %v1999
    %2038 = vmatprep.subr.bf16.mxu0 0
    %2039 = vmatpush1.bf16.msra.mxu0 %v2000
    %2040 = vmatprep.subr.bf16.mxu0 0
    %2041 = vmatpush1.bf16.msra.mxu0 %v2001
    %2042 = vmatprep.subr.bf16.mxu0 0
    %2043 = vmatpush1.bf16.msra.mxu0 %v2002
    %2044 = vmatprep.subr.bf16.mxu0 0
    %2045 = vmatpush1.bf16.msra.mxu0 %v2003
    %2046 = vmatprep.subr.bf16.mxu0 0
    %2047 = vmatpush1.bf16.msra.mxu0 %v2004
    %2048 = vmatprep.subr.bf16.mxu0 0
    %2049 = vmatpush1.bf16.msra.mxu0 %v2005
    %2050 = vmatprep.subr.bf16.mxu0 0
    %2051 = vmatpush1.bf16.msra.mxu0 %v2006
    %2052 = vmatprep.subr.bf16.mxu0 0
    %2053 = vmatpush1.bf16.msra.mxu0 %v2007
    %2054 = vmatprep.subr.bf16.mxu0 0
    %2055 = vmatpush1.bf16.msra.mxu0 %v2008
    %2056 = vmatprep.subr.bf16.mxu0 0
    %2057 = vmatpush1.bf16.msra.mxu0 %v2009
    %2058 = vmatprep.mubr.bf16.mxu0 %v1927
    %2059 = vmatmul.mubr.bf16.gmra.mrb[0].mxu0 %v1926
    %v2060 = vpop.f32.mrb[0].mxu0
    %v2061 = vadd.f32 0.0, %v2060
    %v2062 = vpop.f32.mrb[0].mxu0
    %v2063 = vpop.f32.mrb[0].mxu0
    %v2064 = vadd.f32 0.0, %v2063
    %v2065 = vpop.f32.mrb[0].mxu0
    %2066 = vmatprep.mubr.bf16.mxu0 %v1929
    %2067 = vmatmul.mubr.bf16.gmra.mrb[0].mxu0 %v1928
    %v2068 = vpop.f32.mrb[0].mxu0
    %v2069 = vadd.f32 0.0, %v2068
    %v2070 = vpop.f32.mrb[0].mxu0
    %v2071 = vpop.f32.mrb[0].mxu0
    %v2072 = vadd.f32 0.0, %v2071
    %v2073 = vpop.f32.mrb[0].mxu0
    %2074 = vdwg.mxu0
    %v2075 = vadd.f32 %v1655, %v2061
    %v2076 = vadd.f32 %v1656, %v2064
    %v2077 = vadd.f32 %v1657, %v2069
    %v2078 = vadd.f32 %v1658, %v2072
    %v2079 = vld [vmem:[%s17] sm:$0x1]
    %v2081 = vlaneseq
    %v2082 = vshrl.u32 %v2081, 7
    %v2083 = vsub.s32 0, %v2082
    %v2084 = vrot.slane %v2079, %v2083
    %v2086 = vadd.f32 %v2075, %v2084
    %v2087 = vadd.f32 %v2076, %v2084
    %v2088 = vadd.f32 %v2077, %v2084
    %v2089 = vadd.f32 %v2078, %v2084
    %v2090 = vld [vmem:[%s18] sm:$0x1]
    %v2091 = vld [vmem:[%s19] sm:$0x1]
    %2092 = vadd.xlane.f32.xlu0 %v2086
    %v2093 = vpop.xlane.xlu0 %2092
    %2094 = vadd.xlane.f32.xlu0 %v2087
    %v2095 = vpop.xlane.xlu0 %2094
    %2096 = vadd.xlane.f32.xlu0 %v2088
    %v2097 = vpop.xlane.xlu0 %2096
    %2098 = vadd.xlane.f32.xlu0 %v2089
    %v2099 = vpop.xlane.xlu0 %2098
    %v2100 = vmul.f32 %v2093, %v313
    %v2101 = vmul.f32 %v2095, %v313
    %v2102 = vmul.f32 %v2097, %v313
    %v2103 = vmul.f32 %v2099, %v313
    %v2104 = vsub.f32 %v2086, %v2100
    %v2105 = vsub.f32 %v2087, %v2101
    %v2106 = vsub.f32 %v2088, %v2102
    %v2107 = vsub.f32 %v2089, %v2103
    %v2108 = vmul.f32 %v2104, %v2104
    %v2109 = vmul.f32 %v2105, %v2105
    %v2110 = vmul.f32 %v2106, %v2106
    %v2111 = vmul.f32 %v2107, %v2107
    %2112 = vadd.xlane.f32.xlu0 %v2108
    %v2113 = vpop.xlane.xlu0 %2112
    %2114 = vadd.xlane.f32.xlu0 %v2109
    %v2115 = vpop.xlane.xlu0 %2114
    %2116 = vadd.xlane.f32.xlu0 %v2110
    %v2117 = vpop.xlane.xlu0 %2116
    %2118 = vadd.xlane.f32.xlu0 %v2111
    %v2119 = vpop.xlane.xlu0 %2118
    %v2120 = vmul.f32 %v2113, %v313
    %v2121 = vmul.f32 %v2115, %v313
    %v2122 = vmul.f32 %v2117, %v313
    %v2123 = vmul.f32 %v2119, %v313
    %v2124 = vadd.f32 %v2120, 1e-12
    %v2125 = vadd.f32 %v2121, 1e-12
    %v2126 = vadd.f32 %v2122, 1e-12
    %v2127 = vadd.f32 %v2123, 1e-12
    %v2128 = vrsqrt.pop %v2124
    %v2129 = vrsqrt.pop %v2125
    %v2130 = vrsqrt.pop %v2126
    %v2131 = vrsqrt.pop %v2127
    %v2132 = vmul.f32 %v2104, %v2128
    %v2133 = vmul.f32 %v2105, %v2129
    %v2134 = vmul.f32 %v2106, %v2130
    %v2135 = vmul.f32 %v2107, %v2131
    %v2137 = vlaneseq
    %v2138 = vshrl.u32 %v2137, 7
    %v2139 = vsub.s32 0, %v2138
    %v2140 = vrot.slane %v2090, %v2139
    %v2142 = vmul.f32 %v2132, %v2140
    %v2143 = vmul.f32 %v2133, %v2140
    %v2144 = vmul.f32 %v2134, %v2140
    %v2145 = vmul.f32 %v2135, %v2140
    %v2147 = vlaneseq
    %v2148 = vshrl.u32 %v2147, 7
    %v2149 = vsub.s32 0, %v2148
    %v2150 = vrot.slane %v2091, %v2149
    %v2152 = vadd.f32 %v2142, %v2150
    %v2153 = vadd.f32 %v2143, %v2150
    %v2154 = vadd.f32 %v2144, %v2150
    %v2155 = vadd.f32 %v2145, %v2150
    %s2156 = scalar_lea.vmem %s8, 192
    %v2157 = vld [vmem:[%s2156] sm:$0xff]
    %v2158 = vld [vmem:[%s2156 + $0x8] sm:$0xf]
    %v2159 = vld [vmem:[%s2156 + $0xc] sm:$0xff]
    %v2160 = vld [vmem:[%s2156 + $0x14] sm:$0xf]
    %v2161 = vld [vmem:[%s2156 + $0x18] sm:$0xff]
    %v2162 = vld [vmem:[%s2156 + $0x20] sm:$0xf]
    %v2163 = vld [vmem:[%s2156 + $0x24] sm:$0xff]
    %v2164 = vld [vmem:[%s2156 + $0x2c] sm:$0xf]
    %v2165 = vld [vmem:[%s2156 + $0x30] sm:$0xff]
    %v2166 = vld [vmem:[%s2156 + $0x38] sm:$0xf]
    %v2167 = vld [vmem:[%s2156 + $0x3c] sm:$0xff]
    %v2168 = vld [vmem:[%s2156 + $0x44] sm:$0xf]
    %v2169 = vld [vmem:[%s2156 + $0x48] sm:$0xff]
    %v2170 = vld [vmem:[%s2156 + $0x50] sm:$0xf]
    %v2171 = vld [vmem:[%s2156 + $0x54] sm:$0xff]
    %v2172 = vld [vmem:[%s2156 + $0x5c] sm:$0xf]
    %v2173 = vld [vmem:[%s2156 + $0x60] sm:$0xff]
    %v2174 = vld [vmem:[%s2156 + $0x68] sm:$0xf]
    %v2175 = vld [vmem:[%s2156 + $0x6c] sm:$0xff]
    %v2176 = vld [vmem:[%s2156 + $0x74] sm:$0xf]
    %v2177 = vld [vmem:[%s2156 + $0x78] sm:$0xff]
    %v2178 = vld [vmem:[%s2156 + $0x80] sm:$0xf]
    %v2179 = vld [vmem:[%s2156 + $0x84] sm:$0xff]
    %v2180 = vld [vmem:[%s2156 + $0x8c] sm:$0xf]
    %v2181 = vld [vmem:[%s2156 + $0x90] sm:$0xff]
    %v2182 = vld [vmem:[%s2156 + $0x98] sm:$0xf]
    %v2183 = vld [vmem:[%s2156 + $0x9c] sm:$0xff]
    %v2184 = vld [vmem:[%s2156 + $0xa4] sm:$0xf]
    %v2185 = vld [vmem:[%s2156 + $0xa8] sm:$0xff]
    %v2186 = vld [vmem:[%s2156 + $0xb0] sm:$0xf]
    %v2187 = vld [vmem:[%s2156 + $0xb4] sm:$0xff]
    %v2188 = vld [vmem:[%s2156 + $0xbc] sm:$0xf]
    %v2189 = vpack.c.bf16 %v2153, %v2152
    %v2190 = vpack.c.bf16 %v2155, %v2154
    %s2191 = scalar_lea.vmem %s9, 3
    %v2192 = vld [vmem:[%s2191] sm:$0x7]
    %v2194 = vlaneseq
    %v2195 = vshrl.u32 %v2194, 7
    %v2196 = vsub.s32 0, %v2195
    %v2197 = vrot.slane %v2192, %v2196
    %v2198 = vlaneseq
    %v2199 = vshrl.u32 %v2198, 7
    %v2200 = vsub.s32 1, %v2199
    %v2201 = vrot.slane %v2192, %v2200
    %v2202 = vlaneseq
    %v2203 = vshrl.u32 %v2202, 7
    %v2204 = vsub.s32 2, %v2203
    %v2205 = vrot.slane %v2192, %v2204
    %v2241 = vunpack.c.l.b16 %v2157
    %v2242 = vunpack.c.h.b16 %v2157
    %v2243 = vunpack.c.l.b16 %v2158
    %v2244 = vunpack.c.l.b16 %v2159
    %v2245 = vunpack.c.h.b16 %v2159
    %v2246 = vunpack.c.l.b16 %v2160
    %v2247 = vunpack.c.l.b16 %v2161
    %v2248 = vunpack.c.h.b16 %v2161
    %v2249 = vunpack.c.l.b16 %v2162
    %v2250 = vunpack.c.l.b16 %v2163
    %v2251 = vunpack.c.h.b16 %v2163
    %v2252 = vunpack.c.l.b16 %v2164
    %v2253 = vunpack.c.l.b16 %v2165
    %v2254 = vunpack.c.h.b16 %v2165
    %v2255 = vunpack.c.l.b16 %v2166
    %v2256 = vunpack.c.l.b16 %v2167
    %v2257 = vunpack.c.h.b16 %v2167
    %v2258 = vunpack.c.l.b16 %v2168
    %v2259 = vunpack.c.l.b16 %v2169
    %v2260 = vunpack.c.h.b16 %v2169
    %v2261 = vunpack.c.l.b16 %v2170
    %v2262 = vunpack.c.l.b16 %v2171
    %v2263 = vunpack.c.h.b16 %v2171
    %v2264 = vunpack.c.l.b16 %v2172
    %v2265 = vunpack.c.l.b16 %v2173
    %v2266 = vunpack.c.h.b16 %v2173
    %v2267 = vunpack.c.l.b16 %v2174
    %v2268 = vunpack.c.l.b16 %v2175
    %v2269 = vunpack.c.h.b16 %v2175
    %v2270 = vunpack.c.l.b16 %v2176
    %v2271 = vunpack.c.l.b16 %v2177
    %v2272 = vunpack.c.h.b16 %v2177
    %v2273 = vunpack.c.l.b16 %v2178
    %v2274 = vunpack.c.l.b16 %v2179
    %v2275 = vunpack.c.h.b16 %v2179
    %v2276 = vunpack.c.l.b16 %v2180
    %v2277 = vunpack.c.l.b16 %v2181
    %v2278 = vunpack.c.h.b16 %v2181
    %v2279 = vunpack.c.l.b16 %v2182
    %v2280 = vunpack.c.l.b16 %v2183
    %v2281 = vunpack.c.h.b16 %v2183
    %v2282 = vunpack.c.l.b16 %v2184
    %v2283 = vunpack.c.l.b16 %v2185
    %v2284 = vunpack.c.h.b16 %v2185
    %v2285 = vunpack.c.l.b16 %v2186
    %v2286 = vunpack.c.l.b16 %v2187
    %v2287 = vunpack.c.h.b16 %v2187
    %v2288 = vunpack.c.l.b16 %v2188
    %v2289 = vpack.c.b16 %v2244, %v2241
    %v2290 = vpack.c.b16 %v2245, %v2242
    %v2291 = vpack.c.b16 %v2246, %v2243
    %v2292 = vpack.c.b16 %v2250, %v2247
    %v2293 = vpack.c.b16 %v2251, %v2248
    %v2294 = vpack.c.b16 %v2252, %v2249
    %v2295 = vpack.c.b16 %v2256, %v2253
    %v2296 = vpack.c.b16 %v2257, %v2254
    %v2297 = vpack.c.b16 %v2258, %v2255
    %v2298 = vpack.c.b16 %v2262, %v2259
    %v2299 = vpack.c.b16 %v2263, %v2260
    %v2300 = vpack.c.b16 %v2264, %v2261
    %v2301 = vpack.c.b16 %v2268, %v2265
    %v2302 = vpack.c.b16 %v2269, %v2266
    %v2303 = vpack.c.b16 %v2270, %v2267
    %v2304 = vpack.c.b16 %v2274, %v2271
    %v2305 = vpack.c.b16 %v2275, %v2272
    %v2306 = vpack.c.b16 %v2276, %v2273
    %v2307 = vpack.c.b16 %v2280, %v2277
    %v2308 = vpack.c.b16 %v2281, %v2278
    %v2309 = vpack.c.b16 %v2282, %v2279
    %v2310 = vpack.c.b16 %v2286, %v2283
    %v2311 = vpack.c.b16 %v2287, %v2284
    %v2312 = vpack.c.b16 %v2288, %v2285
    %2337 = vmatprep.subr.bf16.mxu0 %v2290
    %2338 = vmatpush1.bf16.msra.mxu0 %v2289
    %2339 = vmatprep.subr.bf16.mxu0 %v2293
    %2340 = vmatpush1.bf16.msra.mxu0 %v2292
    %2341 = vmatprep.subr.bf16.mxu0 %v2296
    %2342 = vmatpush1.bf16.msra.mxu0 %v2295
    %2343 = vmatprep.subr.bf16.mxu0 %v2299
    %2344 = vmatpush1.bf16.msra.mxu0 %v2298
    %2345 = vmatprep.subr.bf16.mxu0 %v2302
    %2346 = vmatpush1.bf16.msra.mxu0 %v2301
    %2347 = vmatprep.subr.bf16.mxu0 %v2305
    %2348 = vmatpush1.bf16.msra.mxu0 %v2304
    %2349 = vmatprep.subr.bf16.mxu0 %v2308
    %2350 = vmatpush1.bf16.msra.mxu0 %v2307
    %2351 = vmatprep.subr.bf16.mxu0 %v2311
    %2352 = vmatpush1.bf16.msra.mxu0 %v2310
    %2353 = vmatprep.subr.bf16.mxu0 0
    %2354 = vmatpush1.bf16.msra.mxu0 0
    %2355 = vmatprep.subr.bf16.mxu0 0
    %2356 = vmatpush1.bf16.msra.mxu0 0
    %2357 = vmatprep.subr.bf16.mxu0 0
    %2358 = vmatpush1.bf16.msra.mxu0 0
    %2359 = vmatprep.subr.bf16.mxu0 0
    %2360 = vmatpush1.bf16.msra.mxu0 0
    %2361 = vmatprep.subr.bf16.mxu0 0
    %2362 = vmatpush1.bf16.msra.mxu0 0
    %2363 = vmatprep.subr.bf16.mxu0 0
    %2364 = vmatpush1.bf16.msra.mxu0 0
    %2365 = vmatprep.subr.bf16.mxu0 0
    %2366 = vmatpush1.bf16.msra.mxu0 0
    %2367 = vmatprep.subr.bf16.mxu0 0
    %2368 = vmatpush1.bf16.msra.mxu0 0
    %2369 = vmatprep.mubr.bf16.mxu0 0
    %2370 = vmatmul.mubr.bf16.gmra.mrb[0].mxu0 %v2189
    %v2371 = vpop.f32.mrb[0].mxu0
    %v2372 = vadd.f32 %v2197, %v2371
    %v2373 = vpop.f32.mrb[0].mxu0
    %v2374 = vadd.f32 %v2201, %v2373
    %v2375 = vpop.f32.mrb[0].mxu0
    %v2376 = vadd.f32 %v2197, %v2375
    %v2377 = vpop.f32.mrb[0].mxu0
    %v2378 = vadd.f32 %v2201, %v2377
    %2379 = vmatprep.mubr.bf16.mxu0 0
    %2380 = vmatmul.mubr.bf16.gmra.mrb[0].mxu0 %v2190
    %v2381 = vpop.f32.mrb[0].mxu0
    %v2382 = vadd.f32 %v2197, %v2381
    %v2383 = vpop.f32.mrb[0].mxu0
    %v2384 = vadd.f32 %v2201, %v2383
    %v2385 = vpop.f32.mrb[0].mxu0
    %v2386 = vadd.f32 %v2197, %v2385
    %v2387 = vpop.f32.mrb[0].mxu0
    %v2388 = vadd.f32 %v2201, %v2387
    %2389 = vdwg.mxu0
    %2390 = vmatprep.subr.bf16.mxu0 0
    %2391 = vmatpush1.bf16.msra.mxu0 %v2291
    %2392 = vmatprep.subr.bf16.mxu0 0
    %2393 = vmatpush1.bf16.msra.mxu0 %v2294
    %2394 = vmatprep.subr.bf16.mxu0 0
    %2395 = vmatpush1.bf16.msra.mxu0 %v2297
    %2396 = vmatprep.subr.bf16.mxu0 0
    %2397 = vmatpush1.bf16.msra.mxu0 %v2300
    %2398 = vmatprep.subr.bf16.mxu0 0
    %2399 = vmatpush1.bf16.msra.mxu0 %v2303
    %2400 = vmatprep.subr.bf16.mxu0 0
    %2401 = vmatpush1.bf16.msra.mxu0 %v2306
    %2402 = vmatprep.subr.bf16.mxu0 0
    %2403 = vmatpush1.bf16.msra.mxu0 %v2309
    %2404 = vmatprep.subr.bf16.mxu0 0
    %2405 = vmatpush1.bf16.msra.mxu0 %v2312
    %2406 = vmatprep.subr.bf16.mxu0 0
    %2407 = vmatpush1.bf16.msra.mxu0 0
    %2408 = vmatprep.subr.bf16.mxu0 0
    %2409 = vmatpush1.bf16.msra.mxu0 0
    %2410 = vmatprep.subr.bf16.mxu0 0
    %2411 = vmatpush1.bf16.msra.mxu0 0
    %2412 = vmatprep.subr.bf16.mxu0 0
    %2413 = vmatpush1.bf16.msra.mxu0 0
    %2414 = vmatprep.subr.bf16.mxu0 0
    %2415 = vmatpush1.bf16.msra.mxu0 0
    %2416 = vmatprep.subr.bf16.mxu0 0
    %2417 = vmatpush1.bf16.msra.mxu0 0
    %2418 = vmatprep.subr.bf16.mxu0 0
    %2419 = vmatpush1.bf16.msra.mxu0 0
    %2420 = vmatprep.subr.bf16.mxu0 0
    %2421 = vmatpush1.bf16.msra.mxu0 0
    %2422 = vmatprep.mubr.bf16.mxu0 0
    %2423 = vmatmul.mubr.bf16.gmra.mrb[0].mxu0 %v2189
    %v2424 = vpop.f32.mrb[0].mxu0
    %v2425 = vadd.f32 %v2205, %v2424
    %v2426 = vpop.f32.mrb[0].mxu0
    %v2427 = vpop.f32.mrb[0].mxu0
    %v2428 = vadd.f32 %v2205, %v2427
    %v2429 = vpop.f32.mrb[0].mxu0
    %2430 = vmatprep.mubr.bf16.mxu0 0
    %2431 = vmatmul.mubr.bf16.gmra.mrb[0].mxu0 %v2190
    %v2432 = vpop.f32.mrb[0].mxu0
    %v2433 = vadd.f32 %v2205, %v2432
    %v2434 = vpop.f32.mrb[0].mxu0
    %v2435 = vpop.f32.mrb[0].mxu0
    %v2436 = vadd.f32 %v2205, %v2435
    %v2437 = vpop.f32.mrb[0].mxu0
    %2438 = vdwg.mxu0
    %v2439 = vmul.f32 %v2372, 0.17677669
    %v2440 = vmul.f32 %v2376, 0.17677669
    %v2441 = vmul.f32 %v2382, 0.17677669
    %v2442 = vmul.f32 %v2386, 0.17677669
    %v2443 = vpack.c.bf16 %v2440, %v2439
    %v2444 = vpack.c.bf16 %v2442, %v2441
    %v2445 = vpack.c.bf16 %v2378, %v2374
    %v2446 = vpack.c.bf16 %v2388, %v2384
    %v2448 = vsel %vm679, %v2443, 0
    %v2451 = vsel %vm679, %v2444, 0
    %v2454 = vsel %vm679, %v2445, 0
    %v2457 = vsel %vm679, %v2446, 0
    %2459 = vmatprep.subr.bf16.mxu0 0
    %2460 = vmatpush1.bf16.xpose.msra.mxu0 %v2454
    %2461 = vmatprep.subr.bf16.mxu0 0
    %2462 = vmatpush1.bf16.xpose.msra.mxu0 %v2457
    %2463 = vmatprep.subr.bf16.mxu0 0
    %2464 = vmatpush1.bf16.xpose.msra.mxu0 0
    %2465 = vmatprep.subr.bf16.mxu0 0
    %2466 = vmatpush1.bf16.xpose.msra.mxu0 0
    %2467 = vmatprep.subr.bf16.mxu0 0
    %2468 = vmatpush1.bf16.xpose.msra.mxu0 0
    %2469 = vmatprep.subr.bf16.mxu0 0
    %2470 = vmatpush1.bf16.xpose.msra.mxu0 0
    %2471 = vmatprep.subr.bf16.mxu0 0
    %2472 = vmatpush1.bf16.xpose.msra.mxu0 0
    %2473 = vmatprep.subr.bf16.mxu0 0
    %2474 = vmatpush1.bf16.xpose.msra.mxu0 0
    %2475 = vmatprep.subr.bf16.mxu0 0
    %2476 = vmatpush1.bf16.xpose.msra.mxu0 0
    %2477 = vmatprep.subr.bf16.mxu0 0
    %2478 = vmatpush1.bf16.xpose.msra.mxu0 0
    %2479 = vmatprep.subr.bf16.mxu0 0
    %2480 = vmatpush1.bf16.xpose.msra.mxu0 0
    %2481 = vmatprep.subr.bf16.mxu0 0
    %2482 = vmatpush1.bf16.xpose.msra.mxu0 0
    %2483 = vmatprep.subr.bf16.mxu0 0
    %2484 = vmatpush1.bf16.xpose.msra.mxu0 0
    %2485 = vmatprep.subr.bf16.mxu0 0
    %2486 = vmatpush1.bf16.xpose.msra.mxu0 0
    %2487 = vmatprep.subr.bf16.mxu0 0
    %2488 = vmatpush1.bf16.xpose.msra.mxu0 0
    %2489 = vmatprep.subr.bf16.mxu0 0
    %2490 = vmatpush1.bf16.xpose.msra.mxu0 0
    %2491 = vmatprep.mubr.bf16.mxu0 0
    %2492 = vmatmul.mubr.bf16.gmra.mrb[0].mxu0 %v2448
    %v2493 = vpop.f32.mrb[0].mxu0
    %v2494 = vadd.f32 0.0, %v2493
    %v2495 = vpop.f32.mrb[0].mxu0
    %v2496 = vpop.f32.mrb[0].mxu0
    %v2497 = vadd.f32 0.0, %v2496
    %v2498 = vpop.f32.mrb[0].mxu0
    %2499 = vmatprep.mubr.bf16.mxu0 0
    %2500 = vmatmul.mubr.bf16.gmra.mrb[0].mxu0 %v2451
    %v2501 = vpop.f32.mrb[0].mxu0
    %v2502 = vadd.f32 0.0, %v2501
    %v2503 = vpop.f32.mrb[0].mxu0
    %v2504 = vpop.f32.mrb[0].mxu0
    %v2505 = vadd.f32 0.0, %v2504
    %v2506 = vpop.f32.mrb[0].mxu0
    %2507 = vdwg.mxu0
    %2510 = vrot.lane.b32.xlu0 %v2443, 96
    %v2511 = vpop.permute.xlu0 %2510
    %2512 = vrot.lane.b32.xlu0 %v2444, 96
    %v2513 = vpop.permute.xlu0 %2512
    %2516 = vrot.lane.b32.xlu0 %v2445, 96
    %v2517 = vpop.permute.xlu0 %2516
    %2518 = vrot.lane.b32.xlu0 %v2446, 96
    %v2519 = vpop.permute.xlu0 %2518
    %v2521 = vsel %vm679, %v2511, 0
    %v2524 = vsel %vm679, %v2513, 0
    %v2527 = vsel %vm679, %v2517, 0
    %v2530 = vsel %vm679, %v2519, 0
    %2532 = vmatprep.subr.bf16.mxu0 0
    %2533 = vmatpush1.bf16.xpose.msra.mxu0 %v2527
    %2534 = vmatprep.subr.bf16.mxu0 0
    %2535 = vmatpush1.bf16.xpose.msra.mxu0 %v2530
    %2536 = vmatprep.subr.bf16.mxu0 0
    %2537 = vmatpush1.bf16.xpose.msra.mxu0 0
    %2538 = vmatprep.subr.bf16.mxu0 0
    %2539 = vmatpush1.bf16.xpose.msra.mxu0 0
    %2540 = vmatprep.subr.bf16.mxu0 0
    %2541 = vmatpush1.bf16.xpose.msra.mxu0 0
    %2542 = vmatprep.subr.bf16.mxu0 0
    %2543 = vmatpush1.bf16.xpose.msra.mxu0 0
    %2544 = vmatprep.subr.bf16.mxu0 0
    %2545 = vmatpush1.bf16.xpose.msra.mxu0 0
    %2546 = vmatprep.subr.bf16.mxu0 0
    %2547 = vmatpush1.bf16.xpose.msra.mxu0 0
    %2548 = vmatprep.subr.bf16.mxu0 0
    %2549 = vmatpush1.bf16.xpose.msra.mxu0 0
    %2550 = vmatprep.subr.bf16.mxu0 0
    %2551 = vmatpush1.bf16.xpose.msra.mxu0 0
    %2552 = vmatprep.subr.bf16.mxu0 0
    %2553 = vmatpush1.bf16.xpose.msra.mxu0 0
    %2554 = vmatprep.subr.bf16.mxu0 0
    %2555 = vmatpush1.bf16.xpose.msra.mxu0 0
    %2556 = vmatprep.subr.bf16.mxu0 0
    %2557 = vmatpush1.bf16.xpose.msra.mxu0 0
    %2558 = vmatprep.subr.bf16.mxu0 0
    %2559 = vmatpush1.bf16.xpose.msra.mxu0 0
    %2560 = vmatprep.subr.bf16.mxu0 0
    %2561 = vmatpush1.bf16.xpose.msra.mxu0 0
    %2562 = vmatprep.subr.bf16.mxu0 0
    %2563 = vmatpush1.bf16.xpose.msra.mxu0 0
    %2564 = vmatprep.mubr.bf16.mxu0 0
    %2565 = vmatmul.mubr.bf16.gmra.mrb[0].mxu0 %v2521
    %v2566 = vpop.f32.mrb[0].mxu0
    %v2567 = vadd.f32 0.0, %v2566
    %v2568 = vpop.f32.mrb[0].mxu0
    %v2569 = vpop.f32.mrb[0].mxu0
    %v2570 = vadd.f32 0.0, %v2569
    %v2571 = vpop.f32.mrb[0].mxu0
    %2572 = vmatprep.mubr.bf16.mxu0 0
    %2573 = vmatmul.mubr.bf16.gmra.mrb[0].mxu0 %v2524
    %v2574 = vpop.f32.mrb[0].mxu0
    %v2575 = vadd.f32 0.0, %v2574
    %v2576 = vpop.f32.mrb[0].mxu0
    %v2577 = vpop.f32.mrb[0].mxu0
    %v2578 = vadd.f32 0.0, %v2577
    %v2579 = vpop.f32.mrb[0].mxu0
    %2580 = vdwg.mxu0
    %2581 = vrot.lane.b32.xlu0 %v2443, 64
    %v2582 = vpop.permute.xlu0 %2581
    %2583 = vrot.lane.b32.xlu0 %v2444, 64
    %v2584 = vpop.permute.xlu0 %2583
    %2585 = vrot.lane.b32.xlu0 %v2445, 64
    %v2586 = vpop.permute.xlu0 %2585
    %2587 = vrot.lane.b32.xlu0 %v2446, 64
    %v2588 = vpop.permute.xlu0 %2587
    %v2590 = vsel %vm679, %v2582, 0
    %v2593 = vsel %vm679, %v2584, 0
    %v2596 = vsel %vm679, %v2586, 0
    %v2599 = vsel %vm679, %v2588, 0
    %2601 = vmatprep.subr.bf16.mxu0 0
    %2602 = vmatpush1.bf16.xpose.msra.mxu0 %v2596
    %2603 = vmatprep.subr.bf16.mxu0 0
    %2604 = vmatpush1.bf16.xpose.msra.mxu0 %v2599
    %2605 = vmatprep.subr.bf16.mxu0 0
    %2606 = vmatpush1.bf16.xpose.msra.mxu0 0
    %2607 = vmatprep.subr.bf16.mxu0 0
    %2608 = vmatpush1.bf16.xpose.msra.mxu0 0
    %2609 = vmatprep.subr.bf16.mxu0 0
    %2610 = vmatpush1.bf16.xpose.msra.mxu0 0
    %2611 = vmatprep.subr.bf16.mxu0 0
    %2612 = vmatpush1.bf16.xpose.msra.mxu0 0
    %2613 = vmatprep.subr.bf16.mxu0 0
    %2614 = vmatpush1.bf16.xpose.msra.mxu0 0
    %2615 = vmatprep.subr.bf16.mxu0 0
    %2616 = vmatpush1.bf16.xpose.msra.mxu0 0
    %2617 = vmatprep.subr.bf16.mxu0 0
    %2618 = vmatpush1.bf16.xpose.msra.mxu0 0
    %2619 = vmatprep.subr.bf16.mxu0 0
    %2620 = vmatpush1.bf16.xpose.msra.mxu0 0
    %2621 = vmatprep.subr.bf16.mxu0 0
    %2622 = vmatpush1.bf16.xpose.msra.mxu0 0
    %2623 = vmatprep.subr.bf16.mxu0 0
    %2624 = vmatpush1.bf16.xpose.msra.mxu0 0
    %2625 = vmatprep.subr.bf16.mxu0 0
    %2626 = vmatpush1.bf16.xpose.msra.mxu0 0
    %2627 = vmatprep.subr.bf16.mxu0 0
    %2628 = vmatpush1.bf16.xpose.msra.mxu0 0
    %2629 = vmatprep.subr.bf16.mxu0 0
    %2630 = vmatpush1.bf16.xpose.msra.mxu0 0
    %2631 = vmatprep.subr.bf16.mxu0 0
    %2632 = vmatpush1.bf16.xpose.msra.mxu0 0
    %2633 = vmatprep.mubr.bf16.mxu0 0
    %2634 = vmatmul.mubr.bf16.gmra.mrb[0].mxu0 %v2590
    %v2635 = vpop.f32.mrb[0].mxu0
    %v2636 = vadd.f32 0.0, %v2635
    %v2637 = vpop.f32.mrb[0].mxu0
    %v2638 = vpop.f32.mrb[0].mxu0
    %v2639 = vadd.f32 0.0, %v2638
    %v2640 = vpop.f32.mrb[0].mxu0
    %2641 = vmatprep.mubr.bf16.mxu0 0
    %2642 = vmatmul.mubr.bf16.gmra.mrb[0].mxu0 %v2593
    %v2643 = vpop.f32.mrb[0].mxu0
    %v2644 = vadd.f32 0.0, %v2643
    %v2645 = vpop.f32.mrb[0].mxu0
    %v2646 = vpop.f32.mrb[0].mxu0
    %v2647 = vadd.f32 0.0, %v2646
    %v2648 = vpop.f32.mrb[0].mxu0
    %2649 = vdwg.mxu0
    %2650 = vrot.lane.b32.xlu0 %v2443, 32
    %v2651 = vpop.permute.xlu0 %2650
    %2652 = vrot.lane.b32.xlu0 %v2444, 32
    %v2653 = vpop.permute.xlu0 %2652
    %2654 = vrot.lane.b32.xlu0 %v2445, 32
    %v2655 = vpop.permute.xlu0 %2654
    %2656 = vrot.lane.b32.xlu0 %v2446, 32
    %v2657 = vpop.permute.xlu0 %2656
    %v2659 = vsel %vm679, %v2651, 0
    %v2662 = vsel %vm679, %v2653, 0
    %v2665 = vsel %vm679, %v2655, 0
    %v2668 = vsel %vm679, %v2657, 0
    %2670 = vmatprep.subr.bf16.mxu0 0
    %2671 = vmatpush1.bf16.xpose.msra.mxu0 %v2665
    %2672 = vmatprep.subr.bf16.mxu0 0
    %2673 = vmatpush1.bf16.xpose.msra.mxu0 %v2668
    %2674 = vmatprep.subr.bf16.mxu0 0
    %2675 = vmatpush1.bf16.xpose.msra.mxu0 0
    %2676 = vmatprep.subr.bf16.mxu0 0
    %2677 = vmatpush1.bf16.xpose.msra.mxu0 0
    %2678 = vmatprep.subr.bf16.mxu0 0
    %2679 = vmatpush1.bf16.xpose.msra.mxu0 0
    %2680 = vmatprep.subr.bf16.mxu0 0
    %2681 = vmatpush1.bf16.xpose.msra.mxu0 0
    %2682 = vmatprep.subr.bf16.mxu0 0
    %2683 = vmatpush1.bf16.xpose.msra.mxu0 0
    %2684 = vmatprep.subr.bf16.mxu0 0
    %2685 = vmatpush1.bf16.xpose.msra.mxu0 0
    %2686 = vmatprep.subr.bf16.mxu0 0
    %2687 = vmatpush1.bf16.xpose.msra.mxu0 0
    %2688 = vmatprep.subr.bf16.mxu0 0
    %2689 = vmatpush1.bf16.xpose.msra.mxu0 0
    %2690 = vmatprep.subr.bf16.mxu0 0
    %2691 = vmatpush1.bf16.xpose.msra.mxu0 0
    %2692 = vmatprep.subr.bf16.mxu0 0
    %2693 = vmatpush1.bf16.xpose.msra.mxu0 0
    %2694 = vmatprep.subr.bf16.mxu0 0
    %2695 = vmatpush1.bf16.xpose.msra.mxu0 0
    %2696 = vmatprep.subr.bf16.mxu0 0
    %2697 = vmatpush1.bf16.xpose.msra.mxu0 0
    %2698 = vmatprep.subr.bf16.mxu0 0
    %2699 = vmatpush1.bf16.xpose.msra.mxu0 0
    %2700 = vmatprep.subr.bf16.mxu0 0
    %2701 = vmatpush1.bf16.xpose.msra.mxu0 0
    %2702 = vmatprep.mubr.bf16.mxu0 0
    %2703 = vmatmul.mubr.bf16.gmra.mrb[0].mxu0 %v2659
    %v2704 = vpop.f32.mrb[0].mxu0
    %v2705 = vadd.f32 0.0, %v2704
    %v2706 = vpop.f32.mrb[0].mxu0
    %v2707 = vpop.f32.mrb[0].mxu0
    %v2708 = vadd.f32 0.0, %v2707
    %v2709 = vpop.f32.mrb[0].mxu0
    %2710 = vmatprep.mubr.bf16.mxu0 0
    %2711 = vmatmul.mubr.bf16.gmra.mrb[0].mxu0 %v2662
    %v2712 = vpop.f32.mrb[0].mxu0
    %v2713 = vadd.f32 0.0, %v2712
    %v2714 = vpop.f32.mrb[0].mxu0
    %v2715 = vpop.f32.mrb[0].mxu0
    %v2716 = vadd.f32 0.0, %v2715
    %v2717 = vpop.f32.mrb[0].mxu0
    %2718 = vdwg.mxu0
    %2723 = vrot.lane.b32.xlu0 %v2567, 32
    %v2724 = vpop.permute.xlu0 %2723
    %2725 = vrot.lane.b32.xlu0 %v2570, 32
    %v2726 = vpop.permute.xlu0 %2725
    %2727 = vrot.lane.b32.xlu0 %v2575, 32
    %v2728 = vpop.permute.xlu0 %2727
    %2729 = vrot.lane.b32.xlu0 %v2578, 32
    %v2730 = vpop.permute.xlu0 %2729
    %2739 = vrot.lane.b32.xlu0 %v2636, 64
    %v2740 = vpop.permute.xlu0 %2739
    %2741 = vrot.lane.b32.xlu0 %v2639, 64
    %v2742 = vpop.permute.xlu0 %2741
    %2743 = vrot.lane.b32.xlu0 %v2644, 64
    %v2744 = vpop.permute.xlu0 %2743
    %2745 = vrot.lane.b32.xlu0 %v2647, 64
    %v2746 = vpop.permute.xlu0 %2745
    %2755 = vrot.lane.b32.xlu0 %v2705, 96
    %v2756 = vpop.permute.xlu0 %2755
    %2757 = vrot.lane.b32.xlu0 %v2708, 96
    %v2758 = vpop.permute.xlu0 %2757
    %2759 = vrot.lane.b32.xlu0 %v2713, 96
    %v2760 = vpop.permute.xlu0 %2759
    %2761 = vrot.lane.b32.xlu0 %v2716, 96
    %v2762 = vpop.permute.xlu0 %2761
    %v2767 = vsel %vm679, %v2494, %v2724
    %v2768 = vsel %vm679, %v2497, %v2726
    %v2769 = vsel %vm679, %v2502, %v2728
    %v2770 = vsel %vm679, %v2505, %v2730
    %v2771 = vsel %vm1004, %v2767, %v2740
    %v2772 = vsel %vm1004, %v2768, %v2742
    %v2773 = vsel %vm1004, %v2769, %v2744
    %v2774 = vsel %vm1004, %v2770, %v2746
    %v2775 = vsel %vm1009, %v2771, %v2756
    %v2776 = vsel %vm1009, %v2772, %v2758
    %v2777 = vsel %vm1009, %v2773, %v2760
    %v2778 = vsel %vm1009, %v2774, %v2762
    %v2779 = vadd.f32 %v2775, %v370
    %v2780 = vadd.f32 %v2776, %v371
    %v2781 = vadd.f32 %v2777, %v372
    %v2782 = vadd.f32 %v2778, %v373
    %2783 = vmax.xlane.f32.xlu0 %v2779
    %v2784 = vpop.xlane.xlu0 %2783
    %2785 = vmax.xlane.f32.xlu0 %v2780
    %v2786 = vpop.xlane.xlu0 %2785
    %2787 = vmax.xlane.f32.xlu0 %v2781
    %v2788 = vpop.xlane.xlu0 %2787
    %2789 = vmax.xlane.f32.xlu0 %v2782
    %v2790 = vpop.xlane.xlu0 %2789
    %v2791 = vsub.f32 %v2779, %v2784
    %v2792 = vsub.f32 %v2780, %v2786
    %v2793 = vsub.f32 %v2781, %v2788
    %v2794 = vsub.f32 %v2782, %v2790
    %v2795 = vmul.f32 %v2791, 1.442695
    %v2796 = vpow.pop %v2795
    %v2797 = vmul.f32 %v2792, 1.442695
    %v2798 = vpow.pop %v2797
    %v2799 = vmul.f32 %v2793, 1.442695
    %v2800 = vpow.pop %v2799
    %v2801 = vmul.f32 %v2794, 1.442695
    %v2802 = vpow.pop %v2801
    %v2803 = vpack.c.bf16 %v2798, %v2796
    %v2804 = vpack.c.bf16 %v2802, %v2800
    %2805 = vmatprep.subr.bf16.mxu0 0
    %2806 = vmatpush1.bf16.msra.mxu0 %v1072
    %2807 = vmatprep.subr.bf16.mxu0 0
    %2808 = vmatpush1.bf16.msra.mxu0 %v1073
    %2809 = vmatprep.subr.bf16.mxu0 0
    %2810 = vmatpush1.bf16.msra.mxu0 %v1074
    %2811 = vmatprep.subr.bf16.mxu0 0
    %2812 = vmatpush1.bf16.msra.mxu0 %v1075
    %2813 = vmatprep.subr.bf16.mxu0 0
    %2814 = vmatpush1.bf16.msra.mxu0 %v1076
    %2815 = vmatprep.subr.bf16.mxu0 0
    %2816 = vmatpush1.bf16.msra.mxu0 %v1077
    %2817 = vmatprep.subr.bf16.mxu0 0
    %2818 = vmatpush1.bf16.msra.mxu0 %v1078
    %2819 = vmatprep.subr.bf16.mxu0 0
    %2820 = vmatpush1.bf16.msra.mxu0 %v1079
    %2821 = vmatprep.subr.bf16.mxu0 0
    %2822 = vmatpush1.bf16.msra.mxu0 0
    %2823 = vmatprep.subr.bf16.mxu0 0
    %2824 = vmatpush1.bf16.msra.mxu0 0
    %2825 = vmatprep.subr.bf16.mxu0 0
    %2826 = vmatpush1.bf16.msra.mxu0 0
    %2827 = vmatprep.subr.bf16.mxu0 0
    %2828 = vmatpush1.bf16.msra.mxu0 0
    %2829 = vmatprep.subr.bf16.mxu0 0
    %2830 = vmatpush1.bf16.msra.mxu0 0
    %2831 = vmatprep.subr.bf16.mxu0 0
    %2832 = vmatpush1.bf16.msra.mxu0 0
    %2833 = vmatprep.subr.bf16.mxu0 0
    %2834 = vmatpush1.bf16.msra.mxu0 0
    %2835 = vmatprep.subr.bf16.mxu0 0
    %2836 = vmatpush1.bf16.msra.mxu0 0
    %2837 = vmatprep.mubr.bf16.mxu0 0
    %2838 = vmatmul.mubr.bf16.gmra.mrb[0].mxu0 %v2803
    %v2839 = vpop.f32.mrb[0].mxu0
    %v2840 = vadd.f32 0.0, %v2839
    %v2841 = vpop.f32.mrb[0].mxu0
    %v2842 = vpop.f32.mrb[0].mxu0
    %v2843 = vadd.f32 0.0, %v2842
    %v2844 = vpop.f32.mrb[0].mxu0
    %2845 = vmatprep.mubr.bf16.mxu0 0
    %2846 = vmatmul.mubr.bf16.gmra.mrb[0].mxu0 %v2804
    %v2847 = vpop.f32.mrb[0].mxu0
    %v2848 = vadd.f32 0.0, %v2847
    %v2849 = vpop.f32.mrb[0].mxu0
    %v2850 = vpop.f32.mrb[0].mxu0
    %v2851 = vadd.f32 0.0, %v2850
    %v2852 = vpop.f32.mrb[0].mxu0
    %2853 = vdwg.mxu0
    %v2854 = vrcp.pop %v2840
    %v2855 = vrcp.pop %v2843
    %v2856 = vrcp.pop %v2848
    %v2857 = vrcp.pop %v2851
    %v2858 = vmul.f32 %v2796, %v2854
    %v2859 = vmul.f32 %v2798, %v2855
    %v2860 = vmul.f32 %v2800, %v2856
    %v2861 = vmul.f32 %v2802, %v2857
    %v2862 = vpack.c.bf16 %v2859, %v2858
    %v2863 = vpack.c.bf16 %v2861, %v2860
    %v2864 = vpack.c.bf16 %v2428, %v2425
    %v2865 = vpack.c.bf16 %v2436, %v2433
    %v2867 = vsel %vm679, %v2862, 0
    %v2870 = vsel %vm679, %v2863, 0
    %2872 = vmatprep.subr.bf16.mxu0 0
    %2873 = vmatpush1.bf16.msra.mxu0 %v2864
    %2874 = vmatprep.subr.bf16.mxu0 0
    %2875 = vmatpush1.bf16.msra.mxu0 %v2865
    %2876 = vmatprep.subr.bf16.mxu0 0
    %2877 = vmatpush1.bf16.msra.mxu0 0
    %2878 = vmatprep.subr.bf16.mxu0 0
    %2879 = vmatpush1.bf16.msra.mxu0 0
    %2880 = vmatprep.subr.bf16.mxu0 0
    %2881 = vmatpush1.bf16.msra.mxu0 0
    %2882 = vmatprep.subr.bf16.mxu0 0
    %2883 = vmatpush1.bf16.msra.mxu0 0
    %2884 = vmatprep.subr.bf16.mxu0 0
    %2885 = vmatpush1.bf16.msra.mxu0 0
    %2886 = vmatprep.subr.bf16.mxu0 0
    %2887 = vmatpush1.bf16.msra.mxu0 0
    %2888 = vmatprep.subr.bf16.mxu0 0
    %2889 = vmatpush1.bf16.msra.mxu0 0
    %2890 = vmatprep.subr.bf16.mxu0 0
    %2891 = vmatpush1.bf16.msra.mxu0 0
    %2892 = vmatprep.subr.bf16.mxu0 0
    %2893 = vmatpush1.bf16.msra.mxu0 0
    %2894 = vmatprep.subr.bf16.mxu0 0
    %2895 = vmatpush1.bf16.msra.mxu0 0
    %2896 = vmatprep.subr.bf16.mxu0 0
    %2897 = vmatpush1.bf16.msra.mxu0 0
    %2898 = vmatprep.subr.bf16.mxu0 0
    %2899 = vmatpush1.bf16.msra.mxu0 0
    %2900 = vmatprep.subr.bf16.mxu0 0
    %2901 = vmatpush1.bf16.msra.mxu0 0
    %2902 = vmatprep.subr.bf16.mxu0 0
    %2903 = vmatpush1.bf16.msra.mxu0 0
    %2904 = vmatprep.mubr.bf16.mxu0 0
    %2905 = vmatmul.mubr.bf16.gmra.mrb[0].mxu0 %v2867
    %v2906 = vpop.f32.mrb[0].mxu0
    %v2907 = vadd.f32 0.0, %v2906
    %v2908 = vpop.f32.mrb[0].mxu0
    %v2909 = vpop.f32.mrb[0].mxu0
    %v2910 = vadd.f32 0.0, %v2909
    %v2911 = vpop.f32.mrb[0].mxu0
    %2912 = vmatprep.mubr.bf16.mxu0 0
    %2913 = vmatmul.mubr.bf16.gmra.mrb[0].mxu0 %v2870
    %v2914 = vpop.f32.mrb[0].mxu0
    %v2915 = vadd.f32 0.0, %v2914
    %v2916 = vpop.f32.mrb[0].mxu0
    %v2917 = vpop.f32.mrb[0].mxu0
    %v2918 = vadd.f32 0.0, %v2917
    %v2919 = vpop.f32.mrb[0].mxu0
    %2920 = vdwg.mxu0
    %2923 = vrot.lane.b32.xlu0 %v2862, 96
    %v2924 = vpop.permute.xlu0 %2923
    %2925 = vrot.lane.b32.xlu0 %v2863, 96
    %v2926 = vpop.permute.xlu0 %2925
    %2929 = vrot.lane.b32.xlu0 %v2864, 96
    %v2930 = vpop.permute.xlu0 %2929
    %2931 = vrot.lane.b32.xlu0 %v2865, 96
    %v2932 = vpop.permute.xlu0 %2931
    %v2936 = vsel %vm679, %v2924, 0
    %v2939 = vsel %vm679, %v2926, 0
    %2941 = vmatprep.subr.bf16.mxu0 0
    %2942 = vmatpush1.bf16.msra.mxu0 %v2930
    %2943 = vmatprep.subr.bf16.mxu0 0
    %2944 = vmatpush1.bf16.msra.mxu0 %v2932
    %2945 = vmatprep.subr.bf16.mxu0 0
    %2946 = vmatpush1.bf16.msra.mxu0 0
    %2947 = vmatprep.subr.bf16.mxu0 0
    %2948 = vmatpush1.bf16.msra.mxu0 0
    %2949 = vmatprep.subr.bf16.mxu0 0
    %2950 = vmatpush1.bf16.msra.mxu0 0
    %2951 = vmatprep.subr.bf16.mxu0 0
    %2952 = vmatpush1.bf16.msra.mxu0 0
    %2953 = vmatprep.subr.bf16.mxu0 0
    %2954 = vmatpush1.bf16.msra.mxu0 0
    %2955 = vmatprep.subr.bf16.mxu0 0
    %2956 = vmatpush1.bf16.msra.mxu0 0
    %2957 = vmatprep.subr.bf16.mxu0 0
    %2958 = vmatpush1.bf16.msra.mxu0 0
    %2959 = vmatprep.subr.bf16.mxu0 0
    %2960 = vmatpush1.bf16.msra.mxu0 0
    %2961 = vmatprep.subr.bf16.mxu0 0
    %2962 = vmatpush1.bf16.msra.mxu0 0
    %2963 = vmatprep.subr.bf16.mxu0 0
    %2964 = vmatpush1.bf16.msra.mxu0 0
    %2965 = vmatprep.subr.bf16.mxu0 0
    %2966 = vmatpush1.bf16.msra.mxu0 0
    %2967 = vmatprep.subr.bf16.mxu0 0
    %2968 = vmatpush1.bf16.msra.mxu0 0
    %2969 = vmatprep.subr.bf16.mxu0 0
    %2970 = vmatpush1.bf16.msra.mxu0 0
    %2971 = vmatprep.subr.bf16.mxu0 0
    %2972 = vmatpush1.bf16.msra.mxu0 0
    %2973 = vmatprep.mubr.bf16.mxu0 0
    %2974 = vmatmul.mubr.bf16.gmra.mrb[0].mxu0 %v2936
    %v2975 = vpop.f32.mrb[0].mxu0
    %v2976 = vadd.f32 0.0, %v2975
    %v2977 = vpop.f32.mrb[0].mxu0
    %v2978 = vpop.f32.mrb[0].mxu0
    %v2979 = vadd.f32 0.0, %v2978
    %v2980 = vpop.f32.mrb[0].mxu0
    %2981 = vmatprep.mubr.bf16.mxu0 0
    %2982 = vmatmul.mubr.bf16.gmra.mrb[0].mxu0 %v2939
    %v2983 = vpop.f32.mrb[0].mxu0
    %v2984 = vadd.f32 0.0, %v2983
    %v2985 = vpop.f32.mrb[0].mxu0
    %v2986 = vpop.f32.mrb[0].mxu0
    %v2987 = vadd.f32 0.0, %v2986
    %v2988 = vpop.f32.mrb[0].mxu0
    %2989 = vdwg.mxu0
    %2990 = vrot.lane.b32.xlu0 %v2862, 64
    %v2991 = vpop.permute.xlu0 %2990
    %2992 = vrot.lane.b32.xlu0 %v2863, 64
    %v2993 = vpop.permute.xlu0 %2992
    %2994 = vrot.lane.b32.xlu0 %v2864, 64
    %v2995 = vpop.permute.xlu0 %2994
    %2996 = vrot.lane.b32.xlu0 %v2865, 64
    %v2997 = vpop.permute.xlu0 %2996
    %v3001 = vsel %vm679, %v2991, 0
    %v3004 = vsel %vm679, %v2993, 0
    %3006 = vmatprep.subr.bf16.mxu0 0
    %3007 = vmatpush1.bf16.msra.mxu0 %v2995
    %3008 = vmatprep.subr.bf16.mxu0 0
    %3009 = vmatpush1.bf16.msra.mxu0 %v2997
    %3010 = vmatprep.subr.bf16.mxu0 0
    %3011 = vmatpush1.bf16.msra.mxu0 0
    %3012 = vmatprep.subr.bf16.mxu0 0
    %3013 = vmatpush1.bf16.msra.mxu0 0
    %3014 = vmatprep.subr.bf16.mxu0 0
    %3015 = vmatpush1.bf16.msra.mxu0 0
    %3016 = vmatprep.subr.bf16.mxu0 0
    %3017 = vmatpush1.bf16.msra.mxu0 0
    %3018 = vmatprep.subr.bf16.mxu0 0
    %3019 = vmatpush1.bf16.msra.mxu0 0
    %3020 = vmatprep.subr.bf16.mxu0 0
    %3021 = vmatpush1.bf16.msra.mxu0 0
    %3022 = vmatprep.subr.bf16.mxu0 0
    %3023 = vmatpush1.bf16.msra.mxu0 0
    %3024 = vmatprep.subr.bf16.mxu0 0
    %3025 = vmatpush1.bf16.msra.mxu0 0
    %3026 = vmatprep.subr.bf16.mxu0 0
    %3027 = vmatpush1.bf16.msra.mxu0 0
    %3028 = vmatprep.subr.bf16.mxu0 0
    %3029 = vmatpush1.bf16.msra.mxu0 0
    %3030 = vmatprep.subr.bf16.mxu0 0
    %3031 = vmatpush1.bf16.msra.mxu0 0
    %3032 = vmatprep.subr.bf16.mxu0 0
    %3033 = vmatpush1.bf16.msra.mxu0 0
    %3034 = vmatprep.subr.bf16.mxu0 0
    %3035 = vmatpush1.bf16.msra.mxu0 0
    %3036 = vmatprep.subr.bf16.mxu0 0
    %3037 = vmatpush1.bf16.msra.mxu0 0
    %3038 = vmatprep.mubr.bf16.mxu0 0
    %3039 = vmatmul.mubr.bf16.gmra.mrb[0].mxu0 %v3001
    %v3040 = vpop.f32.mrb[0].mxu0
    %v3041 = vadd.f32 0.0, %v3040
    %v3042 = vpop.f32.mrb[0].mxu0
    %v3043 = vpop.f32.mrb[0].mxu0
    %v3044 = vadd.f32 0.0, %v3043
    %v3045 = vpop.f32.mrb[0].mxu0
    %3046 = vmatprep.mubr.bf16.mxu0 0
    %3047 = vmatmul.mubr.bf16.gmra.mrb[0].mxu0 %v3004
    %v3048 = vpop.f32.mrb[0].mxu0
    %v3049 = vadd.f32 0.0, %v3048
    %v3050 = vpop.f32.mrb[0].mxu0
    %v3051 = vpop.f32.mrb[0].mxu0
    %v3052 = vadd.f32 0.0, %v3051
    %v3053 = vpop.f32.mrb[0].mxu0
    %3054 = vdwg.mxu0
    %3055 = vrot.lane.b32.xlu0 %v2862, 32
    %v3056 = vpop.permute.xlu0 %3055
    %3057 = vrot.lane.b32.xlu0 %v2863, 32
    %v3058 = vpop.permute.xlu0 %3057
    %3059 = vrot.lane.b32.xlu0 %v2864, 32
    %v3060 = vpop.permute.xlu0 %3059
    %3061 = vrot.lane.b32.xlu0 %v2865, 32
    %v3062 = vpop.permute.xlu0 %3061
    %v3066 = vsel %vm679, %v3056, 0
    %v3069 = vsel %vm679, %v3058, 0
    %3071 = vmatprep.subr.bf16.mxu0 0
    %3072 = vmatpush1.bf16.msra.mxu0 %v3060
    %3073 = vmatprep.subr.bf16.mxu0 0
    %3074 = vmatpush1.bf16.msra.mxu0 %v3062
    %3075 = vmatprep.subr.bf16.mxu0 0
    %3076 = vmatpush1.bf16.msra.mxu0 0
    %3077 = vmatprep.subr.bf16.mxu0 0
    %3078 = vmatpush1.bf16.msra.mxu0 0
    %3079 = vmatprep.subr.bf16.mxu0 0
    %3080 = vmatpush1.bf16.msra.mxu0 0
    %3081 = vmatprep.subr.bf16.mxu0 0
    %3082 = vmatpush1.bf16.msra.mxu0 0
    %3083 = vmatprep.subr.bf16.mxu0 0
    %3084 = vmatpush1.bf16.msra.mxu0 0
    %3085 = vmatprep.subr.bf16.mxu0 0
    %3086 = vmatpush1.bf16.msra.mxu0 0
    %3087 = vmatprep.subr.bf16.mxu0 0
    %3088 = vmatpush1.bf16.msra.mxu0 0
    %3089 = vmatprep.subr.bf16.mxu0 0
    %3090 = vmatpush1.bf16.msra.mxu0 0
    %3091 = vmatprep.subr.bf16.mxu0 0
    %3092 = vmatpush1.bf16.msra.mxu0 0
    %3093 = vmatprep.subr.bf16.mxu0 0
    %3094 = vmatpush1.bf16.msra.mxu0 0
    %3095 = vmatprep.subr.bf16.mxu0 0
    %3096 = vmatpush1.bf16.msra.mxu0 0
    %3097 = vmatprep.subr.bf16.mxu0 0
    %3098 = vmatpush1.bf16.msra.mxu0 0
    %3099 = vmatprep.subr.bf16.mxu0 0
    %3100 = vmatpush1.bf16.msra.mxu0 0
    %3101 = vmatprep.subr.bf16.mxu0 0
    %3102 = vmatpush1.bf16.msra.mxu0 0
    %3103 = vmatprep.mubr.bf16.mxu0 0
    %3104 = vmatmul.mubr.bf16.gmra.mrb[0].mxu0 %v3066
    %v3105 = vpop.f32.mrb[0].mxu0
    %v3106 = vadd.f32 0.0, %v3105
    %v3107 = vpop.f32.mrb[0].mxu0
    %v3108 = vpop.f32.mrb[0].mxu0
    %v3109 = vadd.f32 0.0, %v3108
    %v3110 = vpop.f32.mrb[0].mxu0
    %3111 = vmatprep.mubr.bf16.mxu0 0
    %3112 = vmatmul.mubr.bf16.gmra.mrb[0].mxu0 %v3069
    %v3113 = vpop.f32.mrb[0].mxu0
    %v3114 = vadd.f32 0.0, %v3113
    %v3115 = vpop.f32.mrb[0].mxu0
    %v3116 = vpop.f32.mrb[0].mxu0
    %v3117 = vadd.f32 0.0, %v3116
    %v3118 = vpop.f32.mrb[0].mxu0
    %3119 = vdwg.mxu0
    %3124 = vrot.lane.b32.xlu0 %v2976, 32
    %v3125 = vpop.permute.xlu0 %3124
    %3126 = vrot.lane.b32.xlu0 %v2979, 32
    %v3127 = vpop.permute.xlu0 %3126
    %3128 = vrot.lane.b32.xlu0 %v2984, 32
    %v3129 = vpop.permute.xlu0 %3128
    %3130 = vrot.lane.b32.xlu0 %v2987, 32
    %v3131 = vpop.permute.xlu0 %3130
    %3140 = vrot.lane.b32.xlu0 %v3041, 64
    %v3141 = vpop.permute.xlu0 %3140
    %3142 = vrot.lane.b32.xlu0 %v3044, 64
    %v3143 = vpop.permute.xlu0 %3142
    %3144 = vrot.lane.b32.xlu0 %v3049, 64
    %v3145 = vpop.permute.xlu0 %3144
    %3146 = vrot.lane.b32.xlu0 %v3052, 64
    %v3147 = vpop.permute.xlu0 %3146
    %3156 = vrot.lane.b32.xlu0 %v3106, 96
    %v3157 = vpop.permute.xlu0 %3156
    %3158 = vrot.lane.b32.xlu0 %v3109, 96
    %v3159 = vpop.permute.xlu0 %3158
    %3160 = vrot.lane.b32.xlu0 %v3114, 96
    %v3161 = vpop.permute.xlu0 %3160
    %3162 = vrot.lane.b32.xlu0 %v3117, 96
    %v3163 = vpop.permute.xlu0 %3162
    %v3168 = vsel %vm679, %v2907, %v3125
    %v3169 = vsel %vm679, %v2910, %v3127
    %v3170 = vsel %vm679, %v2915, %v3129
    %v3171 = vsel %vm679, %v2918, %v3131
    %v3172 = vsel %vm1004, %v3168, %v3141
    %v3173 = vsel %vm1004, %v3169, %v3143
    %v3174 = vsel %vm1004, %v3170, %v3145
    %v3175 = vsel %vm1004, %v3171, %v3147
    %v3176 = vsel %vm1009, %v3172, %v3157
    %v3177 = vsel %vm1009, %v3173, %v3159
    %v3178 = vsel %vm1009, %v3174, %v3161
    %v3179 = vsel %vm1009, %v3175, %v3163
    %s3180 = scalar_lea.vmem %s10, 64
    %v3181 = vld [vmem:[%s3180] sm:$0xf]
    %v3182 = vld [vmem:[%s3180 + $0x4] sm:$0xf]
    %v3183 = vld [vmem:[%s3180 + $0x8] sm:$0xf]
    %v3184 = vld [vmem:[%s3180 + $0xc] sm:$0xf]
    %v3185 = vld [vmem:[%s3180 + $0x10] sm:$0xf]
    %v3186 = vld [vmem:[%s3180 + $0x14] sm:$0xf]
    %v3187 = vld [vmem:[%s3180 + $0x18] sm:$0xf]
    %v3188 = vld [vmem:[%s3180 + $0x1c] sm:$0xf]
    %v3189 = vld [vmem:[%s3180 + $0x20] sm:$0xf]
    %v3190 = vld [vmem:[%s3180 + $0x24] sm:$0xf]
    %v3191 = vld [vmem:[%s3180 + $0x28] sm:$0xf]
    %v3192 = vld [vmem:[%s3180 + $0x2c] sm:$0xf]
    %v3193 = vld [vmem:[%s3180 + $0x30] sm:$0xf]
    %v3194 = vld [vmem:[%s3180 + $0x34] sm:$0xf]
    %v3195 = vld [vmem:[%s3180 + $0x38] sm:$0xf]
    %v3196 = vld [vmem:[%s3180 + $0x3c] sm:$0xf]
    %v3197 = vpack.c.bf16 %v3177, %v3176
    %v3198 = vpack.c.bf16 %v3179, %v3178
    %v3215 = vunpack.c.l.b16 %v3181
    %v3216 = vunpack.c.l.b16 %v3182
    %v3217 = vunpack.c.l.b16 %v3183
    %v3218 = vunpack.c.l.b16 %v3184
    %v3219 = vunpack.c.l.b16 %v3185
    %v3220 = vunpack.c.l.b16 %v3186
    %v3221 = vunpack.c.l.b16 %v3187
    %v3222 = vunpack.c.l.b16 %v3188
    %v3223 = vunpack.c.l.b16 %v3189
    %v3224 = vunpack.c.l.b16 %v3190
    %v3225 = vunpack.c.l.b16 %v3191
    %v3226 = vunpack.c.l.b16 %v3192
    %v3227 = vunpack.c.l.b16 %v3193
    %v3228 = vunpack.c.l.b16 %v3194
    %v3229 = vunpack.c.l.b16 %v3195
    %v3230 = vunpack.c.l.b16 %v3196
    %v3231 = vpack.c.b16 %v3216, %v3215
    %v3232 = vpack.c.b16 %v3218, %v3217
    %v3233 = vpack.c.b16 %v3220, %v3219
    %v3234 = vpack.c.b16 %v3222, %v3221
    %v3235 = vpack.c.b16 %v3224, %v3223
    %v3236 = vpack.c.b16 %v3226, %v3225
    %v3237 = vpack.c.b16 %v3228, %v3227
    %v3238 = vpack.c.b16 %v3230, %v3229
    %3247 = vmatprep.subr.bf16.mxu0 0
    %3248 = vmatpush1.bf16.msra.mxu0 %v3231
    %3249 = vmatprep.subr.bf16.mxu0 0
    %3250 = vmatpush1.bf16.msra.mxu0 %v3232
    %3251 = vmatprep.subr.bf16.mxu0 0
    %3252 = vmatpush1.bf16.msra.mxu0 %v3233
    %3253 = vmatprep.subr.bf16.mxu0 0
    %3254 = vmatpush1.bf16.msra.mxu0 %v3234
    %3255 = vmatprep.subr.bf16.mxu0 0
    %3256 = vmatpush1.bf16.msra.mxu0 %v3235
    %3257 = vmatprep.subr.bf16.mxu0 0
    %3258 = vmatpush1.bf16.msra.mxu0 %v3236
    %3259 = vmatprep.subr.bf16.mxu0 0
    %3260 = vmatpush1.bf16.msra.mxu0 %v3237
    %3261 = vmatprep.subr.bf16.mxu0 0
    %3262 = vmatpush1.bf16.msra.mxu0 %v3238
    %3263 = vmatprep.subr.bf16.mxu0 0
    %3264 = vmatpush1.bf16.msra.mxu0 0
    %3265 = vmatprep.subr.bf16.mxu0 0
    %3266 = vmatpush1.bf16.msra.mxu0 0
    %3267 = vmatprep.subr.bf16.mxu0 0
    %3268 = vmatpush1.bf16.msra.mxu0 0
    %3269 = vmatprep.subr.bf16.mxu0 0
    %3270 = vmatpush1.bf16.msra.mxu0 0
    %3271 = vmatprep.subr.bf16.mxu0 0
    %3272 = vmatpush1.bf16.msra.mxu0 0
    %3273 = vmatprep.subr.bf16.mxu0 0
    %3274 = vmatpush1.bf16.msra.mxu0 0
    %3275 = vmatprep.subr.bf16.mxu0 0
    %3276 = vmatpush1.bf16.msra.mxu0 0
    %3277 = vmatprep.subr.bf16.mxu0 0
    %3278 = vmatpush1.bf16.msra.mxu0 0
    %3279 = vmatprep.mubr.bf16.mxu0 0
    %3280 = vmatmul.mubr.bf16.gmra.mrb[0].mxu0 %v3197
    %v3281 = vpop.f32.mrb[0].mxu0
    %v3282 = vadd.f32 0.0, %v3281
    %v3283 = vpop.f32.mrb[0].mxu0
    %v3284 = vpop.f32.mrb[0].mxu0
    %v3285 = vadd.f32 0.0, %v3284
    %v3286 = vpop.f32.mrb[0].mxu0
    %3287 = vmatprep.mubr.bf16.mxu0 0
    %3288 = vmatmul.mubr.bf16.gmra.mrb[0].mxu0 %v3198
    %v3289 = vpop.f32.mrb[0].mxu0
    %v3290 = vadd.f32 0.0, %v3289
    %v3291 = vpop.f32.mrb[0].mxu0
    %v3292 = vpop.f32.mrb[0].mxu0
    %v3293 = vadd.f32 0.0, %v3292
    %v3294 = vpop.f32.mrb[0].mxu0
    %3295 = vdwg.mxu0
    %v3296 = vadd.f32 %v2152, %v3282
    %v3297 = vadd.f32 %v2153, %v3285
    %v3298 = vadd.f32 %v2154, %v3290
    %v3299 = vadd.f32 %v2155, %v3293
    %s3300 = scalar_lea.vmem %s11, 1
    %v3301 = vld [vmem:[%s3300] sm:$0x1]
    %v3303 = vlaneseq
    %v3304 = vshrl.u32 %v3303, 7
    %v3305 = vsub.s32 0, %v3304
    %v3306 = vrot.slane %v3301, %v3305
    %v3308 = vadd.f32 %v3296, %v3306
    %v3309 = vadd.f32 %v3297, %v3306
    %v3310 = vadd.f32 %v3298, %v3306
    %v3311 = vadd.f32 %v3299, %v3306
    %s3312 = scalar_lea.vmem %s12, 1
    %v3313 = vld [vmem:[%s3312] sm:$0x1]
    %s3314 = scalar_lea.vmem %s13, 1
    %v3315 = vld [vmem:[%s3314] sm:$0x1]
    %3316 = vadd.xlane.f32.xlu0 %v3308
    %v3317 = vpop.xlane.xlu0 %3316
    %3318 = vadd.xlane.f32.xlu0 %v3309
    %v3319 = vpop.xlane.xlu0 %3318
    %3320 = vadd.xlane.f32.xlu0 %v3310
    %v3321 = vpop.xlane.xlu0 %3320
    %3322 = vadd.xlane.f32.xlu0 %v3311
    %v3323 = vpop.xlane.xlu0 %3322
    %v3324 = vmul.f32 %v3317, %v313
    %v3325 = vmul.f32 %v3319, %v313
    %v3326 = vmul.f32 %v3321, %v313
    %v3327 = vmul.f32 %v3323, %v313
    %v3328 = vsub.f32 %v3308, %v3324
    %v3329 = vsub.f32 %v3309, %v3325
    %v3330 = vsub.f32 %v3310, %v3326
    %v3331 = vsub.f32 %v3311, %v3327
    %v3332 = vmul.f32 %v3328, %v3328
    %v3333 = vmul.f32 %v3329, %v3329
    %v3334 = vmul.f32 %v3330, %v3330
    %v3335 = vmul.f32 %v3331, %v3331
    %3336 = vadd.xlane.f32.xlu0 %v3332
    %v3337 = vpop.xlane.xlu0 %3336
    %3338 = vadd.xlane.f32.xlu0 %v3333
    %v3339 = vpop.xlane.xlu0 %3338
    %3340 = vadd.xlane.f32.xlu0 %v3334
    %v3341 = vpop.xlane.xlu0 %3340
    %3342 = vadd.xlane.f32.xlu0 %v3335
    %v3343 = vpop.xlane.xlu0 %3342
    %v3344 = vmul.f32 %v3337, %v313
    %v3345 = vmul.f32 %v3339, %v313
    %v3346 = vmul.f32 %v3341, %v313
    %v3347 = vmul.f32 %v3343, %v313
    %v3348 = vadd.f32 %v3344, 1e-12
    %v3349 = vadd.f32 %v3345, 1e-12
    %v3350 = vadd.f32 %v3346, 1e-12
    %v3351 = vadd.f32 %v3347, 1e-12
    %v3352 = vrsqrt.pop %v3348
    %v3353 = vrsqrt.pop %v3349
    %v3354 = vrsqrt.pop %v3350
    %v3355 = vrsqrt.pop %v3351
    %v3356 = vmul.f32 %v3328, %v3352
    %v3357 = vmul.f32 %v3329, %v3353
    %v3358 = vmul.f32 %v3330, %v3354
    %v3359 = vmul.f32 %v3331, %v3355
    %v3361 = vlaneseq
    %v3362 = vshrl.u32 %v3361, 7
    %v3363 = vsub.s32 0, %v3362
    %v3364 = vrot.slane %v3313, %v3363
    %v3366 = vmul.f32 %v3356, %v3364
    %v3367 = vmul.f32 %v3357, %v3364
    %v3368 = vmul.f32 %v3358, %v3364
    %v3369 = vmul.f32 %v3359, %v3364
    %v3371 = vlaneseq
    %v3372 = vshrl.u32 %v3371, 7
    %v3373 = vsub.s32 0, %v3372
    %v3374 = vrot.slane %v3315, %v3373
    %v3376 = vadd.f32 %v3366, %v3374
    %v3377 = vadd.f32 %v3367, %v3374
    %v3378 = vadd.f32 %v3368, %v3374
    %v3379 = vadd.f32 %v3369, %v3374
    %s3380 = scalar_lea.vmem %s14, 128
    %v3381 = vld [vmem:[%s3380] sm:$0xff]
    %v3382 = vld [vmem:[%s3380 + $0x8] sm:$0xff]
    %v3383 = vld [vmem:[%s3380 + $0x10] sm:$0xff]
    %v3384 = vld [vmem:[%s3380 + $0x18] sm:$0xff]
    %v3385 = vld [vmem:[%s3380 + $0x20] sm:$0xff]
    %v3386 = vld [vmem:[%s3380 + $0x28] sm:$0xff]
    %v3387 = vld [vmem:[%s3380 + $0x30] sm:$0xff]
    %v3388 = vld [vmem:[%s3380 + $0x38] sm:$0xff]
    %v3389 = vld [vmem:[%s3380 + $0x40] sm:$0xff]
    %v3390 = vld [vmem:[%s3380 + $0x48] sm:$0xff]
    %v3391 = vld [vmem:[%s3380 + $0x50] sm:$0xff]
    %v3392 = vld [vmem:[%s3380 + $0x58] sm:$0xff]
    %v3393 = vld [vmem:[%s3380 + $0x60] sm:$0xff]
    %v3394 = vld [vmem:[%s3380 + $0x68] sm:$0xff]
    %v3395 = vld [vmem:[%s3380 + $0x70] sm:$0xff]
    %v3396 = vld [vmem:[%s3380 + $0x78] sm:$0xff]
    %v3397 = vpack.c.bf16 %v3377, %v3376
    %v3398 = vpack.c.bf16 %v3379, %v3378
    %s3399 = scalar_lea.vmem %s15, 2
    %v3400 = vld [vmem:[%s3399] sm:$0x3]
    %v3402 = vlaneseq
    %v3403 = vshrl.u32 %v3402, 7
    %v3404 = vsub.s32 0, %v3403
    %v3405 = vrot.slane %v3400, %v3404
    %v3406 = vlaneseq
    %v3407 = vshrl.u32 %v3406, 7
    %v3408 = vsub.s32 1, %v3407
    %v3409 = vrot.slane %v3400, %v3408
    %v3428 = vunpack.c.l.b16 %v3381
    %v3429 = vunpack.c.h.b16 %v3381
    %v3430 = vunpack.c.l.b16 %v3382
    %v3431 = vunpack.c.h.b16 %v3382
    %v3432 = vunpack.c.l.b16 %v3383
    %v3433 = vunpack.c.h.b16 %v3383
    %v3434 = vunpack.c.l.b16 %v3384
    %v3435 = vunpack.c.h.b16 %v3384
    %v3436 = vunpack.c.l.b16 %v3385
    %v3437 = vunpack.c.h.b16 %v3385
    %v3438 = vunpack.c.l.b16 %v3386
    %v3439 = vunpack.c.h.b16 %v3386
    %v3440 = vunpack.c.l.b16 %v3387
    %v3441 = vunpack.c.h.b16 %v3387
    %v3442 = vunpack.c.l.b16 %v3388
    %v3443 = vunpack.c.h.b16 %v3388
    %v3444 = vunpack.c.l.b16 %v3389
    %v3445 = vunpack.c.h.b16 %v3389
    %v3446 = vunpack.c.l.b16 %v3390
    %v3447 = vunpack.c.h.b16 %v3390
    %v3448 = vunpack.c.l.b16 %v3391
    %v3449 = vunpack.c.h.b16 %v3391
    %v3450 = vunpack.c.l.b16 %v3392
    %v3451 = vunpack.c.h.b16 %v3392
    %v3452 = vunpack.c.l.b16 %v3393
    %v3453 = vunpack.c.h.b16 %v3393
    %v3454 = vunpack.c.l.b16 %v3394
    %v3455 = vunpack.c.h.b16 %v3394
    %v3456 = vunpack.c.l.b16 %v3395
    %v3457 = vunpack.c.h.b16 %v3395
    %v3458 = vunpack.c.l.b16 %v3396
    %v3459 = vunpack.c.h.b16 %v3396
    %v3460 = vpack.c.b16 %v3430, %v3428
    %v3461 = vpack.c.b16 %v3431, %v3429
    %v3462 = vpack.c.b16 %v3434, %v3432
    %v3463 = vpack.c.b16 %v3435, %v3433
    %v3464 = vpack.c.b16 %v3438, %v3436
    %v3465 = vpack.c.b16 %v3439, %v3437
    %v3466 = vpack.c.b16 %v3442, %v3440
    %v3467 = vpack.c.b16 %v3443, %v3441
    %v3468 = vpack.c.b16 %v3446, %v3444
    %v3469 = vpack.c.b16 %v3447, %v3445
    %v3470 = vpack.c.b16 %v3450, %v3448
    %v3471 = vpack.c.b16 %v3451, %v3449
    %v3472 = vpack.c.b16 %v3454, %v3452
    %v3473 = vpack.c.b16 %v3455, %v3453
    %v3474 = vpack.c.b16 %v3458, %v3456
    %v3475 = vpack.c.b16 %v3459, %v3457
    %3492 = vmatprep.subr.bf16.mxu0 %v3461
    %3493 = vmatpush1.bf16.msra.mxu0 %v3460
    %3494 = vmatprep.subr.bf16.mxu0 %v3463
    %3495 = vmatpush1.bf16.msra.mxu0 %v3462
    %3496 = vmatprep.subr.bf16.mxu0 %v3465
    %3497 = vmatpush1.bf16.msra.mxu0 %v3464
    %3498 = vmatprep.subr.bf16.mxu0 %v3467
    %3499 = vmatpush1.bf16.msra.mxu0 %v3466
    %3500 = vmatprep.subr.bf16.mxu0 %v3469
    %3501 = vmatpush1.bf16.msra.mxu0 %v3468
    %3502 = vmatprep.subr.bf16.mxu0 %v3471
    %3503 = vmatpush1.bf16.msra.mxu0 %v3470
    %3504 = vmatprep.subr.bf16.mxu0 %v3473
    %3505 = vmatpush1.bf16.msra.mxu0 %v3472
    %3506 = vmatprep.subr.bf16.mxu0 %v3475
    %3507 = vmatpush1.bf16.msra.mxu0 %v3474
    %3508 = vmatprep.subr.bf16.mxu0 0
    %3509 = vmatpush1.bf16.msra.mxu0 0
    %3510 = vmatprep.subr.bf16.mxu0 0
    %3511 = vmatpush1.bf16.msra.mxu0 0
    %3512 = vmatprep.subr.bf16.mxu0 0
    %3513 = vmatpush1.bf16.msra.mxu0 0
    %3514 = vmatprep.subr.bf16.mxu0 0
    %3515 = vmatpush1.bf16.msra.mxu0 0
    %3516 = vmatprep.subr.bf16.mxu0 0
    %3517 = vmatpush1.bf16.msra.mxu0 0
    %3518 = vmatprep.subr.bf16.mxu0 0
    %3519 = vmatpush1.bf16.msra.mxu0 0
    %3520 = vmatprep.subr.bf16.mxu0 0
    %3521 = vmatpush1.bf16.msra.mxu0 0
    %3522 = vmatprep.subr.bf16.mxu0 0
    %3523 = vmatpush1.bf16.msra.mxu0 0
    %3524 = vmatprep.mubr.bf16.mxu0 0
    %3525 = vmatmul.mubr.bf16.gmra.mrb[0].mxu0 %v3397
    %v3526 = vpop.f32.mrb[0].mxu0
    %v3527 = vadd.f32 %v3405, %v3526
    %v3528 = vpop.f32.mrb[0].mxu0
    %v3529 = vadd.f32 %v3409, %v3528
    %v3530 = vpop.f32.mrb[0].mxu0
    %v3531 = vadd.f32 %v3405, %v3530
    %v3532 = vpop.f32.mrb[0].mxu0
    %v3533 = vadd.f32 %v3409, %v3532
    %3534 = vmatprep.mubr.bf16.mxu0 0
    %3535 = vmatmul.mubr.bf16.gmra.mrb[0].mxu0 %v3398
    %v3536 = vpop.f32.mrb[0].mxu0
    %v3537 = vadd.f32 %v3405, %v3536
    %v3538 = vpop.f32.mrb[0].mxu0
    %v3539 = vadd.f32 %v3409, %v3538
    %v3540 = vpop.f32.mrb[0].mxu0
    %v3541 = vadd.f32 %v3405, %v3540
    %v3542 = vpop.f32.mrb[0].mxu0
    %v3543 = vadd.f32 %v3409, %v3542
    %3544 = vdwg.mxu0
    %v3545 = vmul.f32 %v3527, 0.5
    %v3546 = vmul.f32 %v3529, 0.5
    %v3547 = vmul.f32 %v3531, 0.5
    %v3548 = vmul.f32 %v3533, 0.5
    %v3549 = vmul.f32 %v3537, 0.5
    %v3550 = vmul.f32 %v3539, 0.5
    %v3551 = vmul.f32 %v3541, 0.5
    %v3552 = vmul.f32 %v3543, 0.5
    %v3553 = vmul.f32 %v3527, 0.044715
    %v3554 = vmul.f32 %v3529, 0.044715
    %v3555 = vmul.f32 %v3531, 0.044715
    %v3556 = vmul.f32 %v3533, 0.044715
    %v3557 = vmul.f32 %v3537, 0.044715
    %v3558 = vmul.f32 %v3539, 0.044715
    %v3559 = vmul.f32 %v3541, 0.044715
    %v3560 = vmul.f32 %v3543, 0.044715
    %v3561 = vmul.f32 %v3553, %v3527
    %v3562 = vmul.f32 %v3554, %v3529
    %v3563 = vmul.f32 %v3555, %v3531
    %v3564 = vmul.f32 %v3556, %v3533
    %v3565 = vmul.f32 %v3557, %v3537
    %v3566 = vmul.f32 %v3558, %v3539
    %v3567 = vmul.f32 %v3559, %v3541
    %v3568 = vmul.f32 %v3560, %v3543
    %v3569 = vmul.f32 %v3561, %v3527
    %v3570 = vmul.f32 %v3562, %v3529
    %v3571 = vmul.f32 %v3563, %v3531
    %v3572 = vmul.f32 %v3564, %v3533
    %v3573 = vmul.f32 %v3565, %v3537
    %v3574 = vmul.f32 %v3566, %v3539
    %v3575 = vmul.f32 %v3567, %v3541
    %v3576 = vmul.f32 %v3568, %v3543
    %v3577 = vadd.f32 %v3527, %v3569
    %v3578 = vadd.f32 %v3529, %v3570
    %v3579 = vadd.f32 %v3531, %v3571
    %v3580 = vadd.f32 %v3533, %v3572
    %v3581 = vadd.f32 %v3537, %v3573
    %v3582 = vadd.f32 %v3539, %v3574
    %v3583 = vadd.f32 %v3541, %v3575
    %v3584 = vadd.f32 %v3543, %v3576
    %v3585 = vmul.f32 %v3577, 0.7978846
    %v3586 = vmul.f32 %v3578, 0.7978846
    %v3587 = vmul.f32 %v3579, 0.7978846
    %v3588 = vmul.f32 %v3580, 0.7978846
    %v3589 = vmul.f32 %v3581, 0.7978846
    %v3590 = vmul.f32 %v3582, 0.7978846
    %v3591 = vmul.f32 %v3583, 0.7978846
    %v3592 = vmul.f32 %v3584, 0.7978846
    %v3593 = vtanh.pop %v3585
    %v3594 = vtanh.pop %v3586
    %v3595 = vtanh.pop %v3587
    %v3596 = vtanh.pop %v3588
    %v3597 = vtanh.pop %v3589
    %v3598 = vtanh.pop %v3590
    %v3599 = vtanh.pop %v3591
    %v3600 = vtanh.pop %v3592
    %v3601 = vadd.f32 %v3593, 1.0
    %v3602 = vadd.f32 %v3594, 1.0
    %v3603 = vadd.f32 %v3595, 1.0
    %v3604 = vadd.f32 %v3596, 1.0
    %v3605 = vadd.f32 %v3597, 1.0
    %v3606 = vadd.f32 %v3598, 1.0
    %v3607 = vadd.f32 %v3599, 1.0
    %v3608 = vadd.f32 %v3600, 1.0
    %v3609 = vmul.f32 %v3545, %v3601
    %v3610 = vmul.f32 %v3546, %v3602
    %v3611 = vmul.f32 %v3547, %v3603
    %v3612 = vmul.f32 %v3548, %v3604
    %v3613 = vmul.f32 %v3549, %v3605
    %v3614 = vmul.f32 %v3550, %v3606
    %v3615 = vmul.f32 %v3551, %v3607
    %v3616 = vmul.f32 %v3552, %v3608
    %s3617 = scalar_lea.vmem %s16, 128
    %v3618 = vld [vmem:[%s3617] sm:$0xf]
    %v3619 = vld [vmem:[%s3617 + $0x4] sm:$0xf]
    %v3620 = vld [vmem:[%s3617 + $0x8] sm:$0xf]
    %v3621 = vld [vmem:[%s3617 + $0xc] sm:$0xf]
    %v3622 = vld [vmem:[%s3617 + $0x10] sm:$0xf]
    %v3623 = vld [vmem:[%s3617 + $0x14] sm:$0xf]
    %v3624 = vld [vmem:[%s3617 + $0x18] sm:$0xf]
    %v3625 = vld [vmem:[%s3617 + $0x1c] sm:$0xf]
    %v3626 = vld [vmem:[%s3617 + $0x20] sm:$0xf]
    %v3627 = vld [vmem:[%s3617 + $0x24] sm:$0xf]
    %v3628 = vld [vmem:[%s3617 + $0x28] sm:$0xf]
    %v3629 = vld [vmem:[%s3617 + $0x2c] sm:$0xf]
    %v3630 = vld [vmem:[%s3617 + $0x30] sm:$0xf]
    %v3631 = vld [vmem:[%s3617 + $0x34] sm:$0xf]
    %v3632 = vld [vmem:[%s3617 + $0x38] sm:$0xf]
    %v3633 = vld [vmem:[%s3617 + $0x3c] sm:$0xf]
    %v3634 = vld [vmem:[%s3617 + $0x40] sm:$0xf]
    %v3635 = vld [vmem:[%s3617 + $0x44] sm:$0xf]
    %v3636 = vld [vmem:[%s3617 + $0x48] sm:$0xf]
    %v3637 = vld [vmem:[%s3617 + $0x4c] sm:$0xf]
    %v3638 = vld [vmem:[%s3617 + $0x50] sm:$0xf]
    %v3639 = vld [vmem:[%s3617 + $0x54] sm:$0xf]
    %v3640 = vld [vmem:[%s3617 + $0x58] sm:$0xf]
    %v3641 = vld [vmem:[%s3617 + $0x5c] sm:$0xf]
    %v3642 = vld [vmem:[%s3617 + $0x60] sm:$0xf]
    %v3643 = vld [vmem:[%s3617 + $0x64] sm:$0xf]
    %v3644 = vld [vmem:[%s3617 + $0x68] sm:$0xf]
    %v3645 = vld [vmem:[%s3617 + $0x6c] sm:$0xf]
    %v3646 = vld [vmem:[%s3617 + $0x70] sm:$0xf]
    %v3647 = vld [vmem:[%s3617 + $0x74] sm:$0xf]
    %v3648 = vld [vmem:[%s3617 + $0x78] sm:$0xf]
    %v3649 = vld [vmem:[%s3617 + $0x7c] sm:$0xf]
    %v3650 = vpack.c.bf16 %v3611, %v3609
    %v3651 = vpack.c.bf16 %v3612, %v3610
    %v3652 = vpack.c.bf16 %v3615, %v3613
    %v3653 = vpack.c.bf16 %v3616, %v3614
    %v3686 = vunpack.c.l.b16 %v3618
    %v3687 = vunpack.c.l.b16 %v3619
    %v3688 = vunpack.c.l.b16 %v3620
    %v3689 = vunpack.c.l.b16 %v3621
    %v3690 = vunpack.c.l.b16 %v3622
    %v3691 = vunpack.c.l.b16 %v3623
    %v3692 = vunpack.c.l.b16 %v3624
    %v3693 = vunpack.c.l.b16 %v3625
    %v3694 = vunpack.c.l.b16 %v3626
    %v3695 = vunpack.c.l.b16 %v3627
    %v3696 = vunpack.c.l.b16 %v3628
    %v3697 = vunpack.c.l.b16 %v3629
    %v3698 = vunpack.c.l.b16 %v3630
    %v3699 = vunpack.c.l.b16 %v3631
    %v3700 = vunpack.c.l.b16 %v3632
    %v3701 = vunpack.c.l.b16 %v3633
    %v3702 = vunpack.c.l.b16 %v3634
    %v3703 = vunpack.c.l.b16 %v3635
    %v3704 = vunpack.c.l.b16 %v3636
    %v3705 = vunpack.c.l.b16 %v3637
    %v3706 = vunpack.c.l.b16 %v3638
    %v3707 = vunpack.c.l.b16 %v3639
    %v3708 = vunpack.c.l.b16 %v3640
    %v3709 = vunpack.c.l.b16 %v3641
    %v3710 = vunpack.c.l.b16 %v3642
    %v3711 = vunpack.c.l.b16 %v3643
    %v3712 = vunpack.c.l.b16 %v3644
    %v3713 = vunpack.c.l.b16 %v3645
    %v3714 = vunpack.c.l.b16 %v3646
    %v3715 = vunpack.c.l.b16 %v3647
    %v3716 = vunpack.c.l.b16 %v3648
    %v3717 = vunpack.c.l.b16 %v3649
    %v3718 = vpack.c.b16 %v3687, %v3686
    %v3719 = vpack.c.b16 %v3689, %v3688
    %v3720 = vpack.c.b16 %v3691, %v3690
    %v3721 = vpack.c.b16 %v3693, %v3692
    %v3722 = vpack.c.b16 %v3695, %v3694
    %v3723 = vpack.c.b16 %v3697, %v3696
    %v3724 = vpack.c.b16 %v3699, %v3698
    %v3725 = vpack.c.b16 %v3701, %v3700
    %v3726 = vpack.c.b16 %v3703, %v3702
    %v3727 = vpack.c.b16 %v3705, %v3704
    %v3728 = vpack.c.b16 %v3707, %v3706
    %v3729 = vpack.c.b16 %v3709, %v3708
    %v3730 = vpack.c.b16 %v3711, %v3710
    %v3731 = vpack.c.b16 %v3713, %v3712
    %v3732 = vpack.c.b16 %v3715, %v3714
    %v3733 = vpack.c.b16 %v3717, %v3716
    %3750 = vmatprep.subr.bf16.mxu0 0
    %3751 = vmatpush1.bf16.msra.mxu0 %v3718
    %3752 = vmatprep.subr.bf16.mxu0 0
    %3753 = vmatpush1.bf16.msra.mxu0 %v3719
    %3754 = vmatprep.subr.bf16.mxu0 0
    %3755 = vmatpush1.bf16.msra.mxu0 %v3720
    %3756 = vmatprep.subr.bf16.mxu0 0
    %3757 = vmatpush1.bf16.msra.mxu0 %v3721
    %3758 = vmatprep.subr.bf16.mxu0 0
    %3759 = vmatpush1.bf16.msra.mxu0 %v3722
    %3760 = vmatprep.subr.bf16.mxu0 0
    %3761 = vmatpush1.bf16.msra.mxu0 %v3723
    %3762 = vmatprep.subr.bf16.mxu0 0
    %3763 = vmatpush1.bf16.msra.mxu0 %v3724
    %3764 = vmatprep.subr.bf16.mxu0 0
    %3765 = vmatpush1.bf16.msra.mxu0 %v3725
    %3766 = vmatprep.subr.bf16.mxu0 0
    %3767 = vmatpush1.bf16.msra.mxu0 %v3726
    %3768 = vmatprep.subr.bf16.mxu0 0
    %3769 = vmatpush1.bf16.msra.mxu0 %v3727
    %3770 = vmatprep.subr.bf16.mxu0 0
    %3771 = vmatpush1.bf16.msra.mxu0 %v3728
    %3772 = vmatprep.subr.bf16.mxu0 0
    %3773 = vmatpush1.bf16.msra.mxu0 %v3729
    %3774 = vmatprep.subr.bf16.mxu0 0
    %3775 = vmatpush1.bf16.msra.mxu0 %v3730
    %3776 = vmatprep.subr.bf16.mxu0 0
    %3777 = vmatpush1.bf16.msra.mxu0 %v3731
    %3778 = vmatprep.subr.bf16.mxu0 0
    %3779 = vmatpush1.bf16.msra.mxu0 %v3732
    %3780 = vmatprep.subr.bf16.mxu0 0
    %3781 = vmatpush1.bf16.msra.mxu0 %v3733
    %3782 = vmatprep.mubr.bf16.mxu0 %v3651
    %3783 = vmatmul.mubr.bf16.gmra.mrb[0].mxu0 %v3650
    %v3784 = vpop.f32.mrb[0].mxu0
    %v3785 = vadd.f32 0.0, %v3784
    %v3786 = vpop.f32.mrb[0].mxu0
    %v3787 = vpop.f32.mrb[0].mxu0
    %v3788 = vpop.f32.mrb[0].mxu0
    %3789 = vmatprep.mubr.bf16.mxu0 %v3653
    %3790 = vmatmul.mubr.bf16.gmra.mrb[0].mxu0 %v3652
    %v3791 = vpop.f32.mrb[0].mxu0
    %v3792 = vadd.f32 0.0, %v3791
    %v3793 = vpop.f32.mrb[0].mxu0
    %v3794 = vpop.f32.mrb[0].mxu0
    %v3795 = vpop.f32.mrb[0].mxu0
    %3796 = vdwg.mxu0
    %v3797 = vadd.f32 %v3376, %v3785
    %v3798 = vadd.f32 %v3378, %v3792
    %s3799 = scalar_lea.vmem %s17, 1
    %v3800 = vld [vmem:[%s3799] sm:$0x1]
    %v3802 = vlaneseq
    %v3803 = vshrl.u32 %v3802, 7
    %v3804 = vsub.s32 0, %v3803
    %v3805 = vrot.slane %v3800, %v3804
    %v3807 = vadd.f32 %v3797, %v3805
    %v3808 = vadd.f32 %v3798, %v3805
    %s3809 = scalar_lea.vmem %s18, 1
    %v3810 = vld [vmem:[%s3809] sm:$0x1]
    %s3811 = scalar_lea.vmem %s19, 1
    %v3812 = vld [vmem:[%s3811] sm:$0x1]
    %3813 = vadd.xlane.f32.xlu0 %v3807
    %v3814 = vpop.xlane.xlu0 %3813
    %3815 = vadd.xlane.f32.xlu0 %v3808
    %v3816 = vpop.xlane.xlu0 %3815
    %v3817 = vmul.f32 %v3814, %v313
    %v3818 = vmul.f32 %v3816, %v313
    %v3819 = vsub.f32 %v3807, %v3817
    %v3820 = vsub.f32 %v3808, %v3818
    %v3821 = vmul.f32 %v3819, %v3819
    %v3822 = vmul.f32 %v3820, %v3820
    %3823 = vadd.xlane.f32.xlu0 %v3821
    %v3824 = vpop.xlane.xlu0 %3823
    %3825 = vadd.xlane.f32.xlu0 %v3822
    %v3826 = vpop.xlane.xlu0 %3825
    %v3827 = vmul.f32 %v3824, %v313
    %v3828 = vmul.f32 %v3826, %v313
    %v3829 = vadd.f32 %v3827, 1e-12
    %v3830 = vadd.f32 %v3828, 1e-12
    %v3831 = vrsqrt.pop %v3829
    %v3832 = vrsqrt.pop %v3830
    %v3833 = vmul.f32 %v3819, %v3831
    %v3834 = vmul.f32 %v3820, %v3832
    %v3836 = vlaneseq
    %v3837 = vshrl.u32 %v3836, 7
    %v3838 = vsub.s32 0, %v3837
    %v3839 = vrot.slane %v3810, %v3838
    %v3841 = vmul.f32 %v3833, %v3839
    %v3842 = vmul.f32 %v3834, %v3839
    %v3844 = vlaneseq
    %v3845 = vshrl.u32 %v3844, 7
    %v3846 = vsub.s32 0, %v3845
    %v3847 = vrot.slane %v3812, %v3846
    %v3849 = vadd.f32 %v3841, %v3847
    %v3850 = vadd.f32 %v3842, %v3847
    %v3852 = vrot.slane %v3850, 7
    %vm3854 = vcmask 1040384
    %v3855 = vsel %vm3854, %v3849, %v3852
    %v3856 = vld [vmem:[%s21] sm:$0xf]
    %v3857 = vld [vmem:[%s21 + $0x4] sm:$0xf]
    %v3858 = vld [vmem:[%s21 + $0x8] sm:$0xf]
    %v3859 = vld [vmem:[%s21 + $0xc] sm:$0xf]
    %v3860 = vld [vmem:[%s21 + $0x10] sm:$0xf]
    %v3861 = vld [vmem:[%s21 + $0x14] sm:$0xf]
    %v3862 = vld [vmem:[%s21 + $0x18] sm:$0xf]
    %v3863 = vld [vmem:[%s21 + $0x1c] sm:$0xf]
    %v3864 = vld [vmem:[%s21 + $0x20] sm:$0xf]
    %v3865 = vld [vmem:[%s21 + $0x24] sm:$0xf]
    %v3866 = vld [vmem:[%s21 + $0x28] sm:$0xf]
    %v3867 = vld [vmem:[%s21 + $0x2c] sm:$0xf]
    %v3868 = vld [vmem:[%s21 + $0x30] sm:$0xf]
    %v3869 = vld [vmem:[%s21 + $0x34] sm:$0xf]
    %v3870 = vld [vmem:[%s21 + $0x38] sm:$0xf]
    %v3871 = vld [vmem:[%s21 + $0x3c] sm:$0xf]
    %v3872 = vpack.c.bf16 %v3855, %v3855
    %v3873 = vld [vmem:[%s22] sm:$0x1]
    %v3875 = vlaneseq
    %v3876 = vshrl.u32 %v3875, 7
    %v3877 = vsub.s32 0, %v3876
    %v3878 = vrot.slane %v3873, %v3877
    %v3896 = vunpack.c.l.b16 %v3856
    %v3897 = vunpack.c.l.b16 %v3857
    %v3898 = vunpack.c.l.b16 %v3858
    %v3899 = vunpack.c.l.b16 %v3859
    %v3900 = vunpack.c.l.b16 %v3860
    %v3901 = vunpack.c.l.b16 %v3861
    %v3902 = vunpack.c.l.b16 %v3862
    %v3903 = vunpack.c.l.b16 %v3863
    %v3904 = vunpack.c.l.b16 %v3864
    %v3905 = vunpack.c.l.b16 %v3865
    %v3906 = vunpack.c.l.b16 %v3866
    %v3907 = vunpack.c.l.b16 %v3867
    %v3908 = vunpack.c.l.b16 %v3868
    %v3909 = vunpack.c.l.b16 %v3869
    %v3910 = vunpack.c.l.b16 %v3870
    %v3911 = vunpack.c.l.b16 %v3871
    %v3912 = vpack.c.b16 %v3897, %v3896
    %v3913 = vpack.c.b16 %v3899, %v3898
    %v3914 = vpack.c.b16 %v3901, %v3900
    %v3915 = vpack.c.b16 %v3903, %v3902
    %v3916 = vpack.c.b16 %v3905, %v3904
    %v3917 = vpack.c.b16 %v3907, %v3906
    %v3918 = vpack.c.b16 %v3909, %v3908
    %v3919 = vpack.c.b16 %v3911, %v3910
    %3928 = vmatprep.subr.bf16.mxu0 0
    %3929 = vmatpush1.bf16.msra.mxu0 %v3912
    %3930 = vmatprep.subr.bf16.mxu0 0
    %3931 = vmatpush1.bf16.msra.mxu0 %v3913
    %3932 = vmatprep.subr.bf16.mxu0 0
    %3933 = vmatpush1.bf16.msra.mxu0 %v3914
    %3934 = vmatprep.subr.bf16.mxu0 0
    %3935 = vmatpush1.bf16.msra.mxu0 %v3915
    %3936 = vmatprep.subr.bf16.mxu0 0
    %3937 = vmatpush1.bf16.msra.mxu0 %v3916
    %3938 = vmatprep.subr.bf16.mxu0 0
    %3939 = vmatpush1.bf16.msra.mxu0 %v3917
    %3940 = vmatprep.subr.bf16.mxu0 0
    %3941 = vmatpush1.bf16.msra.mxu0 %v3918
    %3942 = vmatprep.subr.bf16.mxu0 0
    %3943 = vmatpush1.bf16.msra.mxu0 %v3919
    %3944 = vmatprep.subr.bf16.mxu0 0
    %3945 = vmatpush1.bf16.msra.mxu0 0
    %3946 = vmatprep.subr.bf16.mxu0 0
    %3947 = vmatpush1.bf16.msra.mxu0 0
    %3948 = vmatprep.subr.bf16.mxu0 0
    %3949 = vmatpush1.bf16.msra.mxu0 0
    %3950 = vmatprep.subr.bf16.mxu0 0
    %3951 = vmatpush1.bf16.msra.mxu0 0
    %3952 = vmatprep.subr.bf16.mxu0 0
    %3953 = vmatpush1.bf16.msra.mxu0 0
    %3954 = vmatprep.subr.bf16.mxu0 0
    %3955 = vmatpush1.bf16.msra.mxu0 0
    %3956 = vmatprep.subr.bf16.mxu0 0
    %3957 = vmatpush1.bf16.msra.mxu0 0
    %3958 = vmatprep.subr.bf16.mxu0 0
    %3959 = vmatpush1.bf16.msra.mxu0 0
    %3960 = vmatprep.mubr.bf16.mxu0 0
    %3961 = vmatmul.mubr.bf16.gmra.mrb[0].mxu0 %v3872
    %v3962 = vpop.f32.mrb[0].mxu0
    %v3963 = vadd.f32 %v3878, %v3962
    %v3964 = vpop.f32.mrb[0].mxu0
    %v3965 = vpop.f32.mrb[0].mxu0
    %v3966 = vpop.f32.mrb[0].mxu0
    %3967 = vdwg.mxu0
    %v3968 = vtanh.pop %v3963
    %3969 = vst [vmem:[#allocation2] sm:$0x3] %v3968
    // Predicated region
    $region94: #{bert_forward.1} parent=1 // pred_check
      _
    $region95: #{bert_forward.1} parent=1 // pred_check_branch
      %3971 = sbr.rel (0) target = $region97
    $region96: #{bert_forward.1} parent=1 // pred_region
      %s3973 = ssub.s32 32, 32
      %3974 = vsyncadd [#allocation3], %s3973
      %s3976 = sshll.u32 [#allocation2], 4
      %s3977 = int_to_ptr.vmem [resolvable:$true] %s3976
      %3979 = dma.vmem_to_hbm [thread:$0]  %s3977, 32, %s23, [#allocation3]
    $region97: #{bert_forward.1} parent=1 // pred_fallthru
      _
    // Predicated region
    $region98: #{bert_forward.1} parent=1 // pred_check
      _
    $region99: #{bert_forward.1} parent=1 // pred_check_branch
      %3981 = sbr.rel (0) target = $region101
    $region100: #{bert_forward.1} parent=1 // pred_region
      %3982 = dma.done [#allocation3], 32
    $region101: #{bert_forward.1} parent=1 // pred_fallthru
      _
    %3983 = vsyncpa [#allocation3], 1

</llo_original>
